<compile_context>
chip_gen: v5e
topology: v5e:2x2
jax: 0.10.0
libtpu: 0.0.40
codegen_flags: <defaults>
</compile_context>

<pallas_src>
import jax
import jax.numpy as jnp
from jax.experimental import pallas as pl
from jax.experimental.pallas import tpu as pltpu

BN_EPS = 1e-5


def _mlp_kernel(x_ref,
                w1, b1, w2, b2, w3, b3, w4, b4, w5, b5, w6, b6,
                g1, be1, g2, be2, g3, be3,
                o_ref, acc_ref):
    """Fused SixLayerMLP forward.

    Grid axis 0 chunks the fc1 contraction dimension so the w1 stream overlaps
    with MXU work; layer-1 partial products accumulate into the f32 VMEM
    scratch `acc_ref`.  Everything else runs on the final grid step.
    """
    k = pl.program_id(0)

    @pl.when(k == 0)
    def _():
        acc_ref[...] = jnp.zeros_like(acc_ref)

    # Layer-1 partial matmul for this K-chunk (bf16 x bf16 -> f32 on the MXU).
    acc_ref[...] += jnp.dot(x_ref[...], w1[...],
                            preferred_element_type=jnp.float32)

    @pl.when(k == pl.num_programs(0) - 1)
    def _():
        def linear_relu(h, w_ref, b_ref):
            z = jnp.dot(h.astype(jnp.bfloat16), w_ref[...],
                        preferred_element_type=jnp.float32) + b_ref[...]
            return jnp.maximum(z, 0.0)

        def batchnorm(h, gamma_ref, beta_ref):
            # BatchNorm1d, training mode: batch stats, biased variance.
            # Two-pass variance (E[(h-mean)^2]) for numerical robustness; the
            # extra VPU work is hidden under the weight DMA.
            mean = jnp.mean(h, axis=0, keepdims=True)
            centered = h - mean
            var = jnp.mean(centered * centered, axis=0, keepdims=True)
            scale = jax.lax.rsqrt(var + BN_EPS) * gamma_ref[...]
            return centered * scale + beta_ref[...]

        h1 = jnp.maximum(acc_ref[...] + b1[...], 0.0)          # fc1 + ReLU
        first = batchnorm(h1, g1, be1)
        second = batchnorm(linear_relu(first, w2, b2), g1, be1) + first
        third = batchnorm(linear_relu(second, w3, b3), g2, be2)
        fourth = batchnorm(linear_relu(third, w4, b4), g2, be2) + third
        fifth = batchnorm(linear_relu(fourth, w5, b5), g3, be3)

        out = jnp.dot(fifth.astype(jnp.bfloat16), w6[...],
                      preferred_element_type=jnp.float32) + b6[...]
        o_ref[...] = out.astype(o_ref.dtype)


@jax.jit
def six_layer_mlp(x_nchw, params):
    """x_nchw: (B, 3, 32, 32) float32. `params` must come from prepare_params()
    (weights already bf16 — no per-call casts). Returns (B, num_class) f32."""
    B = x_nchw.shape[0]
    x_flat = x_nchw.reshape(B, -1).astype(jnp.bfloat16)  # == torch.flatten(x, 1)
    K1 = x_flat.shape[1]
    H1 = params["w1"].shape[1]
    num_class = params["w6"].shape[1]

    # Chunk fc1's contraction dim. tk=1024 -> 3 steps at K1=3072: hides most
    # of the w1 DMA on v5e/v6e, while only 2-3 steps of fixed per-step
    # overhead keeps v7x (1.3 µs total weight DMA) from regressing.
    tk = 1024 if (K1 % 1024 == 0 and K1 > 1024) else K1
    num_k = K1 // tk

    operands = (
        x_flat,
        params["w1"], params["b1"],
        params["w2"], params["b2"],
        params["w3"], params["b3"],
        params["w4"], params["b4"],
        params["w5"], params["b5"],
        params["w6"], params["b6"],
        params["g1"], params["be1"],
        params["g2"], params["be2"],
        params["g3"], params["be3"],
    )

    in_specs = [
        pl.BlockSpec((B, tk), lambda k: (0, k)),    # x: pipelined over K
        pl.BlockSpec((tk, H1), lambda k: (k, 0)),   # w1: pipelined over K
    ] + [
        # Everything else: full block, constant index -> DMA'd only once.
        pl.BlockSpec(op.shape, lambda k: (0, 0)) for op in operands[2:]
    ]

    # Advisory cost hint so XLA schedules neighbours around the custom call.
    flops = 2 * B * (K1 * 512 + 512 * 512 + 512 * 256 + 256 * 256
                     + 256 * 128 + 128 * num_class)
    weight_bytes = 2 * (K1 * 512 + 512 * 512 + 512 * 256 + 256 * 256
                        + 256 * 128 + 128 * num_class)
    bytes_accessed = weight_bytes + x_flat.size * 2 + B * num_class * 4
    transcendentals = 5 * 512  # rsqrt per BN feature (upper bound)

    out = pl.pallas_call(
        _mlp_kernel,
        out_shape=jax.ShapeDtypeStruct((B, num_class), jnp.float32),
        grid=(num_k,),
        in_specs=in_specs,
        out_specs=pl.BlockSpec((B, num_class), lambda k: (0, 0)),
        scratch_shapes=[pltpu.VMEM((B, H1), jnp.float32)],
        compiler_params=pltpu.CompilerParams(
            dimension_semantics=("arbitrary",)),
        cost_estimate=pl.CostEstimate(
            flops=flops, transcendentals=transcendentals,
            bytes_accessed=bytes_accessed),
    )(*operands)
    return out


def prepare_params(params):
    """One-time weight prep (call OUTSIDE the per-step jitted path): cast the
    matmul weights to bf16 so the wrapper emits no per-call convert HLOs and
    the kernel reads half the HBM weight bytes. Biases / BN params stay f32."""
    prepped = dict(params)
    for i in range(1, 7):
        prepped[f"w{i}"] = params[f"w{i}"].astype(jnp.bfloat16)
    return prepped


def init_params(key, input_size=3 * 32 * 32, num_class=10):
    """Deterministic synthetic parameters with the module's shapes.

    Linear weights stored as (in_features, out_features) so the kernel does
    x @ W + b (equivalent to torch's x @ W.T with W of shape (out, in))."""
    dims = [(input_size, 512), (512, 512), (512, 256),
            (256, 256), (256, 128), (128, num_class)]
    params = {}
    keys = jax.random.split(key, 2 * len(dims))
    for i, (fin, fout) in enumerate(dims):
        bound = 1.0 / jnp.sqrt(fin)
        params[f"w{i+1}"] = jax.random.uniform(
            keys[2 * i], (fin, fout), jnp.float32, -bound, bound)
        # biases kept 2-D (1, fout) for clean lane layout / broadcasting
        params[f"b{i+1}"] = jax.random.uniform(
            keys[2 * i + 1], (1, fout), jnp.float32, -bound, bound)
    # BatchNorm affine params: default init gamma=1, beta=0
    for name, width in (("1", 512), ("2", 256), ("3", 128)):
        params[f"g{name}"] = jnp.ones((1, width), jnp.float32)
        params[f"be{name}"] = jnp.zeros((1, width), jnp.float32)
    return params


def reference_forward(x_nchw, params):
    """Pure-JAX reference mirroring the kernel's bf16 matmuls / two-pass BN."""
    x = x_nchw.reshape(x_nchw.shape[0], -1).astype(jnp.bfloat16)

    def lin_relu(h, w, b):
        z = jnp.dot(h.astype(jnp.bfloat16), w.astype(jnp.bfloat16),
                    preferred_element_type=jnp.float32) + b
        return jnp.maximum(z, 0.0)

    def bn(h, g, be):
        m = jnp.mean(h, axis=0, keepdims=True)
        c = h - m
        v = jnp.mean(c * c, axis=0, keepdims=True)
        scale = jax.lax.rsqrt(v + BN_EPS) * g
        return c * scale + be

    first = bn(lin_relu(x, params["w1"], params["b1"]), params["g1"], params["be1"])
    second = bn(lin_relu(first, params["w2"], params["b2"]), params["g1"], params["be1"]) + first
    third = bn(lin_relu(second, params["w3"], params["b3"]), params["g2"], params["be2"])
    fourth = bn(lin_relu(third, params["w4"], params["b4"]), params["g2"], params["be2"]) + third
    fifth = bn(lin_relu(fourth, params["w5"], params["b5"]), params["g3"], params["be3"])
    return jnp.dot(fifth.astype(jnp.bfloat16), params["w6"].astype(jnp.bfloat16),
                   preferred_element_type=jnp.float32) + params["b6"]


if __name__ == "__main__":
    key = jax.random.PRNGKey(0)
    pkey, xkey = jax.random.split(key)

    raw_params = init_params(pkey)
    params = prepare_params(raw_params)   # one-time bf16 cast, outside jit

    B = 8  # small batch; batch-stat BN needs B > 1
    x = jax.random.normal(xkey, (B, 3, 32, 32), jnp.float32)

    out = jax.block_until_ready(six_layer_mlp(x, params))
    ref = jax.block_until_ready(reference_forward(x, raw_params))

    assert out.shape == (B, 10), out.shape
    max_err = float(jnp.max(jnp.abs(out - ref)))
    assert max_err < 1e-2, max_err

    print("KERNEL_OK")
</pallas_src>

<mosaic_0001>
module attributes {stable_mosaic.version = 11 : i64} {
  func.func @_mlp_kernel(%arg0: i32, %arg1: memref<8x1024xbf16, #tpu.memory_space<vmem>>, %arg2: memref<1024x512xbf16, #tpu.memory_space<vmem>>, %arg3: memref<1x512xf32, #tpu.memory_space<vmem>>, %arg4: memref<512x512xbf16, #tpu.memory_space<vmem>>, %arg5: memref<1x512xf32, #tpu.memory_space<vmem>>, %arg6: memref<512x256xbf16, #tpu.memory_space<vmem>>, %arg7: memref<1x256xf32, #tpu.memory_space<vmem>>, %arg8: memref<256x256xbf16, #tpu.memory_space<vmem>>, %arg9: memref<1x256xf32, #tpu.memory_space<vmem>>, %arg10: memref<256x128xbf16, #tpu.memory_space<vmem>>, %arg11: memref<1x128xf32, #tpu.memory_space<vmem>>, %arg12: memref<128x10xbf16, #tpu.memory_space<vmem>>, %arg13: memref<1x10xf32, #tpu.memory_space<vmem>>, %arg14: memref<1x512xf32, #tpu.memory_space<vmem>>, %arg15: memref<1x512xf32, #tpu.memory_space<vmem>>, %arg16: memref<1x256xf32, #tpu.memory_space<vmem>>, %arg17: memref<1x256xf32, #tpu.memory_space<vmem>>, %arg18: memref<1x128xf32, #tpu.memory_space<vmem>>, %arg19: memref<1x128xf32, #tpu.memory_space<vmem>>, %arg20: memref<8x10xf32, #tpu.memory_space<vmem>>, %arg21: memref<8x512xf32, #tpu.memory_space<vmem>>) attributes {dimension_semantics = [#tpu.dimension_semantics<arbitrary>], iteration_bounds = array<i64: 3>, scalar_prefetch = 0 : i64, scratch_operands = 1 : i64, tpu.core_type = #tpu.core_type<tc>, window_params = [{transform_indices = @transform_0, window_bounds = array<i64: 8, 1024>}, {transform_indices = @transform_1, window_bounds = array<i64: 1024, 512>}, {pipeline_mode = #tpu.pipeline_mode<synchronous>, transform_indices = @transform_2, window_bounds = array<i64: 1, 512>}, {pipeline_mode = #tpu.pipeline_mode<synchronous>, transform_indices = @transform_3, window_bounds = array<i64: 512, 512>}, {pipeline_mode = #tpu.pipeline_mode<synchronous>, transform_indices = @transform_4, window_bounds = array<i64: 1, 512>}, {pipeline_mode = #tpu.pipeline_mode<synchronous>, transform_indices = @transform_5, window_bounds = array<i64: 512, 256>}, {pipeline_mode = #tpu.pipeline_mode<synchronous>, transform_indices = @transform_6, window_bounds = array<i64: 1, 256>}, {pipeline_mode = #tpu.pipeline_mode<synchronous>, transform_indices = @transform_7, window_bounds = array<i64: 256, 256>}, {pipeline_mode = #tpu.pipeline_mode<synchronous>, transform_indices = @transform_8, window_bounds = array<i64: 1, 256>}, {pipeline_mode = #tpu.pipeline_mode<synchronous>, transform_indices = @transform_9, window_bounds = array<i64: 256, 128>}, {pipeline_mode = #tpu.pipeline_mode<synchronous>, transform_indices = @transform_10, window_bounds = array<i64: 1, 128>}, {pipeline_mode = #tpu.pipeline_mode<synchronous>, transform_indices = @transform_11, window_bounds = array<i64: 128, 10>}, {pipeline_mode = #tpu.pipeline_mode<synchronous>, transform_indices = @transform_12, window_bounds = array<i64: 1, 10>}, {pipeline_mode = #tpu.pipeline_mode<synchronous>, transform_indices = @transform_13, window_bounds = array<i64: 1, 512>}, {pipeline_mode = #tpu.pipeline_mode<synchronous>, transform_indices = @transform_14, window_bounds = array<i64: 1, 512>}, {pipeline_mode = #tpu.pipeline_mode<synchronous>, transform_indices = @transform_15, window_bounds = array<i64: 1, 256>}, {pipeline_mode = #tpu.pipeline_mode<synchronous>, transform_indices = @transform_16, window_bounds = array<i64: 1, 256>}, {pipeline_mode = #tpu.pipeline_mode<synchronous>, transform_indices = @transform_17, window_bounds = array<i64: 1, 128>}, {pipeline_mode = #tpu.pipeline_mode<synchronous>, transform_indices = @transform_18, window_bounds = array<i64: 1, 128>}, {pipeline_mode = #tpu.pipeline_mode<synchronous>, transform_indices = @transform_19, window_bounds = array<i64: 8, 10>}]} {
    %c0_i32 = arith.constant 0 : i32
    %0 = arith.cmpi eq, %arg0, %c0_i32 : i32
    %1 = arith.extui %0 : i1 to i32
    %c0_i32_0 = arith.constant 0 : i32
    %2 = arith.cmpi ne, %1, %c0_i32_0 : i32
    scf.if %2 {
      %cst_9 = arith.constant 0.000000e+00 : f32
      %12 = vector.broadcast %cst_9 : f32 to vector<8x512xf32>
      %c0_10 = arith.constant 0 : index
      %c0_11 = arith.constant 0 : index
      %13 = vector.load %arg21[%c0_10, %c0_11] : memref<8x512xf32, #tpu.memory_space<vmem>>, vector<8x512xf32>
      tpu.vector_store %arg21[%c0_10, %c0_11], %12 {strides = array<i32>} : memref<8x512xf32, #tpu.memory_space<vmem>>, vector<8x512xf32>,
    } else {
    }
    %c0 = arith.constant 0 : index
    %c0_1 = arith.constant 0 : index
    %3 = vector.load %arg21[%c0, %c0_1] : memref<8x512xf32, #tpu.memory_space<vmem>>, vector<8x512xf32>
    %c0_2 = arith.constant 0 : index
    %c0_3 = arith.constant 0 : index
    %4 = vector.load %arg1[%c0_2, %c0_3] : memref<8x1024xbf16, #tpu.memory_space<vmem>>, vector<8x1024xbf16>
    %c0_4 = arith.constant 0 : index
    %c0_5 = arith.constant 0 : index
    %5 = vector.load %arg2[%c0_4, %c0_5] : memref<1024x512xbf16, #tpu.memory_space<vmem>>, vector<1024x512xbf16>
    %cst = arith.constant dense<0.000000e+00> : vector<8x512xf32>
    %6 = tpu.matmul %4, %5, %cst {dimension_numbers = #tpu.dot_dimension_numbers<[1], [0], [0], [1], [0, 0, 1, 1], [], []>} : vector<8x1024xbf16>, vector<1024x512xbf16>, vector<8x512xf32> -> vector<8x512xf32>
    %7 = arith.addf %3, %6 : vector<8x512xf32>
    %c0_6 = arith.constant 0 : index
    %c0_7 = arith.constant 0 : index
    %8 = vector.load %arg21[%c0_6, %c0_7] : memref<8x512xf32, #tpu.memory_space<vmem>>, vector<8x512xf32>
    tpu.vector_store %arg21[%c0_6, %c0_7], %7 {strides = array<i32>} : memref<8x512xf32, #tpu.memory_space<vmem>>, vector<8x512xf32>,
    %c2_i32 = arith.constant 2 : i32
    %9 = arith.cmpi eq, %arg0, %c2_i32 : i32
    %10 = arith.extui %9 : i1 to i32
    %c0_i32_8 = arith.constant 0 : i32
    %11 = arith.cmpi ne, %10, %c0_i32_8 : i32
    scf.if %11 {
      %c0_9 = arith.constant 0 : index
      %c0_10 = arith.constant 0 : index
      %12 = vector.load %arg21[%c0_9, %c0_10] : memref<8x512xf32, #tpu.memory_space<vmem>>, vector<8x512xf32>
      %c0_11 = arith.constant 0 : index
      %c0_12 = arith.constant 0 : index
      %13 = vector.load %arg3[%c0_11, %c0_12] : memref<1x512xf32, #tpu.memory_space<vmem>>, vector<1x512xf32>
      %14 = vector.broadcast %13 : vector<1x512xf32> to vector<8x512xf32>
      %15 = arith.addf %12, %14 : vector<8x512xf32>
      %cst_13 = arith.constant 0.000000e+00 : f32
      %16 = vector.broadcast %cst_13 : f32 to vector<8x512xf32>
      %17 = arith.maximumf %15, %16 : vector<8x512xf32>
      %cst_14 = arith.constant dense<0.000000e+00> : vector<512xf32>
      %18 = vector.multi_reduction <add>, %17, %cst_14 [0] : vector<8x512xf32> to vector<512xf32>
      %19 = vector.shape_cast %18 : vector<512xf32> to vector<1x512xf32>
      %cst_15 = arith.constant 8.000000e+00 : f32
      %20 = vector.broadcast %cst_15 : f32 to vector<1x512xf32>
      %21 = arith.divf %19, %20 : vector<1x512xf32>
      %22 = vector.broadcast %21 : vector<1x512xf32> to vector<8x512xf32>
      %23 = arith.subf %17, %22 : vector<8x512xf32>
      %24 = arith.mulf %23, %23 : vector<8x512xf32>
      %cst_16 = arith.constant dense<0.000000e+00> : vector<512xf32>
      %25 = vector.multi_reduction <add>, %24, %cst_16 [0] : vector<8x512xf32> to vector<512xf32>
      %26 = vector.shape_cast %25 : vector<512xf32> to vector<1x512xf32>
      %cst_17 = arith.constant 8.000000e+00 : f32
      %27 = vector.broadcast %cst_17 : f32 to vector<1x512xf32>
      %28 = arith.divf %26, %27 : vector<1x512xf32>
      %cst_18 = arith.constant 9.99999974E-6 : f32
      %29 = vector.broadcast %cst_18 : f32 to vector<1x512xf32>
      %30 = arith.addf %28, %29 : vector<1x512xf32>
      %31 = math.rsqrt %30 : vector<1x512xf32>
      %c0_19 = arith.constant 0 : index
      %c0_20 = arith.constant 0 : index
      %32 = vector.load %arg14[%c0_19, %c0_20] : memref<1x512xf32, #tpu.memory_space<vmem>>, vector<1x512xf32>
      %33 = arith.mulf %31, %32 : vector<1x512xf32>
      %34 = vector.broadcast %33 : vector<1x512xf32> to vector<8x512xf32>
      %35 = arith.mulf %23, %34 : vector<8x512xf32>
      %c0_21 = arith.constant 0 : index
      %c0_22 = arith.constant 0 : index
      %36 = vector.load %arg15[%c0_21, %c0_22] : memref<1x512xf32, #tpu.memory_space<vmem>>, vector<1x512xf32>
      %37 = vector.broadcast %36 : vector<1x512xf32> to vector<8x512xf32>
      %38 = arith.addf %35, %37 : vector<8x512xf32>
      %39 = arith.truncf %38 : vector<8x512xf32> to vector<8x512xbf16>
      %c0_23 = arith.constant 0 : index
      %c0_24 = arith.constant 0 : index
      %40 = vector.load %arg4[%c0_23, %c0_24] : memref<512x512xbf16, #tpu.memory_space<vmem>>, vector<512x512xbf16>
      %cst_25 = arith.constant dense<0.000000e+00> : vector<8x512xf32>
      %41 = tpu.matmul %39, %40, %cst_25 {dimension_numbers = #tpu.dot_dimension_numbers<[1], [0], [0], [1], [0, 0, 1, 1], [], []>} : vector<8x512xbf16>, vector<512x512xbf16>, vector<8x512xf32> -> vector<8x512xf32>
      %c0_26 = arith.constant 0 : index
      %c0_27 = arith.constant 0 : index
      %42 = vector.load %arg5[%c0_26, %c0_27] : memref<1x512xf32, #tpu.memory_space<vmem>>, vector<1x512xf32>
      %43 = vector.broadcast %42 : vector<1x512xf32> to vector<8x512xf32>
      %44 = arith.addf %41, %43 : vector<8x512xf32>
      %cst_28 = arith.constant 0.000000e+00 : f32
      %45 = vector.broadcast %cst_28 : f32 to vector<8x512xf32>
      %46 = arith.maximumf %44, %45 : vector<8x512xf32>
      %cst_29 = arith.constant dense<0.000000e+00> : vector<512xf32>
      %47 = vector.multi_reduction <add>, %46, %cst_29 [0] : vector<8x512xf32> to vector<512xf32>
      %48 = vector.shape_cast %47 : vector<512xf32> to vector<1x512xf32>
      %cst_30 = arith.constant 8.000000e+00 : f32
      %49 = vector.broadcast %cst_30 : f32 to vector<1x512xf32>
      %50 = arith.divf %48, %49 : vector<1x512xf32>
      %51 = vector.broadcast %50 : vector<1x512xf32> to vector<8x512xf32>
      %52 = arith.subf %46, %51 : vector<8x512xf32>
      %53 = arith.mulf %52, %52 : vector<8x512xf32>
      %cst_31 = arith.constant dense<0.000000e+00> : vector<512xf32>
      %54 = vector.multi_reduction <add>, %53, %cst_31 [0] : vector<8x512xf32> to vector<512xf32>
      %55 = vector.shape_cast %54 : vector<512xf32> to vector<1x512xf32>
      %cst_32 = arith.constant 8.000000e+00 : f32
      %56 = vector.broadcast %cst_32 : f32 to vector<1x512xf32>
      %57 = arith.divf %55, %56 : vector<1x512xf32>
      %cst_33 = arith.constant 9.99999974E-6 : f32
      %58 = vector.broadcast %cst_33 : f32 to vector<1x512xf32>
      %59 = arith.addf %57, %58 : vector<1x512xf32>
      %60 = math.rsqrt %59 : vector<1x512xf32>
      %c0_34 = arith.constant 0 : index
      %c0_35 = arith.constant 0 : index
      %61 = vector.load %arg14[%c0_34, %c0_35] : memref<1x512xf32, #tpu.memory_space<vmem>>, vector<1x512xf32>
      %62 = arith.mulf %60, %61 : vector<1x512xf32>
      %63 = vector.broadcast %62 : vector<1x512xf32> to vector<8x512xf32>
      %64 = arith.mulf %52, %63 : vector<8x512xf32>
      %c0_36 = arith.constant 0 : index
      %c0_37 = arith.constant 0 : index
      %65 = vector.load %arg15[%c0_36, %c0_37] : memref<1x512xf32, #tpu.memory_space<vmem>>, vector<1x512xf32>
      %66 = vector.broadcast %65 : vector<1x512xf32> to vector<8x512xf32>
      %67 = arith.addf %64, %66 : vector<8x512xf32>
      %68 = arith.addf %67, %38 : vector<8x512xf32>
      %69 = arith.truncf %68 : vector<8x512xf32> to vector<8x512xbf16>
      %c0_38 = arith.constant 0 : index
      %c0_39 = arith.constant 0 : index
      %70 = vector.load %arg6[%c0_38, %c0_39] : memref<512x256xbf16, #tpu.memory_space<vmem>>, vector<512x256xbf16>
      %cst_40 = arith.constant dense<0.000000e+00> : vector<8x256xf32>
      %71 = tpu.matmul %69, %70, %cst_40 {dimension_numbers = #tpu.dot_dimension_numbers<[1], [0], [0], [1], [0, 0, 1, 1], [], []>} : vector<8x512xbf16>, vector<512x256xbf16>, vector<8x256xf32> -> vector<8x256xf32>
      %c0_41 = arith.constant 0 : index
      %c0_42 = arith.constant 0 : index
      %72 = vector.load %arg7[%c0_41, %c0_42] : memref<1x256xf32, #tpu.memory_space<vmem>>, vector<1x256xf32>
      %73 = vector.broadcast %72 : vector<1x256xf32> to vector<8x256xf32>
      %74 = arith.addf %71, %73 : vector<8x256xf32>
      %cst_43 = arith.constant 0.000000e+00 : f32
      %75 = vector.broadcast %cst_43 : f32 to vector<8x256xf32>
      %76 = arith.maximumf %74, %75 : vector<8x256xf32>
      %cst_44 = arith.constant dense<0.000000e+00> : vector<256xf32>
      %77 = vector.multi_reduction <add>, %76, %cst_44 [0] : vector<8x256xf32> to vector<256xf32>
      %78 = vector.shape_cast %77 : vector<256xf32> to vector<1x256xf32>
      %cst_45 = arith.constant 8.000000e+00 : f32
      %79 = vector.broadcast %cst_45 : f32 to vector<1x256xf32>
      %80 = arith.divf %78, %79 : vector<1x256xf32>
      %81 = vector.broadcast %80 : vector<1x256xf32> to vector<8x256xf32>
      %82 = arith.subf %76, %81 : vector<8x256xf32>
      %83 = arith.mulf %82, %82 : vector<8x256xf32>
      %cst_46 = arith.constant dense<0.000000e+00> : vector<256xf32>
      %84 = vector.multi_reduction <add>, %83, %cst_46 [0] : vector<8x256xf32> to vector<256xf32>
      %85 = vector.shape_cast %84 : vector<256xf32> to vector<1x256xf32>
      %cst_47 = arith.constant 8.000000e+00 : f32
      %86 = vector.broadcast %cst_47 : f32 to vector<1x256xf32>
      %87 = arith.divf %85, %86 : vector<1x256xf32>
      %cst_48 = arith.constant 9.99999974E-6 : f32
      %88 = vector.broadcast %cst_48 : f32 to vector<1x256xf32>
      %89 = arith.addf %87, %88 : vector<1x256xf32>
      %90 = math.rsqrt %89 : vector<1x256xf32>
      %c0_49 = arith.constant 0 : index
      %c0_50 = arith.constant 0 : index
      %91 = vector.load %arg16[%c0_49, %c0_50] : memref<1x256xf32, #tpu.memory_space<vmem>>, vector<1x256xf32>
      %92 = arith.mulf %90, %91 : vector<1x256xf32>
      %93 = vector.broadcast %92 : vector<1x256xf32> to vector<8x256xf32>
      %94 = arith.mulf %82, %93 : vector<8x256xf32>
      %c0_51 = arith.constant 0 : index
      %c0_52 = arith.constant 0 : index
      %95 = vector.load %arg17[%c0_51, %c0_52] : memref<1x256xf32, #tpu.memory_space<vmem>>, vector<1x256xf32>
      %96 = vector.broadcast %95 : vector<1x256xf32> to vector<8x256xf32>
      %97 = arith.addf %94, %96 : vector<8x256xf32>
      %98 = arith.truncf %97 : vector<8x256xf32> to vector<8x256xbf16>
      %c0_53 = arith.constant 0 : index
      %c0_54 = arith.constant 0 : index
      %99 = vector.load %arg8[%c0_53, %c0_54] : memref<256x256xbf16, #tpu.memory_space<vmem>>, vector<256x256xbf16>
      %cst_55 = arith.constant dense<0.000000e+00> : vector<8x256xf32>
      %100 = tpu.matmul %98, %99, %cst_55 {dimension_numbers = #tpu.dot_dimension_numbers<[1], [0], [0], [1], [0, 0, 1, 1], [], []>} : vector<8x256xbf16>, vector<256x256xbf16>, vector<8x256xf32> -> vector<8x256xf32>
      %c0_56 = arith.constant 0 : index
      %c0_57 = arith.constant 0 : index
      %101 = vector.load %arg9[%c0_56, %c0_57] : memref<1x256xf32, #tpu.memory_space<vmem>>, vector<1x256xf32>
      %102 = vector.broadcast %101 : vector<1x256xf32> to vector<8x256xf32>
      %103 = arith.addf %100, %102 : vector<8x256xf32>
      %cst_58 = arith.constant 0.000000e+00 : f32
      %104 = vector.broadcast %cst_58 : f32 to vector<8x256xf32>
      %105 = arith.maximumf %103, %104 : vector<8x256xf32>
      %cst_59 = arith.constant dense<0.000000e+00> : vector<256xf32>
      %106 = vector.multi_reduction <add>, %105, %cst_59 [0] : vector<8x256xf32> to vector<256xf32>
      %107 = vector.shape_cast %106 : vector<256xf32> to vector<1x256xf32>
      %cst_60 = arith.constant 8.000000e+00 : f32
      %108 = vector.broadcast %cst_60 : f32 to vector<1x256xf32>
      %109 = arith.divf %107, %108 : vector<1x256xf32>
      %110 = vector.broadcast %109 : vector<1x256xf32> to vector<8x256xf32>
      %111 = arith.subf %105, %110 : vector<8x256xf32>
      %112 = arith.mulf %111, %111 : vector<8x256xf32>
      %cst_61 = arith.constant dense<0.000000e+00> : vector<256xf32>
      %113 = vector.multi_reduction <add>, %112, %cst_61 [0] : vector<8x256xf32> to vector<256xf32>
      %114 = vector.shape_cast %113 : vector<256xf32> to vector<1x256xf32>
      %cst_62 = arith.constant 8.000000e+00 : f32
      %115 = vector.broadcast %cst_62 : f32 to vector<1x256xf32>
      %116 = arith.divf %114, %115 : vector<1x256xf32>
      %cst_63 = arith.constant 9.99999974E-6 : f32
      %117 = vector.broadcast %cst_63 : f32 to vector<1x256xf32>
      %118 = arith.addf %116, %117 : vector<1x256xf32>
      %119 = math.rsqrt %118 : vector<1x256xf32>
      %c0_64 = arith.constant 0 : index
      %c0_65 = arith.constant 0 : index
      %120 = vector.load %arg16[%c0_64, %c0_65] : memref<1x256xf32, #tpu.memory_space<vmem>>, vector<1x256xf32>
      %121 = arith.mulf %119, %120 : vector<1x256xf32>
      %122 = vector.broadcast %121 : vector<1x256xf32> to vector<8x256xf32>
      %123 = arith.mulf %111, %122 : vector<8x256xf32>
      %c0_66 = arith.constant 0 : index
      %c0_67 = arith.constant 0 : index
      %124 = vector.load %arg17[%c0_66, %c0_67] : memref<1x256xf32, #tpu.memory_space<vmem>>, vector<1x256xf32>
      %125 = vector.broadcast %124 : vector<1x256xf32> to vector<8x256xf32>
      %126 = arith.addf %123, %125 : vector<8x256xf32>
      %127 = arith.addf %126, %97 : vector<8x256xf32>
      %128 = arith.truncf %127 : vector<8x256xf32> to vector<8x256xbf16>
      %c0_68 = arith.constant 0 : index
      %c0_69 = arith.constant 0 : index
      %129 = vector.load %arg10[%c0_68, %c0_69] : memref<256x128xbf16, #tpu.memory_space<vmem>>, vector<256x128xbf16>
      %cst_70 = arith.constant dense<0.000000e+00> : vector<8x128xf32>
      %130 = tpu.matmul %128, %129, %cst_70 {dimension_numbers = #tpu.dot_dimension_numbers<[1], [0], [0], [1], [0, 0, 1, 1], [], []>} : vector<8x256xbf16>, vector<256x128xbf16>, vector<8x128xf32> -> vector<8x128xf32>
      %c0_71 = arith.constant 0 : index
      %c0_72 = arith.constant 0 : index
      %131 = vector.load %arg11[%c0_71, %c0_72] : memref<1x128xf32, #tpu.memory_space<vmem>>, vector<1x128xf32>
      %132 = vector.broadcast %131 : vector<1x128xf32> to vector<8x128xf32>
      %133 = arith.addf %130, %132 : vector<8x128xf32>
      %cst_73 = arith.constant 0.000000e+00 : f32
      %134 = vector.broadcast %cst_73 : f32 to vector<8x128xf32>
      %135 = arith.maximumf %133, %134 : vector<8x128xf32>
      %cst_74 = arith.constant dense<0.000000e+00> : vector<128xf32>
      %136 = vector.multi_reduction <add>, %135, %cst_74 [0] : vector<8x128xf32> to vector<128xf32>
      %137 = vector.shape_cast %136 : vector<128xf32> to vector<1x128xf32>
      %cst_75 = arith.constant 8.000000e+00 : f32
      %138 = vector.broadcast %cst_75 : f32 to vector<1x128xf32>
      %139 = arith.divf %137, %138 : vector<1x128xf32>
      %140 = vector.broadcast %139 : vector<1x128xf32> to vector<8x128xf32>
      %141 = arith.subf %135, %140 : vector<8x128xf32>
      %142 = arith.mulf %141, %141 : vector<8x128xf32>
      %cst_76 = arith.constant dense<0.000000e+00> : vector<128xf32>
      %143 = vector.multi_reduction <add>, %142, %cst_76 [0] : vector<8x128xf32> to vector<128xf32>
      %144 = vector.shape_cast %143 : vector<128xf32> to vector<1x128xf32>
      %cst_77 = arith.constant 8.000000e+00 : f32
      %145 = vector.broadcast %cst_77 : f32 to vector<1x128xf32>
      %146 = arith.divf %144, %145 : vector<1x128xf32>
      %cst_78 = arith.constant 9.99999974E-6 : f32
      %147 = vector.broadcast %cst_78 : f32 to vector<1x128xf32>
      %148 = arith.addf %146, %147 : vector<1x128xf32>
      %149 = math.rsqrt %148 : vector<1x128xf32>
      %c0_79 = arith.constant 0 : index
      %c0_80 = arith.constant 0 : index
      %150 = vector.load %arg18[%c0_79, %c0_80] : memref<1x128xf32, #tpu.memory_space<vmem>>, vector<1x128xf32>
      %151 = arith.mulf %149, %150 : vector<1x128xf32>
      %152 = vector.broadcast %151 : vector<1x128xf32> to vector<8x128xf32>
      %153 = arith.mulf %141, %152 : vector<8x128xf32>
      %c0_81 = arith.constant 0 : index
      %c0_82 = arith.constant 0 : index
      %154 = vector.load %arg19[%c0_81, %c0_82] : memref<1x128xf32, #tpu.memory_space<vmem>>, vector<1x128xf32>
      %155 = vector.broadcast %154 : vector<1x128xf32> to vector<8x128xf32>
      %156 = arith.addf %153, %155 : vector<8x128xf32>
      %157 = arith.truncf %156 : vector<8x128xf32> to vector<8x128xbf16>
      %c0_83 = arith.constant 0 : index
      %c0_84 = arith.constant 0 : index
      %158 = vector.load %arg12[%c0_83, %c0_84] : memref<128x10xbf16, #tpu.memory_space<vmem>>, vector<128x10xbf16>
      %cst_85 = arith.constant dense<0.000000e+00> : vector<8x10xf32>
      %159 = tpu.matmul %157, %158, %cst_85 {dimension_numbers = #tpu.dot_dimension_numbers<[1], [0], [0], [1], [0, 0, 1, 1], [], []>} : vector<8x128xbf16>, vector<128x10xbf16>, vector<8x10xf32> -> vector<8x10xf32>
      %c0_86 = arith.constant 0 : index
      %c0_87 = arith.constant 0 : index
      %160 = vector.load %arg13[%c0_86, %c0_87] : memref<1x10xf32, #tpu.memory_space<vmem>>, vector<1x10xf32>
      %161 = vector.broadcast %160 : vector<1x10xf32> to vector<8x10xf32>
      %162 = arith.addf %159, %161 : vector<8x10xf32>
      %c0_88 = arith.constant 0 : index
      %c0_89 = arith.constant 0 : index
      %163 = vector.load %arg20[%c0_88, %c0_89] : memref<8x10xf32, #tpu.memory_space<vmem>>, vector<8x10xf32>
      tpu.vector_store %arg20[%c0_88, %c0_89], %162 {strides = array<i32>} : memref<8x10xf32, #tpu.memory_space<vmem>>, vector<8x10xf32>,
    } else {
    }
    return
  }
  func.func @transform_0(%arg0: i32) -> (i32, i32) {
    %c0_i32 = arith.constant 0 : i32
    %c0_i32_0 = arith.constant 0 : i32
    return %c0_i32, %arg0 : i32, i32
  }
  func.func @transform_1(%arg0: i32) -> (i32, i32) {
    %c0_i32 = arith.constant 0 : i32
    %c0_i32_0 = arith.constant 0 : i32
    return %arg0, %c0_i32 : i32, i32
  }
  func.func @transform_2(%arg0: i32) -> (i32, i32) {
    %c0_i32 = arith.constant 0 : i32
    %c0_i32_0 = arith.constant 0 : i32
    %c0_i32_1 = arith.constant 0 : i32
    return %c0_i32, %c0_i32_0 : i32, i32
  }
  func.func @transform_3(%arg0: i32) -> (i32, i32) {
    %c0_i32 = arith.constant 0 : i32
    %c0_i32_0 = arith.constant 0 : i32
    %c0_i32_1 = arith.constant 0 : i32
    return %c0_i32, %c0_i32_0 : i32, i32
  }
  func.func @transform_4(%arg0: i32) -> (i32, i32) {
    %c0_i32 = arith.constant 0 : i32
    %c0_i32_0 = arith.constant 0 : i32
    %c0_i32_1 = arith.constant 0 : i32
    return %c0_i32, %c0_i32_0 : i32, i32
  }
  func.func @transform_5(%arg0: i32) -> (i32, i32) {
    %c0_i32 = arith.constant 0 : i32
    %c0_i32_0 = arith.constant 0 : i32
    %c0_i32_1 = arith.constant 0 : i32
    return %c0_i32, %c0_i32_0 : i32, i32
  }
  func.func @transform_6(%arg0: i32) -> (i32, i32) {
    %c0_i32 = arith.constant 0 : i32
    %c0_i32_0 = arith.constant 0 : i32
    %c0_i32_1 = arith.constant 0 : i32
    return %c0_i32, %c0_i32_0 : i32, i32
  }
  func.func @transform_7(%arg0: i32) -> (i32, i32) {
    %c0_i32 = arith.constant 0 : i32
    %c0_i32_0 = arith.constant 0 : i32
    %c0_i32_1 = arith.constant 0 : i32
    return %c0_i32, %c0_i32_0 : i32, i32
  }
  func.func @transform_8(%arg0: i32) -> (i32, i32) {
    %c0_i32 = arith.constant 0 : i32
    %c0_i32_0 = arith.constant 0 : i32
    %c0_i32_1 = arith.constant 0 : i32
    return %c0_i32, %c0_i32_0 : i32, i32
  }
  func.func @transform_9(%arg0: i32) -> (i32, i32) {
    %c0_i32 = arith.constant 0 : i32
    %c0_i32_0 = arith.constant 0 : i32
    %c0_i32_1 = arith.constant 0 : i32
    return %c0_i32, %c0_i32_0 : i32, i32
  }
  func.func @transform_10(%arg0: i32) -> (i32, i32) {
    %c0_i32 = arith.constant 0 : i32
    %c0_i32_0 = arith.constant 0 : i32
    %c0_i32_1 = arith.constant 0 : i32
    return %c0_i32, %c0_i32_0 : i32, i32
  }
  func.func @transform_11(%arg0: i32) -> (i32, i32) {
    %c0_i32 = arith.constant 0 : i32
    %c0_i32_0 = arith.constant 0 : i32
    %c0_i32_1 = arith.constant 0 : i32
    return %c0_i32, %c0_i32_0 : i32, i32
  }
  func.func @transform_12(%arg0: i32) -> (i32, i32) {
    %c0_i32 = arith.constant 0 : i32
    %c0_i32_0 = arith.constant 0 : i32
    %c0_i32_1 = arith.constant 0 : i32
    return %c0_i32, %c0_i32_0 : i32, i32
  }
  func.func @transform_13(%arg0: i32) -> (i32, i32) {
    %c0_i32 = arith.constant 0 : i32
    %c0_i32_0 = arith.constant 0 : i32
    %c0_i32_1 = arith.constant 0 : i32
    return %c0_i32, %c0_i32_0 : i32, i32
  }
  func.func @transform_14(%arg0: i32) -> (i32, i32) {
    %c0_i32 = arith.constant 0 : i32
    %c0_i32_0 = arith.constant 0 : i32
    %c0_i32_1 = arith.constant 0 : i32
    return %c0_i32, %c0_i32_0 : i32, i32
  }
  func.func @transform_15(%arg0: i32) -> (i32, i32) {
    %c0_i32 = arith.constant 0 : i32
    %c0_i32_0 = arith.constant 0 : i32
    %c0_i32_1 = arith.constant 0 : i32
    return %c0_i32, %c0_i32_0 : i32, i32
  }
  func.func @transform_16(%arg0: i32) -> (i32, i32) {
    %c0_i32 = arith.constant 0 : i32
    %c0_i32_0 = arith.constant 0 : i32
    %c0_i32_1 = arith.constant 0 : i32
    return %c0_i32, %c0_i32_0 : i32, i32
  }
  func.func @transform_17(%arg0: i32) -> (i32, i32) {
    %c0_i32 = arith.constant 0 : i32
    %c0_i32_0 = arith.constant 0 : i32
    %c0_i32_1 = arith.constant 0 : i32
    return %c0_i32, %c0_i32_0 : i32, i32
  }
  func.func @transform_18(%arg0: i32) -> (i32, i32) {
    %c0_i32 = arith.constant 0 : i32
    %c0_i32_0 = arith.constant 0 : i32
    %c0_i32_1 = arith.constant 0 : i32
    return %c0_i32, %c0_i32_0 : i32, i32
  }
  func.func @transform_19(%arg0: i32) -> (i32, i32) {
    %c0_i32 = arith.constant 0 : i32
    %c0_i32_0 = arith.constant 0 : i32
    %c0_i32_1 = arith.constant 0 : i32
    return %c0_i32, %c0_i32_0 : i32, i32
  }
}

</mosaic_0001>

<llo_original>
// kernel: six_layer_mlp.1
$region0: #{six_layer_mlp.1}
  #allocation0 [shape = 'u32[]', space=smem, size = 0x4, offset = 0x4, fixed_abs, tag = 'smem constant byte address 0x4 - core index']
  #allocation1 [shape = 'u32[72,128]{1,0:T(1,128)}', space=vmem, size = 0x9000, scoped, tag = 'internal scratch']
  #allocation2 [shape = 'f32[8,512]{1,0:T(8,128)}', space=vmem, size = 0x4000, scoped, tag = 'scratch operand']
  %s0 = inlined_call_operand.vmem [shape: bf16[8,3072], index: 0, kind: input, shape index: {}]
  %s1 = inlined_call_operand.hbm [shape: bf16[3072,512], index: 1, kind: input, shape index: {}]
  %s2 = inlined_call_operand.hbm [shape: f32[1,512], index: 2, kind: input, shape index: {}]
  %s3 = inlined_call_operand.hbm [shape: bf16[512,512], index: 3, kind: input, shape index: {}]
  %s4 = inlined_call_operand.hbm [shape: f32[1,512], index: 4, kind: input, shape index: {}]
  %s5 = inlined_call_operand.hbm [shape: bf16[512,256], index: 5, kind: input, shape index: {}]
  %s6 = inlined_call_operand.hbm [shape: f32[1,256], index: 6, kind: input, shape index: {}]
  %s7 = inlined_call_operand.hbm [shape: bf16[256,256], index: 7, kind: input, shape index: {}]
  %s8 = inlined_call_operand.hbm [shape: f32[1,256], index: 8, kind: input, shape index: {}]
  %s9 = inlined_call_operand.hbm [shape: bf16[256,128], index: 9, kind: input, shape index: {}]
  %s10 = inlined_call_operand.hbm [shape: f32[1,128], index: 10, kind: input, shape index: {}]
  %s11 = inlined_call_operand.vmem [shape: bf16[128,10], index: 11, kind: input, shape index: {}]
  %s12 = inlined_call_operand.hbm [shape: f32[1,10], index: 12, kind: input, shape index: {}]
  %s13 = inlined_call_operand.hbm [shape: f32[1,512], index: 13, kind: input, shape index: {}]
  %s14 = inlined_call_operand.hbm [shape: f32[1,512], index: 14, kind: input, shape index: {}]
  %s15 = inlined_call_operand.hbm [shape: f32[1,256], index: 15, kind: input, shape index: {}]
  %s16 = inlined_call_operand.hbm [shape: f32[1,256], index: 16, kind: input, shape index: {}]
  %s17 = inlined_call_operand.hbm [shape: f32[1,128], index: 17, kind: input, shape index: {}]
  %s18 = inlined_call_operand.hbm [shape: f32[1,128], index: 18, kind: input, shape index: {}]
  %s19 = inlined_call_operand.hbm [shape: f32[8,10], index: 19, kind: output, shape index: {}]
  %s20 = sld [smem:[#allocation0]]
  $region185: #{six_layer_mlp.1} parent=0
    _
  %s22 = ssub.s32 1, %s20
  %s23 = scalar_select 0, %s22, %s20
  $region1: #{six_layer_mlp.1} parent=0
    #allocation3 [shape = 'u8[2097152]{0}', space=vmem, size = 0x200000, scoped, tag = 'input window, operand 1']
    #allocation4 [shape = 's32[2]{0}', space=sflag, size = 0x8, scoped, tag = 'scoped memory for six_layer_mlp.1']
    #allocation5 [shape = 's32[2]{0}', space=sflag, size = 0x8, scoped, tag = 'scoped memory for six_layer_mlp.1']
    #allocation6 [shape = 'u8[2048]{0}', space=vmem, size = 0x800, scoped, tag = 'input window, operand 2, single buffered']
    #allocation7 [shape = 's32[1]{0}', space=sflag, size = 0x4, scoped, tag = 'scoped memory for six_layer_mlp.1']
    #allocation8 [shape = 'u8[524288]{0}', space=vmem, size = 0x80000, scoped, tag = 'input window, operand 3, single buffered']
    #allocation9 [shape = 'u8[2048]{0}', space=vmem, size = 0x800, scoped, tag = 'input window, operand 4, single buffered']
    #allocation10 [shape = 's32[1]{0}', space=sflag, size = 0x4, scoped, tag = 'scoped memory for six_layer_mlp.1']
    #allocation11 [shape = 'u8[262144]{0}', space=vmem, size = 0x40000, scoped, tag = 'input window, operand 5, single buffered']
    #allocation12 [shape = 'u8[1024]{0}', space=vmem, size = 0x400, scoped, tag = 'input window, operand 6, single buffered']
    #allocation13 [shape = 's32[1]{0}', space=sflag, size = 0x4, scoped, tag = 'scoped memory for six_layer_mlp.1']
    #allocation14 [shape = 'u8[131072]{0}', space=vmem, size = 0x20000, scoped, tag = 'input window, operand 7, single buffered']
    #allocation15 [shape = 'u8[1024]{0}', space=vmem, size = 0x400, scoped, tag = 'input window, operand 8, single buffered']
    #allocation16 [shape = 's32[1]{0}', space=sflag, size = 0x4, scoped, tag = 'scoped memory for six_layer_mlp.1']
    #allocation17 [shape = 'u8[65536]{0}', space=vmem, size = 0x10000, scoped, tag = 'input window, operand 9, single buffered']
    #allocation18 [shape = 'u8[512]{0}', space=vmem, size = 0x400, scoped, tag = 'input window, operand 10, single buffered']
    #allocation19 [shape = 's32[1]{0}', space=sflag, size = 0x4, scoped, tag = 'scoped memory for six_layer_mlp.1']
    #allocation20 [shape = 'u8[512]{0}', space=vmem, size = 0x400, scoped, tag = 'input window, operand 12, single buffered']
    #allocation21 [shape = 'u8[2048]{0}', space=vmem, size = 0x800, scoped, tag = 'input window, operand 13, single buffered']
    #allocation22 [shape = 's32[1]{0}', space=sflag, size = 0x4, scoped, tag = 'scoped memory for six_layer_mlp.1']
    #allocation23 [shape = 'u8[2048]{0}', space=vmem, size = 0x800, scoped, tag = 'input window, operand 14, single buffered']
    #allocation24 [shape = 'u8[1024]{0}', space=vmem, size = 0x400, scoped, tag = 'input window, operand 15, single buffered']
    #allocation25 [shape = 's32[1]{0}', space=sflag, size = 0x4, scoped, tag = 'scoped memory for six_layer_mlp.1']
    #allocation26 [shape = 'u8[1024]{0}', space=vmem, size = 0x400, scoped, tag = 'input window, operand 16, single buffered']
    #allocation27 [shape = 'u8[512]{0}', space=vmem, size = 0x400, scoped, tag = 'input window, operand 17, single buffered']
    #allocation28 [shape = 's32[1]{0}', space=sflag, size = 0x4, scoped, tag = 'scoped memory for six_layer_mlp.1']
    #allocation29 [shape = 'u8[512]{0}', space=vmem, size = 0x400, scoped, tag = 'input window, operand 18, single buffered']
    #allocation30 [shape = 'u8[4096]{0}', space=vmem, size = 0x1000, scoped, tag = 'output window, operand 0, single buffered']
    %24 = vsyncpa [#allocation4], 0
    %s25 = scalar_lea.sflag [#allocation4], 1
    %26 = vsyncpa %s25, 0
    %27 = vsyncpa [#allocation7], 0
    %28 = vsyncpa [#allocation10], 0
    %29 = vsyncpa [#allocation13], 0
    %30 = vsyncpa [#allocation16], 0
    %31 = vsyncpa [#allocation19], 0
    %32 = vsyncpa [#allocation22], 0
    %33 = vsyncpa [#allocation25], 0
    %34 = vsyncpa [#allocation28], 0
    %35 = vsyncpa [#allocation5], 0
    loop: start=0, step=1, limit=5
    $region2: #{six_layer_mlp.1} parent=1 // loop_pre_header
      _
    $region3: #{six_layer_mlp.1} parent=1 // loop_header
      %s37 = sphi 0, %s41
      %p38 = scmp.ge.s32.totalorder %s37, 5
      %s47 = sphi 0, %s49
      %s50 = sphi 0, %s47
      %s51 = sphi 0, %s50
      %s67 = sphi 0, %s51
      %s73 = sphi 0, %s75
      %s76 = sphi 0, %s73
      %s77 = sphi 0, %s76
      %s93 = sphi 0, %s77
      %s97 = sphi 0, %s97
      %s99 = sphi 0, %s97
      %s100 = sphi 0, %s99
      %s114 = sphi 0, %s100
      %s118 = sphi 0, %s118
      %s120 = sphi 0, %s118
      %s121 = sphi 0, %s120
      %s135 = sphi 0, %s121
      %s139 = sphi 0, %s139
      %s141 = sphi 0, %s139
      %s142 = sphi 0, %s141
      %s156 = sphi 0, %s142
      %s160 = sphi 0, %s160
      %s162 = sphi 0, %s160
      %s163 = sphi 0, %s162
      %s177 = sphi 0, %s163
      %s181 = sphi 0, %s181
      %s183 = sphi 0, %s181
      %s184 = sphi 0, %s183
      %s198 = sphi 0, %s184
      %s202 = sphi 0, %s202
      %s204 = sphi 0, %s202
      %s205 = sphi 0, %s204
      %s219 = sphi 0, %s205
      %s223 = sphi 0, %s223
      %s225 = sphi 0, %s223
      %s226 = sphi 0, %s225
      %s240 = sphi 0, %s226
      %s244 = sphi 0, %s244
      %s246 = sphi 0, %s244
      %s247 = sphi 0, %s246
      %s261 = sphi 0, %s247
      %s265 = sphi 0, %s265
      %s267 = sphi 0, %s265
      %s268 = sphi 0, %s267
      %s282 = sphi 0, %s268
      %s286 = sphi 0, %s286
      %s288 = sphi 0, %s286
      %s289 = sphi 0, %s288
      %s303 = sphi 0, %s289
      %s307 = sphi 0, %s307
      %s309 = sphi 0, %s307
      %s310 = sphi 0, %s309
      %s324 = sphi 0, %s310
      %s328 = sphi 0, %s328
      %s330 = sphi 0, %s328
      %s331 = sphi 0, %s330
      %s345 = sphi 0, %s331
      %s349 = sphi 0, %s349
      %s351 = sphi 0, %s349
      %s352 = sphi 0, %s351
      %s366 = sphi 0, %s352
      %s370 = sphi 0, %s370
      %s372 = sphi 0, %s370
      %s373 = sphi 0, %s372
      %s387 = sphi 0, %s373
      %s391 = sphi 0, %s391
      %s393 = sphi 0, %s391
      %s394 = sphi 0, %s393
      %s408 = sphi 0, %s394
      %s412 = sphi 0, %s412
      %s414 = sphi 0, %s412
      %s415 = sphi 0, %s414
      %s429 = sphi 0, %s415
      %s433 = sphi 0, %s433
      %s435 = sphi 0, %s433
      %s436 = sphi 0, %s435
      %s450 = sphi 0, %s436
      %s454 = sphi 0, %s454
      %s456 = sphi 0, %s454
      %s457 = sphi 0, %s456
      %s471 = sphi 0, %s457
    $region4: #{six_layer_mlp.1} parent=1 // loop_header_branch
      %40 = sbr.rel (%p38) target = $region8
    $region5: #{six_layer_mlp.1} parent=1 // loop_body
      %s42 = ssub.s32 %s37, 1
      %s43 = ssub.s32 %s37, 2
      %s44 = sadd.s32 %s37, 1
      %s45 = ssub.s32 %s37, %s44
      %p46 = scmp.eq.s32.totalorder %s45, 0
      %s48 = sadd.s32 %s47, 1
      %s49 = scalar_select %p46, %s47, %s48
      %p52 = pneg %p46
      %p53 = scmp.eq.s32.totalorder %s37, 2
      %p54 = por %p52, %p53
      %p55 = scmp.ne.s32.totalorder %s47, %s50
      %p56 = scmp.eq.s32.totalorder %s37, 0
      %p57 = por %p55, %p56
      %p58 = scmp.ne.s32.totalorder %s47, %s50
      %p59 = scmp.eq.s32.totalorder %s42, 2
      %p60 = por %p58, %p59
      %p61 = scmp.ne.s32.totalorder %s50, %s51
      %p62 = scmp.eq.s32.totalorder %s42, 0
      %p63 = por %p61, %p62
      %p64 = scmp.ne.s32.totalorder %s50, %s51
      %p65 = scmp.eq.s32.totalorder %s43, 2
      %p66 = por %p64, %p65
      %p68 = scmp.ne.s32.totalorder %s51, %s67
      %p69 = scmp.eq.s32.totalorder %s43, 0
      %p70 = por %p68, %p69
      %s71 = ssub.s32 %s37, %s44
      %p72 = scmp.eq.s32.totalorder %s71, 0
      %s74 = sadd.s32 %s73, 1
      %s75 = scalar_select %p72, %s73, %s74
      %p78 = pneg %p72
      %p79 = scmp.eq.s32.totalorder %s37, 2
      %p80 = por %p78, %p79
      %p81 = scmp.ne.s32.totalorder %s73, %s76
      %p82 = scmp.eq.s32.totalorder %s37, 0
      %p83 = por %p81, %p82
      %p84 = scmp.ne.s32.totalorder %s73, %s76
      %p85 = scmp.eq.s32.totalorder %s42, 2
      %p86 = por %p84, %p85
      %p87 = scmp.ne.s32.totalorder %s76, %s77
      %p88 = scmp.eq.s32.totalorder %s42, 0
      %p89 = por %p87, %p88
      %p90 = scmp.ne.s32.totalorder %s76, %s77
      %p91 = scmp.eq.s32.totalorder %s43, 2
      %p92 = por %p90, %p91
      %p94 = scmp.ne.s32.totalorder %s77, %s93
      %p95 = scmp.eq.s32.totalorder %s43, 0
      %p96 = por %p94, %p95
      %s98 = sadd.s32 %s97, 1
      %p101 = scmp.eq.s32.totalorder %s37, 2
      %p102 = scmp.ne.s32.totalorder %s97, %s99
      %p103 = scmp.eq.s32.totalorder %s37, 0
      %p104 = por %p102, %p103
      %p105 = scmp.ne.s32.totalorder %s97, %s99
      %p106 = scmp.eq.s32.totalorder %s42, 2
      %p107 = por %p105, %p106
      %p108 = scmp.ne.s32.totalorder %s99, %s100
      %p109 = scmp.eq.s32.totalorder %s42, 0
      %p110 = por %p108, %p109
      %p111 = scmp.ne.s32.totalorder %s99, %s100
      %p112 = scmp.eq.s32.totalorder %s43, 2
      %p113 = por %p111, %p112
      %p115 = scmp.ne.s32.totalorder %s100, %s114
      %p116 = scmp.eq.s32.totalorder %s43, 0
      %p117 = por %p115, %p116
      %s119 = sadd.s32 %s118, 1
      %p122 = scmp.eq.s32.totalorder %s37, 2
      %p123 = scmp.ne.s32.totalorder %s118, %s120
      %p124 = scmp.eq.s32.totalorder %s37, 0
      %p125 = por %p123, %p124
      %p126 = scmp.ne.s32.totalorder %s118, %s120
      %p127 = scmp.eq.s32.totalorder %s42, 2
      %p128 = por %p126, %p127
      %p129 = scmp.ne.s32.totalorder %s120, %s121
      %p130 = scmp.eq.s32.totalorder %s42, 0
      %p131 = por %p129, %p130
      %p132 = scmp.ne.s32.totalorder %s120, %s121
      %p133 = scmp.eq.s32.totalorder %s43, 2
      %p134 = por %p132, %p133
      %p136 = scmp.ne.s32.totalorder %s121, %s135
      %p137 = scmp.eq.s32.totalorder %s43, 0
      %p138 = por %p136, %p137
      %s140 = sadd.s32 %s139, 1
      %p143 = scmp.eq.s32.totalorder %s37, 2
      %p144 = scmp.ne.s32.totalorder %s139, %s141
      %p145 = scmp.eq.s32.totalorder %s37, 0
      %p146 = por %p144, %p145
      %p147 = scmp.ne.s32.totalorder %s139, %s141
      %p148 = scmp.eq.s32.totalorder %s42, 2
      %p149 = por %p147, %p148
      %p150 = scmp.ne.s32.totalorder %s141, %s142
      %p151 = scmp.eq.s32.totalorder %s42, 0
      %p152 = por %p150, %p151
      %p153 = scmp.ne.s32.totalorder %s141, %s142
      %p154 = scmp.eq.s32.totalorder %s43, 2
      %p155 = por %p153, %p154
      %p157 = scmp.ne.s32.totalorder %s142, %s156
      %p158 = scmp.eq.s32.totalorder %s43, 0
      %p159 = por %p157, %p158
      %s161 = sadd.s32 %s160, 1
      %p164 = scmp.eq.s32.totalorder %s37, 2
      %p165 = scmp.ne.s32.totalorder %s160, %s162
      %p166 = scmp.eq.s32.totalorder %s37, 0
      %p167 = por %p165, %p166
      %p168 = scmp.ne.s32.totalorder %s160, %s162
      %p169 = scmp.eq.s32.totalorder %s42, 2
      %p170 = por %p168, %p169
      %p171 = scmp.ne.s32.totalorder %s162, %s163
      %p172 = scmp.eq.s32.totalorder %s42, 0
      %p173 = por %p171, %p172
      %p174 = scmp.ne.s32.totalorder %s162, %s163
      %p175 = scmp.eq.s32.totalorder %s43, 2
      %p176 = por %p174, %p175
      %p178 = scmp.ne.s32.totalorder %s163, %s177
      %p179 = scmp.eq.s32.totalorder %s43, 0
      %p180 = por %p178, %p179
      %s182 = sadd.s32 %s181, 1
      %p185 = scmp.eq.s32.totalorder %s37, 2
      %p186 = scmp.ne.s32.totalorder %s181, %s183
      %p187 = scmp.eq.s32.totalorder %s37, 0
      %p188 = por %p186, %p187
      %p189 = scmp.ne.s32.totalorder %s181, %s183
      %p190 = scmp.eq.s32.totalorder %s42, 2
      %p191 = por %p189, %p190
      %p192 = scmp.ne.s32.totalorder %s183, %s184
      %p193 = scmp.eq.s32.totalorder %s42, 0
      %p194 = por %p192, %p193
      %p195 = scmp.ne.s32.totalorder %s183, %s184
      %p196 = scmp.eq.s32.totalorder %s43, 2
      %p197 = por %p195, %p196
      %p199 = scmp.ne.s32.totalorder %s184, %s198
      %p200 = scmp.eq.s32.totalorder %s43, 0
      %p201 = por %p199, %p200
      %s203 = sadd.s32 %s202, 1
      %p206 = scmp.eq.s32.totalorder %s37, 2
      %p207 = scmp.ne.s32.totalorder %s202, %s204
      %p208 = scmp.eq.s32.totalorder %s37, 0
      %p209 = por %p207, %p208
      %p210 = scmp.ne.s32.totalorder %s202, %s204
      %p211 = scmp.eq.s32.totalorder %s42, 2
      %p212 = por %p210, %p211
      %p213 = scmp.ne.s32.totalorder %s204, %s205
      %p214 = scmp.eq.s32.totalorder %s42, 0
      %p215 = por %p213, %p214
      %p216 = scmp.ne.s32.totalorder %s204, %s205
      %p217 = scmp.eq.s32.totalorder %s43, 2
      %p218 = por %p216, %p217
      %p220 = scmp.ne.s32.totalorder %s205, %s219
      %p221 = scmp.eq.s32.totalorder %s43, 0
      %p222 = por %p220, %p221
      %s224 = sadd.s32 %s223, 1
      %p227 = scmp.eq.s32.totalorder %s37, 2
      %p228 = scmp.ne.s32.totalorder %s223, %s225
      %p229 = scmp.eq.s32.totalorder %s37, 0
      %p230 = por %p228, %p229
      %p231 = scmp.ne.s32.totalorder %s223, %s225
      %p232 = scmp.eq.s32.totalorder %s42, 2
      %p233 = por %p231, %p232
      %p234 = scmp.ne.s32.totalorder %s225, %s226
      %p235 = scmp.eq.s32.totalorder %s42, 0
      %p236 = por %p234, %p235
      %p237 = scmp.ne.s32.totalorder %s225, %s226
      %p238 = scmp.eq.s32.totalorder %s43, 2
      %p239 = por %p237, %p238
      %p241 = scmp.ne.s32.totalorder %s226, %s240
      %p242 = scmp.eq.s32.totalorder %s43, 0
      %p243 = por %p241, %p242
      %s245 = sadd.s32 %s244, 1
      %p248 = scmp.eq.s32.totalorder %s37, 2
      %p249 = scmp.ne.s32.totalorder %s244, %s246
      %p250 = scmp.eq.s32.totalorder %s37, 0
      %p251 = por %p249, %p250
      %p252 = scmp.ne.s32.totalorder %s244, %s246
      %p253 = scmp.eq.s32.totalorder %s42, 2
      %p254 = por %p252, %p253
      %p255 = scmp.ne.s32.totalorder %s246, %s247
      %p256 = scmp.eq.s32.totalorder %s42, 0
      %p257 = por %p255, %p256
      %p258 = scmp.ne.s32.totalorder %s246, %s247
      %p259 = scmp.eq.s32.totalorder %s43, 2
      %p260 = por %p258, %p259
      %p262 = scmp.ne.s32.totalorder %s247, %s261
      %p263 = scmp.eq.s32.totalorder %s43, 0
      %p264 = por %p262, %p263
      %s266 = sadd.s32 %s265, 1
      %p269 = scmp.eq.s32.totalorder %s37, 2
      %p270 = scmp.ne.s32.totalorder %s265, %s267
      %p271 = scmp.eq.s32.totalorder %s37, 0
      %p272 = por %p270, %p271
      %p273 = scmp.ne.s32.totalorder %s265, %s267
      %p274 = scmp.eq.s32.totalorder %s42, 2
      %p275 = por %p273, %p274
      %p276 = scmp.ne.s32.totalorder %s267, %s268
      %p277 = scmp.eq.s32.totalorder %s42, 0
      %p278 = por %p276, %p277
      %p279 = scmp.ne.s32.totalorder %s267, %s268
      %p280 = scmp.eq.s32.totalorder %s43, 2
      %p281 = por %p279, %p280
      %p283 = scmp.ne.s32.totalorder %s268, %s282
      %p284 = scmp.eq.s32.totalorder %s43, 0
      %p285 = por %p283, %p284
      %s287 = sadd.s32 %s286, 1
      %p290 = scmp.eq.s32.totalorder %s37, 2
      %p291 = scmp.ne.s32.totalorder %s286, %s288
      %p292 = scmp.eq.s32.totalorder %s37, 0
      %p293 = por %p291, %p292
      %p294 = scmp.ne.s32.totalorder %s286, %s288
      %p295 = scmp.eq.s32.totalorder %s42, 2
      %p296 = por %p294, %p295
      %p297 = scmp.ne.s32.totalorder %s288, %s289
      %p298 = scmp.eq.s32.totalorder %s42, 0
      %p299 = por %p297, %p298
      %p300 = scmp.ne.s32.totalorder %s288, %s289
      %p301 = scmp.eq.s32.totalorder %s43, 2
      %p302 = por %p300, %p301
      %p304 = scmp.ne.s32.totalorder %s289, %s303
      %p305 = scmp.eq.s32.totalorder %s43, 0
      %p306 = por %p304, %p305
      %s308 = sadd.s32 %s307, 1
      %p311 = scmp.eq.s32.totalorder %s37, 2
      %p312 = scmp.ne.s32.totalorder %s307, %s309
      %p313 = scmp.eq.s32.totalorder %s37, 0
      %p314 = por %p312, %p313
      %p315 = scmp.ne.s32.totalorder %s307, %s309
      %p316 = scmp.eq.s32.totalorder %s42, 2
      %p317 = por %p315, %p316
      %p318 = scmp.ne.s32.totalorder %s309, %s310
      %p319 = scmp.eq.s32.totalorder %s42, 0
      %p320 = por %p318, %p319
      %p321 = scmp.ne.s32.totalorder %s309, %s310
      %p322 = scmp.eq.s32.totalorder %s43, 2
      %p323 = por %p321, %p322
      %p325 = scmp.ne.s32.totalorder %s310, %s324
      %p326 = scmp.eq.s32.totalorder %s43, 0
      %p327 = por %p325, %p326
      %s329 = sadd.s32 %s328, 1
      %p332 = scmp.eq.s32.totalorder %s37, 2
      %p333 = scmp.ne.s32.totalorder %s328, %s330
      %p334 = scmp.eq.s32.totalorder %s37, 0
      %p335 = por %p333, %p334
      %p336 = scmp.ne.s32.totalorder %s328, %s330
      %p337 = scmp.eq.s32.totalorder %s42, 2
      %p338 = por %p336, %p337
      %p339 = scmp.ne.s32.totalorder %s330, %s331
      %p340 = scmp.eq.s32.totalorder %s42, 0
      %p341 = por %p339, %p340
      %p342 = scmp.ne.s32.totalorder %s330, %s331
      %p343 = scmp.eq.s32.totalorder %s43, 2
      %p344 = por %p342, %p343
      %p346 = scmp.ne.s32.totalorder %s331, %s345
      %p347 = scmp.eq.s32.totalorder %s43, 0
      %p348 = por %p346, %p347
      %s350 = sadd.s32 %s349, 1
      %p353 = scmp.eq.s32.totalorder %s37, 2
      %p354 = scmp.ne.s32.totalorder %s349, %s351
      %p355 = scmp.eq.s32.totalorder %s37, 0
      %p356 = por %p354, %p355
      %p357 = scmp.ne.s32.totalorder %s349, %s351
      %p358 = scmp.eq.s32.totalorder %s42, 2
      %p359 = por %p357, %p358
      %p360 = scmp.ne.s32.totalorder %s351, %s352
      %p361 = scmp.eq.s32.totalorder %s42, 0
      %p362 = por %p360, %p361
      %p363 = scmp.ne.s32.totalorder %s351, %s352
      %p364 = scmp.eq.s32.totalorder %s43, 2
      %p365 = por %p363, %p364
      %p367 = scmp.ne.s32.totalorder %s352, %s366
      %p368 = scmp.eq.s32.totalorder %s43, 0
      %p369 = por %p367, %p368
      %s371 = sadd.s32 %s370, 1
      %p374 = scmp.eq.s32.totalorder %s37, 2
      %p375 = scmp.ne.s32.totalorder %s370, %s372
      %p376 = scmp.eq.s32.totalorder %s37, 0
      %p377 = por %p375, %p376
      %p378 = scmp.ne.s32.totalorder %s370, %s372
      %p379 = scmp.eq.s32.totalorder %s42, 2
      %p380 = por %p378, %p379
      %p381 = scmp.ne.s32.totalorder %s372, %s373
      %p382 = scmp.eq.s32.totalorder %s42, 0
      %p383 = por %p381, %p382
      %p384 = scmp.ne.s32.totalorder %s372, %s373
      %p385 = scmp.eq.s32.totalorder %s43, 2
      %p386 = por %p384, %p385
      %p388 = scmp.ne.s32.totalorder %s373, %s387
      %p389 = scmp.eq.s32.totalorder %s43, 0
      %p390 = por %p388, %p389
      %s392 = sadd.s32 %s391, 1
      %p395 = scmp.eq.s32.totalorder %s37, 2
      %p396 = scmp.ne.s32.totalorder %s391, %s393
      %p397 = scmp.eq.s32.totalorder %s37, 0
      %p398 = por %p396, %p397
      %p399 = scmp.ne.s32.totalorder %s391, %s393
      %p400 = scmp.eq.s32.totalorder %s42, 2
      %p401 = por %p399, %p400
      %p402 = scmp.ne.s32.totalorder %s393, %s394
      %p403 = scmp.eq.s32.totalorder %s42, 0
      %p404 = por %p402, %p403
      %p405 = scmp.ne.s32.totalorder %s393, %s394
      %p406 = scmp.eq.s32.totalorder %s43, 2
      %p407 = por %p405, %p406
      %p409 = scmp.ne.s32.totalorder %s394, %s408
      %p410 = scmp.eq.s32.totalorder %s43, 0
      %p411 = por %p409, %p410
      %s413 = sadd.s32 %s412, 1
      %p416 = scmp.eq.s32.totalorder %s37, 2
      %p417 = scmp.ne.s32.totalorder %s412, %s414
      %p418 = scmp.eq.s32.totalorder %s37, 0
      %p419 = por %p417, %p418
      %p420 = scmp.ne.s32.totalorder %s412, %s414
      %p421 = scmp.eq.s32.totalorder %s42, 2
      %p422 = por %p420, %p421
      %p423 = scmp.ne.s32.totalorder %s414, %s415
      %p424 = scmp.eq.s32.totalorder %s42, 0
      %p425 = por %p423, %p424
      %p426 = scmp.ne.s32.totalorder %s414, %s415
      %p427 = scmp.eq.s32.totalorder %s43, 2
      %p428 = por %p426, %p427
      %p430 = scmp.ne.s32.totalorder %s415, %s429
      %p431 = scmp.eq.s32.totalorder %s43, 0
      %p432 = por %p430, %p431
      %s434 = sadd.s32 %s433, 1
      %p437 = scmp.eq.s32.totalorder %s37, 2
      %p438 = scmp.ne.s32.totalorder %s433, %s435
      %p439 = scmp.eq.s32.totalorder %s37, 0
      %p440 = por %p438, %p439
      %p441 = scmp.ne.s32.totalorder %s433, %s435
      %p442 = scmp.eq.s32.totalorder %s42, 2
      %p443 = por %p441, %p442
      %p444 = scmp.ne.s32.totalorder %s435, %s436
      %p445 = scmp.eq.s32.totalorder %s42, 0
      %p446 = por %p444, %p445
      %p447 = scmp.ne.s32.totalorder %s435, %s436
      %p448 = scmp.eq.s32.totalorder %s43, 2
      %p449 = por %p447, %p448
      %p451 = scmp.ne.s32.totalorder %s436, %s450
      %p452 = scmp.eq.s32.totalorder %s43, 0
      %p453 = por %p451, %p452
      %s455 = sadd.s32 %s454, 1
      %p458 = scmp.eq.s32.totalorder %s37, 2
      %p459 = scmp.ne.s32.totalorder %s454, %s456
      %p460 = scmp.eq.s32.totalorder %s37, 0
      %p461 = por %p459, %p460
      %p462 = scmp.ne.s32.totalorder %s454, %s456
      %p463 = scmp.eq.s32.totalorder %s42, 2
      %p464 = por %p462, %p463
      %p465 = scmp.ne.s32.totalorder %s456, %s457
      %p466 = scmp.eq.s32.totalorder %s42, 0
      %p467 = por %p465, %p466
      %p468 = scmp.ne.s32.totalorder %s456, %s457
      %p469 = scmp.eq.s32.totalorder %s43, 2
      %p470 = por %p468, %p469
      %p472 = scmp.ne.s32.totalorder %s457, %s471
      %p473 = scmp.eq.s32.totalorder %s43, 0
      %p474 = por %p472, %p473
      %p475 = scmp.le.s32.totalorder 1, %s37
      %p476 = scmp.lt.s32.totalorder %s37, 4
      %p477 = pnand %p475, %p476
      %p478 = pneg %p477
      // Predicated region
      $region9: #{six_layer_mlp.1} parent=5 // pred_check
        _
      $region10: #{six_layer_mlp.1} parent=5 // pred_check_branch
        %480 = sbr.rel (%p477) target = $region12
      $region11: #{six_layer_mlp.1} parent=5 // pred_region
        %s481 = ssub.s32 %s37, 1
        // Predicated region
        $region13: #{six_layer_mlp.1} parent=11 // pred_check
          %p482 = pneg %p110
        $region14: #{six_layer_mlp.1} parent=11 // pred_check_branch
          %484 = sbr.rel (%p482) target = $region16
        $region15: #{six_layer_mlp.1} parent=11 // pred_region
          %486 = vsyncadd [#allocation7], 0
          %s488 = sshll.u32 %s2, 4
          %s489 = int_to_ptr.hbm [resolvable:$true] %s488
          %s490 = sshll.u32 [#allocation6], 4
          %s491 = int_to_ptr.vmem [resolvable:$true] %s490
          %493 = dma.hbm_to_vmem [thread:$0]  %s489, 64, %s491, [#allocation7]
        $region16: #{six_layer_mlp.1} parent=11 // pred_fallthru
          _
        // Predicated region
        $region17: #{six_layer_mlp.1} parent=11 // pred_check
          %p494 = pneg %p131
        $region18: #{six_layer_mlp.1} parent=11 // pred_check_branch
          %496 = sbr.rel (%p494) target = $region20
        $region19: #{six_layer_mlp.1} parent=11 // pred_region
          %498 = vsyncadd [#allocation7], 0
          %s499 = sshll.u32 %s3, 4
          %s500 = int_to_ptr.hbm [resolvable:$true] %s499
          %s501 = sshll.u32 [#allocation8], 4
          %s502 = int_to_ptr.vmem [resolvable:$true] %s501
          %507 = dma.hbm_to_vmem [thread:$0]  %s500, 16384, %s502, [#allocation7], 256, 256, 16
        $region20: #{six_layer_mlp.1} parent=11 // pred_fallthru
          _
        // Predicated region
        $region21: #{six_layer_mlp.1} parent=11 // pred_check
          %p508 = pneg %p152
        $region22: #{six_layer_mlp.1} parent=11 // pred_check_branch
          %510 = sbr.rel (%p508) target = $region24
        $region23: #{six_layer_mlp.1} parent=11 // pred_region
          %512 = vsyncadd [#allocation10], 0
          %s514 = sshll.u32 %s4, 4
          %s515 = int_to_ptr.hbm [resolvable:$true] %s514
          %s516 = sshll.u32 [#allocation9], 4
          %s517 = int_to_ptr.vmem [resolvable:$true] %s516
          %519 = dma.hbm_to_vmem [thread:$0]  %s515, 64, %s517, [#allocation10]
        $region24: #{six_layer_mlp.1} parent=11 // pred_fallthru
          _
        // Predicated region
        $region25: #{six_layer_mlp.1} parent=11 // pred_check
          %p520 = pneg %p173
        $region26: #{six_layer_mlp.1} parent=11 // pred_check_branch
          %522 = sbr.rel (%p520) target = $region28
        $region27: #{six_layer_mlp.1} parent=11 // pred_region
          %524 = vsyncadd [#allocation10], 0
          %s525 = sshll.u32 %s5, 4
          %s526 = int_to_ptr.hbm [resolvable:$true] %s525
          %s527 = sshll.u32 [#allocation11], 4
          %s528 = int_to_ptr.vmem [resolvable:$true] %s527
          %533 = dma.hbm_to_vmem [thread:$0]  %s526, 8192, %s528, [#allocation10], 128, 128, 8
        $region28: #{six_layer_mlp.1} parent=11 // pred_fallthru
          _
        // Predicated region
        $region29: #{six_layer_mlp.1} parent=11 // pred_check
          %p534 = pneg %p194
        $region30: #{six_layer_mlp.1} parent=11 // pred_check_branch
          %536 = sbr.rel (%p534) target = $region32
        $region31: #{six_layer_mlp.1} parent=11 // pred_region
          %538 = vsyncadd [#allocation13], 0
          %s540 = sshll.u32 %s6, 4
          %s541 = int_to_ptr.hbm [resolvable:$true] %s540
          %s542 = sshll.u32 [#allocation12], 4
          %s543 = int_to_ptr.vmem [resolvable:$true] %s542
          %545 = dma.hbm_to_vmem [thread:$0]  %s541, 32, %s543, [#allocation13]
        $region32: #{six_layer_mlp.1} parent=11 // pred_fallthru
          _
        // Predicated region
        $region33: #{six_layer_mlp.1} parent=11 // pred_check
          %p546 = pneg %p215
        $region34: #{six_layer_mlp.1} parent=11 // pred_check_branch
          %548 = sbr.rel (%p546) target = $region36
        $region35: #{six_layer_mlp.1} parent=11 // pred_region
          %550 = vsyncadd [#allocation13], 0
          %s551 = sshll.u32 %s7, 4
          %s552 = int_to_ptr.hbm [resolvable:$true] %s551
          %s553 = sshll.u32 [#allocation14], 4
          %s554 = int_to_ptr.vmem [resolvable:$true] %s553
          %559 = dma.hbm_to_vmem [thread:$0]  %s552, 4096, %s554, [#allocation13], 128, 128, 8
        $region36: #{six_layer_mlp.1} parent=11 // pred_fallthru
          _
        // Predicated region
        $region37: #{six_layer_mlp.1} parent=11 // pred_check
          %p560 = pneg %p236
        $region38: #{six_layer_mlp.1} parent=11 // pred_check_branch
          %562 = sbr.rel (%p560) target = $region40
        $region39: #{six_layer_mlp.1} parent=11 // pred_region
          %564 = vsyncadd [#allocation16], 0
          %s566 = sshll.u32 %s8, 4
          %s567 = int_to_ptr.hbm [resolvable:$true] %s566
          %s568 = sshll.u32 [#allocation15], 4
          %s569 = int_to_ptr.vmem [resolvable:$true] %s568
          %571 = dma.hbm_to_vmem [thread:$0]  %s567, 32, %s569, [#allocation16]
        $region40: #{six_layer_mlp.1} parent=11 // pred_fallthru
          _
        // Predicated region
        $region41: #{six_layer_mlp.1} parent=11 // pred_check
          %p572 = pneg %p257
        $region42: #{six_layer_mlp.1} parent=11 // pred_check_branch
          %574 = sbr.rel (%p572) target = $region44
        $region43: #{six_layer_mlp.1} parent=11 // pred_region
          %576 = vsyncadd [#allocation16], 0
          %s577 = sshll.u32 %s9, 4
          %s578 = int_to_ptr.hbm [resolvable:$true] %s577
          %s579 = sshll.u32 [#allocation17], 4
          %s580 = int_to_ptr.vmem [resolvable:$true] %s579
          %585 = dma.hbm_to_vmem [thread:$0]  %s578, 2048, %s580, [#allocation16], 64, 64, 4
        $region44: #{six_layer_mlp.1} parent=11 // pred_fallthru
          _
        // Predicated region
        $region45: #{six_layer_mlp.1} parent=11 // pred_check
          %p586 = pneg %p278
        $region46: #{six_layer_mlp.1} parent=11 // pred_check_branch
          %588 = sbr.rel (%p586) target = $region48
        $region47: #{six_layer_mlp.1} parent=11 // pred_region
          %590 = vsyncadd [#allocation19], 0
          %s592 = sshll.u32 %s10, 4
          %s593 = int_to_ptr.hbm [resolvable:$true] %s592
          %s594 = sshll.u32 [#allocation18], 4
          %s595 = int_to_ptr.vmem [resolvable:$true] %s594
          %597 = dma.hbm_to_vmem [thread:$0]  %s593, 16, %s595, [#allocation19]
        $region48: #{six_layer_mlp.1} parent=11 // pred_fallthru
          _
        // Predicated region
        $region49: #{six_layer_mlp.1} parent=11 // pred_check
          %p598 = pneg %p299
        $region50: #{six_layer_mlp.1} parent=11 // pred_check_branch
          %600 = sbr.rel (%p598) target = $region52
        $region51: #{six_layer_mlp.1} parent=11 // pred_region
          _
        $region52: #{six_layer_mlp.1} parent=11 // pred_fallthru
          _
        // Predicated region
        $region53: #{six_layer_mlp.1} parent=11 // pred_check
          %p601 = pneg %p320
        $region54: #{six_layer_mlp.1} parent=11 // pred_check_branch
          %603 = sbr.rel (%p601) target = $region56
        $region55: #{six_layer_mlp.1} parent=11 // pred_region
          %605 = vsyncadd [#allocation19], 0
          %s607 = sshll.u32 %s12, 4
          %s608 = int_to_ptr.hbm [resolvable:$true] %s607
          %s609 = sshll.u32 [#allocation20], 4
          %s610 = int_to_ptr.vmem [resolvable:$true] %s609
          %612 = dma.hbm_to_vmem [thread:$0]  %s608, 16, %s610, [#allocation19]
        $region56: #{six_layer_mlp.1} parent=11 // pred_fallthru
          _
        // Predicated region
        $region57: #{six_layer_mlp.1} parent=11 // pred_check
          %p613 = pneg %p341
        $region58: #{six_layer_mlp.1} parent=11 // pred_check_branch
          %615 = sbr.rel (%p613) target = $region60
        $region59: #{six_layer_mlp.1} parent=11 // pred_region
          %617 = vsyncadd [#allocation22], 0
          %s619 = sshll.u32 %s13, 4
          %s620 = int_to_ptr.hbm [resolvable:$true] %s619
          %s621 = sshll.u32 [#allocation21], 4
          %s622 = int_to_ptr.vmem [resolvable:$true] %s621
          %624 = dma.hbm_to_vmem [thread:$0]  %s620, 64, %s622, [#allocation22]
        $region60: #{six_layer_mlp.1} parent=11 // pred_fallthru
          _
        // Predicated region
        $region61: #{six_layer_mlp.1} parent=11 // pred_check
          %p625 = pneg %p362
        $region62: #{six_layer_mlp.1} parent=11 // pred_check_branch
          %627 = sbr.rel (%p625) target = $region64
        $region63: #{six_layer_mlp.1} parent=11 // pred_region
          %629 = vsyncadd [#allocation22], 0
          %s631 = sshll.u32 %s14, 4
          %s632 = int_to_ptr.hbm [resolvable:$true] %s631
          %s633 = sshll.u32 [#allocation23], 4
          %s634 = int_to_ptr.vmem [resolvable:$true] %s633
          %636 = dma.hbm_to_vmem [thread:$0]  %s632, 64, %s634, [#allocation22]
        $region64: #{six_layer_mlp.1} parent=11 // pred_fallthru
          _
        // Predicated region
        $region65: #{six_layer_mlp.1} parent=11 // pred_check
          %p637 = pneg %p383
        $region66: #{six_layer_mlp.1} parent=11 // pred_check_branch
          %639 = sbr.rel (%p637) target = $region68
        $region67: #{six_layer_mlp.1} parent=11 // pred_region
          %641 = vsyncadd [#allocation25], 0
          %s643 = sshll.u32 %s15, 4
          %s644 = int_to_ptr.hbm [resolvable:$true] %s643
          %s645 = sshll.u32 [#allocation24], 4
          %s646 = int_to_ptr.vmem [resolvable:$true] %s645
          %648 = dma.hbm_to_vmem [thread:$0]  %s644, 32, %s646, [#allocation25]
        $region68: #{six_layer_mlp.1} parent=11 // pred_fallthru
          _
        // Predicated region
        $region69: #{six_layer_mlp.1} parent=11 // pred_check
          %p649 = pneg %p404
        $region70: #{six_layer_mlp.1} parent=11 // pred_check_branch
          %651 = sbr.rel (%p649) target = $region72
        $region71: #{six_layer_mlp.1} parent=11 // pred_region
          %653 = vsyncadd [#allocation25], 0
          %s655 = sshll.u32 %s16, 4
          %s656 = int_to_ptr.hbm [resolvable:$true] %s655
          %s657 = sshll.u32 [#allocation26], 4
          %s658 = int_to_ptr.vmem [resolvable:$true] %s657
          %660 = dma.hbm_to_vmem [thread:$0]  %s656, 32, %s658, [#allocation25]
        $region72: #{six_layer_mlp.1} parent=11 // pred_fallthru
          _
        // Predicated region
        $region73: #{six_layer_mlp.1} parent=11 // pred_check
          %p661 = pneg %p425
        $region74: #{six_layer_mlp.1} parent=11 // pred_check_branch
          %663 = sbr.rel (%p661) target = $region76
        $region75: #{six_layer_mlp.1} parent=11 // pred_region
          %665 = vsyncadd [#allocation28], 0
          %s667 = sshll.u32 %s17, 4
          %s668 = int_to_ptr.hbm [resolvable:$true] %s667
          %s669 = sshll.u32 [#allocation27], 4
          %s670 = int_to_ptr.vmem [resolvable:$true] %s669
          %672 = dma.hbm_to_vmem [thread:$0]  %s668, 16, %s670, [#allocation28]
        $region76: #{six_layer_mlp.1} parent=11 // pred_fallthru
          _
        // Predicated region
        $region77: #{six_layer_mlp.1} parent=11 // pred_check
          %p673 = pneg %p446
        $region78: #{six_layer_mlp.1} parent=11 // pred_check_branch
          %675 = sbr.rel (%p673) target = $region80
        $region79: #{six_layer_mlp.1} parent=11 // pred_region
          %677 = vsyncadd [#allocation28], 0
          %s679 = sshll.u32 %s18, 4
          %s680 = int_to_ptr.hbm [resolvable:$true] %s679
          %s681 = sshll.u32 [#allocation29], 4
          %s682 = int_to_ptr.vmem [resolvable:$true] %s681
          %684 = dma.hbm_to_vmem [thread:$0]  %s680, 16, %s682, [#allocation28]
        $region80: #{six_layer_mlp.1} parent=11 // pred_fallthru
          _
      $region12: #{six_layer_mlp.1} parent=5 // pred_fallthru
        _
      %p685 = scmp.lt.s32.totalorder %s37, 3
      // Predicated region
      $region81: #{six_layer_mlp.1} parent=5 // pred_check
        %p686 = pneg %p685
      $region82: #{six_layer_mlp.1} parent=5 // pred_check_branch
        %688 = sbr.rel (%p686) target = $region84
      $region83: #{six_layer_mlp.1} parent=5 // pred_region
        // Predicated region
        $region85: #{six_layer_mlp.1} parent=83 // pred_check
          %p689 = pneg %p57
        $region86: #{six_layer_mlp.1} parent=83 // pred_check_branch
          %691 = sbr.rel (%p689) target = $region88
        $region87: #{six_layer_mlp.1} parent=83 // pred_region
          %s692 = smul.u32 8, %s37
          %p693 = scmp.lt.s32.totalorder %s692, 23
          %s694 = scalar_select %p693, %s692, 23
          %s695 = smul.addr %s694, 4
          %s696 = scalar_lea.vmem %s0, %s695
          %s697 = smul.u32 8, %s37
        $region88: #{six_layer_mlp.1} parent=83 // pred_fallthru
          _
        // Predicated region
        $region89: #{six_layer_mlp.1} parent=83 // pred_check
          %p698 = pneg %p83
        $region90: #{six_layer_mlp.1} parent=83 // pred_check_branch
          %700 = sbr.rel (%p698) target = $region92
        $region91: #{six_layer_mlp.1} parent=83 // pred_region
          %s701 = sand.u32 %s73, 1
          %s702 = scalar_lea.sflag [#allocation4], %s701
          %s703 = sand.u32 %s73, 1
          %s704 = smul.addr %s703, 2048
          %s705 = scalar_lea.vmem [#allocation3], %s704
          %s706 = smul.u32 128, %s37
          %708 = vsyncadd %s702, 0
          %s709 = smul.addr %s706, 4
          %s710 = smul.addr %s709, 4
          %s711 = scalar_lea.hbm %s1, %s710
          %s712 = sshll.u32 %s711, 4
          %s713 = int_to_ptr.hbm [resolvable:$true] %s712
          %s714 = sshll.u32 %s705, 4
          %s715 = int_to_ptr.vmem [resolvable:$true] %s714
          %720 = dma.hbm_to_vmem [thread:$0]  %s713, 32768, %s715, %s702, 256, 256, 16
        $region92: #{six_layer_mlp.1} parent=83 // pred_fallthru
          _
      $region84: #{six_layer_mlp.1} parent=5 // pred_fallthru
        _
      %p721 = scmp.le.s32.totalorder 1, %s37
      %p722 = scmp.lt.s32.totalorder %s37, 4
      %p723 = pnand %p721, %p722
      %p724 = pneg %p723
      // Predicated region
      $region93: #{six_layer_mlp.1} parent=5 // pred_check
        _
      $region94: #{six_layer_mlp.1} parent=5 // pred_check_branch
        %726 = sbr.rel (%p723) target = $region96
      $region95: #{six_layer_mlp.1} parent=5 // pred_region
        %s727 = ssub.s32 %s37, 1
        %s728 = sand.u32 %s76, 1
        %s729 = scalar_lea.sflag [#allocation4], %s728
        %s730 = sand.u32 %s76, 1
        %s731 = smul.addr %s730, 2048
        %s732 = scalar_lea.vmem [#allocation3], %s731
        // Predicated region
        $region97: #{six_layer_mlp.1} parent=95 // pred_check
          %p733 = pneg %p89
        $region98: #{six_layer_mlp.1} parent=95 // pred_check_branch
          %735 = sbr.rel (%p733) target = $region100
        $region99: #{six_layer_mlp.1} parent=95 // pred_region
          %737 = dma.done %s729, 32768
        $region100: #{six_layer_mlp.1} parent=95 // pred_fallthru
          _
        // Predicated region
        $region101: #{six_layer_mlp.1} parent=95 // pred_check
          %p738 = pneg %p110
        $region102: #{six_layer_mlp.1} parent=95 // pred_check_branch
          %740 = sbr.rel (%p738) target = $region104
        $region103: #{six_layer_mlp.1} parent=95 // pred_region
          %742 = dma.done [#allocation7], 64
        $region104: #{six_layer_mlp.1} parent=95 // pred_fallthru
          _
        // Predicated region
        $region105: #{six_layer_mlp.1} parent=95 // pred_check
          %p743 = pneg %p131
        $region106: #{six_layer_mlp.1} parent=95 // pred_check_branch
          %745 = sbr.rel (%p743) target = $region108
        $region107: #{six_layer_mlp.1} parent=95 // pred_region
          %747 = dma.done [#allocation7], 16384
        $region108: #{six_layer_mlp.1} parent=95 // pred_fallthru
          _
        // Predicated region
        $region109: #{six_layer_mlp.1} parent=95 // pred_check
          %p748 = pneg %p152
        $region110: #{six_layer_mlp.1} parent=95 // pred_check_branch
          %750 = sbr.rel (%p748) target = $region112
        $region111: #{six_layer_mlp.1} parent=95 // pred_region
          %752 = dma.done [#allocation10], 64
        $region112: #{six_layer_mlp.1} parent=95 // pred_fallthru
          _
        // Predicated region
        $region113: #{six_layer_mlp.1} parent=95 // pred_check
          %p753 = pneg %p173
        $region114: #{six_layer_mlp.1} parent=95 // pred_check_branch
          %755 = sbr.rel (%p753) target = $region116
        $region115: #{six_layer_mlp.1} parent=95 // pred_region
          %757 = dma.done [#allocation10], 8192
        $region116: #{six_layer_mlp.1} parent=95 // pred_fallthru
          _
        // Predicated region
        $region117: #{six_layer_mlp.1} parent=95 // pred_check
          %p758 = pneg %p194
        $region118: #{six_layer_mlp.1} parent=95 // pred_check_branch
          %760 = sbr.rel (%p758) target = $region120
        $region119: #{six_layer_mlp.1} parent=95 // pred_region
          %762 = dma.done [#allocation13], 32
        $region120: #{six_layer_mlp.1} parent=95 // pred_fallthru
          _
        // Predicated region
        $region121: #{six_layer_mlp.1} parent=95 // pred_check
          %p763 = pneg %p215
        $region122: #{six_layer_mlp.1} parent=95 // pred_check_branch
          %765 = sbr.rel (%p763) target = $region124
        $region123: #{six_layer_mlp.1} parent=95 // pred_region
          %767 = dma.done [#allocation13], 4096
        $region124: #{six_layer_mlp.1} parent=95 // pred_fallthru
          _
        // Predicated region
        $region125: #{six_layer_mlp.1} parent=95 // pred_check
          %p768 = pneg %p236
        $region126: #{six_layer_mlp.1} parent=95 // pred_check_branch
          %770 = sbr.rel (%p768) target = $region128
        $region127: #{six_layer_mlp.1} parent=95 // pred_region
          %772 = dma.done [#allocation16], 32
        $region128: #{six_layer_mlp.1} parent=95 // pred_fallthru
          _
        // Predicated region
        $region129: #{six_layer_mlp.1} parent=95 // pred_check
          %p773 = pneg %p257
        $region130: #{six_layer_mlp.1} parent=95 // pred_check_branch
          %775 = sbr.rel (%p773) target = $region132
        $region131: #{six_layer_mlp.1} parent=95 // pred_region
          %777 = dma.done [#allocation16], 2048
        $region132: #{six_layer_mlp.1} parent=95 // pred_fallthru
          _
        // Predicated region
        $region133: #{six_layer_mlp.1} parent=95 // pred_check
          %p778 = pneg %p278
        $region134: #{six_layer_mlp.1} parent=95 // pred_check_branch
          %780 = sbr.rel (%p778) target = $region136
        $region135: #{six_layer_mlp.1} parent=95 // pred_region
          %782 = dma.done [#allocation19], 16
        $region136: #{six_layer_mlp.1} parent=95 // pred_fallthru
          _
        // Predicated region
        $region137: #{six_layer_mlp.1} parent=95 // pred_check
          %p783 = pneg %p320
        $region138: #{six_layer_mlp.1} parent=95 // pred_check_branch
          %785 = sbr.rel (%p783) target = $region140
        $region139: #{six_layer_mlp.1} parent=95 // pred_region
          %787 = dma.done [#allocation19], 16
        $region140: #{six_layer_mlp.1} parent=95 // pred_fallthru
          _
        // Predicated region
        $region141: #{six_layer_mlp.1} parent=95 // pred_check
          %p788 = pneg %p341
        $region142: #{six_layer_mlp.1} parent=95 // pred_check_branch
          %790 = sbr.rel (%p788) target = $region144
        $region143: #{six_layer_mlp.1} parent=95 // pred_region
          %792 = dma.done [#allocation22], 64
        $region144: #{six_layer_mlp.1} parent=95 // pred_fallthru
          _
        // Predicated region
        $region145: #{six_layer_mlp.1} parent=95 // pred_check
          %p793 = pneg %p362
        $region146: #{six_layer_mlp.1} parent=95 // pred_check_branch
          %795 = sbr.rel (%p793) target = $region148
        $region147: #{six_layer_mlp.1} parent=95 // pred_region
          %797 = dma.done [#allocation22], 64
        $region148: #{six_layer_mlp.1} parent=95 // pred_fallthru
          _
        // Predicated region
        $region149: #{six_layer_mlp.1} parent=95 // pred_check
          %p798 = pneg %p383
        $region150: #{six_layer_mlp.1} parent=95 // pred_check_branch
          %800 = sbr.rel (%p798) target = $region152
        $region151: #{six_layer_mlp.1} parent=95 // pred_region
          %802 = dma.done [#allocation25], 32
        $region152: #{six_layer_mlp.1} parent=95 // pred_fallthru
          _
        // Predicated region
        $region153: #{six_layer_mlp.1} parent=95 // pred_check
          %p803 = pneg %p404
        $region154: #{six_layer_mlp.1} parent=95 // pred_check_branch
          %805 = sbr.rel (%p803) target = $region156
        $region155: #{six_layer_mlp.1} parent=95 // pred_region
          %807 = dma.done [#allocation25], 32
        $region156: #{six_layer_mlp.1} parent=95 // pred_fallthru
          _
        // Predicated region
        $region157: #{six_layer_mlp.1} parent=95 // pred_check
          %p808 = pneg %p425
        $region158: #{six_layer_mlp.1} parent=95 // pred_check_branch
          %810 = sbr.rel (%p808) target = $region160
        $region159: #{six_layer_mlp.1} parent=95 // pred_region
          %812 = dma.done [#allocation28], 16
        $region160: #{six_layer_mlp.1} parent=95 // pred_fallthru
          _
        // Predicated region
        $region161: #{six_layer_mlp.1} parent=95 // pred_check
          %p813 = pneg %p446
        $region162: #{six_layer_mlp.1} parent=95 // pred_check_branch
          %815 = sbr.rel (%p813) target = $region164
        $region163: #{six_layer_mlp.1} parent=95 // pred_region
          %817 = dma.done [#allocation28], 16
        $region164: #{six_layer_mlp.1} parent=95 // pred_fallthru
          _
        %s818 = smul.u32 8, %s42
        %p819 = scmp.lt.s32.totalorder %s818, 23
        %s820 = scalar_select %p819, %s818, 23
        %s821 = smul.addr %s820, 4
        %s822 = scalar_lea.vmem %s0, %s821
        %p823 = pneg %p63
        %p824 = pneg %p60
        %s825 = sand.u32 %s76, 1
        %s826 = scalar_lea.sflag [#allocation4], %s825
        %s827 = sand.u32 %s76, 1
        %s828 = smul.addr %s827, 2048
        %s829 = scalar_lea.vmem [#allocation3], %s828
        %p830 = pneg %p89
        %p831 = pneg %p86
        %p832 = pneg %p110
        %p833 = pneg %p107
        %p834 = pneg %p131
        %p835 = pneg %p128
        %p836 = pneg %p152
        %p837 = pneg %p149
        %p838 = pneg %p173
        %p839 = pneg %p170
        %p840 = pneg %p194
        %p841 = pneg %p191
        %p842 = pneg %p215
        %p843 = pneg %p212
        %p844 = pneg %p236
        %p845 = pneg %p233
        %p846 = pneg %p257
        %p847 = pneg %p254
        %p848 = pneg %p278
        %p849 = pneg %p275
        %p850 = pneg %p299
        %p851 = pneg %p296
        %p852 = pneg %p320
        %p853 = pneg %p317
        %p854 = pneg %p341
        %p855 = pneg %p338
        %p856 = pneg %p362
        %p857 = pneg %p359
        %p858 = pneg %p383
        %p859 = pneg %p380
        %p860 = pneg %p404
        %p861 = pneg %p401
        %p862 = pneg %p425
        %p863 = pneg %p422
        %p864 = pneg %p446
        %p865 = pneg %p443
        %p866 = pneg %p467
        %p867 = pneg %p464
        %s868 = smul.u32 8, %s42
        %p869 = scmp.lt.s32.totalorder %s868, 23
        %s870 = scalar_select %p869, %s868, 23
        %s871 = smul.addr %s870, 4
        %s872 = scalar_lea.vmem %s0, %s871
        %s873 = smul.u32 8, %s42
        %s874 = smul.u32 128, %s42
        %p875 = scmp.eq.s32.totalorder %s42, 0
        // Predicated region
        $region165: #{six_layer_mlp.1} parent=95 // pred_check
          %p876 = pneg %p875
        $region166: #{six_layer_mlp.1} parent=95 // pred_check_branch
          %878 = sbr.rel (%p876) target = $region168
        $region167: #{six_layer_mlp.1} parent=95 // pred_region
          %879 = vst [vmem:[#allocation2] sm:$0xff] 0.0
          %880 = vst [vmem:[#allocation2 + $0x8] sm:$0xff] 0.0
          %881 = vst [vmem:[#allocation2 + $0x10] sm:$0xff] 0.0
          %882 = vst [vmem:[#allocation2 + $0x18] sm:$0xff] 0.0
        $region168: #{six_layer_mlp.1} parent=95 // pred_fallthru
          _
        %v883 = vld [vmem:[#allocation2] sm:$0xff]
        %v884 = vld [vmem:[#allocation2 + $0x8] sm:$0xff]
        %v885 = vld [vmem:[#allocation2 + $0x10] sm:$0xff]
        %v886 = vld [vmem:[#allocation2 + $0x18] sm:$0xff]
        %v887 = vld [vmem:[%s872] sm:$0xff]
        %v888 = vld [vmem:[%s872 + $0x8] sm:$0xff]
        %v889 = vld [vmem:[%s872 + $0x10] sm:$0xff]
        %v890 = vld [vmem:[%s872 + $0x18] sm:$0xff]
        %v891 = vld [vmem:[%s732] sm:$0xff]
        %v892 = vld [vmem:[%s732 + $0x8] sm:$0xff]
        %v893 = vld [vmem:[%s732 + $0x10] sm:$0xff]
        %v894 = vld [vmem:[%s732 + $0x18] sm:$0xff]
        %v895 = vld [vmem:[%s732 + $0x20] sm:$0xff]
        %v896 = vld [vmem:[%s732 + $0x28] sm:$0xff]
        %v897 = vld [vmem:[%s732 + $0x30] sm:$0xff]
        %v898 = vld [vmem:[%s732 + $0x38] sm:$0xff]
        %v899 = vld [vmem:[%s732 + $0x40] sm:$0xff]
        %v900 = vld [vmem:[%s732 + $0x48] sm:$0xff]
        %v901 = vld [vmem:[%s732 + $0x50] sm:$0xff]
        %v902 = vld [vmem:[%s732 + $0x58] sm:$0xff]
        %v903 = vld [vmem:[%s732 + $0x60] sm:$0xff]
        %v904 = vld [vmem:[%s732 + $0x68] sm:$0xff]
        %v905 = vld [vmem:[%s732 + $0x70] sm:$0xff]
        %v906 = vld [vmem:[%s732 + $0x78] sm:$0xff]
        %v907 = vld [vmem:[%s732 + $0x80] sm:$0xff]
        %v908 = vld [vmem:[%s732 + $0x88] sm:$0xff]
        %v909 = vld [vmem:[%s732 + $0x90] sm:$0xff]
        %v910 = vld [vmem:[%s732 + $0x98] sm:$0xff]
        %v911 = vld [vmem:[%s732 + $0xa0] sm:$0xff]
        %v912 = vld [vmem:[%s732 + $0xa8] sm:$0xff]
        %v913 = vld [vmem:[%s732 + $0xb0] sm:$0xff]
        %v914 = vld [vmem:[%s732 + $0xb8] sm:$0xff]
        %v915 = vld [vmem:[%s732 + $0xc0] sm:$0xff]
        %v916 = vld [vmem:[%s732 + $0xc8] sm:$0xff]
        %v917 = vld [vmem:[%s732 + $0xd0] sm:$0xff]
        %v918 = vld [vmem:[%s732 + $0xd8] sm:$0xff]
        %v919 = vld [vmem:[%s732 + $0xe0] sm:$0xff]
        %v920 = vld [vmem:[%s732 + $0xe8] sm:$0xff]
        %v921 = vld [vmem:[%s732 + $0xf0] sm:$0xff]
        %v922 = vld [vmem:[%s732 + $0xf8] sm:$0xff]
        %v923 = vld [vmem:[%s732 + $0x100] sm:$0xff]
        %v924 = vld [vmem:[%s732 + $0x108] sm:$0xff]
        %v925 = vld [vmem:[%s732 + $0x110] sm:$0xff]
        %v926 = vld [vmem:[%s732 + $0x118] sm:$0xff]
        %v927 = vld [vmem:[%s732 + $0x120] sm:$0xff]
        %v928 = vld [vmem:[%s732 + $0x128] sm:$0xff]
        %v929 = vld [vmem:[%s732 + $0x130] sm:$0xff]
        %v930 = vld [vmem:[%s732 + $0x138] sm:$0xff]
        %v931 = vld [vmem:[%s732 + $0x140] sm:$0xff]
        %v932 = vld [vmem:[%s732 + $0x148] sm:$0xff]
        %v933 = vld [vmem:[%s732 + $0x150] sm:$0xff]
        %v934 = vld [vmem:[%s732 + $0x158] sm:$0xff]
        %v935 = vld [vmem:[%s732 + $0x160] sm:$0xff]
        %v936 = vld [vmem:[%s732 + $0x168] sm:$0xff]
        %v937 = vld [vmem:[%s732 + $0x170] sm:$0xff]
        %v938 = vld [vmem:[%s732 + $0x178] sm:$0xff]
        %v939 = vld [vmem:[%s732 + $0x180] sm:$0xff]
        %v940 = vld [vmem:[%s732 + $0x188] sm:$0xff]
        %v941 = vld [vmem:[%s732 + $0x190] sm:$0xff]
        %v942 = vld [vmem:[%s732 + $0x198] sm:$0xff]
        %v943 = vld [vmem:[%s732 + $0x1a0] sm:$0xff]
        %v944 = vld [vmem:[%s732 + $0x1a8] sm:$0xff]
        %v945 = vld [vmem:[%s732 + $0x1b0] sm:$0xff]
        %v946 = vld [vmem:[%s732 + $0x1b8] sm:$0xff]
        %v947 = vld [vmem:[%s732 + $0x1c0] sm:$0xff]
        %v948 = vld [vmem:[%s732 + $0x1c8] sm:$0xff]
        %v949 = vld [vmem:[%s732 + $0x1d0] sm:$0xff]
        %v950 = vld [vmem:[%s732 + $0x1d8] sm:$0xff]
        %v951 = vld [vmem:[%s732 + $0x1e0] sm:$0xff]
        %v952 = vld [vmem:[%s732 + $0x1e8] sm:$0xff]
        %v953 = vld [vmem:[%s732 + $0x1f0] sm:$0xff]
        %v954 = vld [vmem:[%s732 + $0x1f8] sm:$0xff]
        %v955 = vld [vmem:[%s732 + $0x200] sm:$0xff]
        %v956 = vld [vmem:[%s732 + $0x208] sm:$0xff]
        %v957 = vld [vmem:[%s732 + $0x210] sm:$0xff]
        %v958 = vld [vmem:[%s732 + $0x218] sm:$0xff]
        %v959 = vld [vmem:[%s732 + $0x220] sm:$0xff]
        %v960 = vld [vmem:[%s732 + $0x228] sm:$0xff]
        %v961 = vld [vmem:[%s732 + $0x230] sm:$0xff]
        %v962 = vld [vmem:[%s732 + $0x238] sm:$0xff]
        %v963 = vld [vmem:[%s732 + $0x240] sm:$0xff]
        %v964 = vld [vmem:[%s732 + $0x248] sm:$0xff]
        %v965 = vld [vmem:[%s732 + $0x250] sm:$0xff]
        %v966 = vld [vmem:[%s732 + $0x258] sm:$0xff]
        %v967 = vld [vmem:[%s732 + $0x260] sm:$0xff]
        %v968 = vld [vmem:[%s732 + $0x268] sm:$0xff]
        %v969 = vld [vmem:[%s732 + $0x270] sm:$0xff]
        %v970 = vld [vmem:[%s732 + $0x278] sm:$0xff]
        %v971 = vld [vmem:[%s732 + $0x280] sm:$0xff]
        %v972 = vld [vmem:[%s732 + $0x288] sm:$0xff]
        %v973 = vld [vmem:[%s732 + $0x290] sm:$0xff]
        %v974 = vld [vmem:[%s732 + $0x298] sm:$0xff]
        %v975 = vld [vmem:[%s732 + $0x2a0] sm:$0xff]
        %v976 = vld [vmem:[%s732 + $0x2a8] sm:$0xff]
        %v977 = vld [vmem:[%s732 + $0x2b0] sm:$0xff]
        %v978 = vld [vmem:[%s732 + $0x2b8] sm:$0xff]
        %v979 = vld [vmem:[%s732 + $0x2c0] sm:$0xff]
        %v980 = vld [vmem:[%s732 + $0x2c8] sm:$0xff]
        %v981 = vld [vmem:[%s732 + $0x2d0] sm:$0xff]
        %v982 = vld [vmem:[%s732 + $0x2d8] sm:$0xff]
        %v983 = vld [vmem:[%s732 + $0x2e0] sm:$0xff]
        %v984 = vld [vmem:[%s732 + $0x2e8] sm:$0xff]
        %v985 = vld [vmem:[%s732 + $0x2f0] sm:$0xff]
        %v986 = vld [vmem:[%s732 + $0x2f8] sm:$0xff]
        %v987 = vld [vmem:[%s732 + $0x300] sm:$0xff]
        %v988 = vld [vmem:[%s732 + $0x308] sm:$0xff]
        %v989 = vld [vmem:[%s732 + $0x310] sm:$0xff]
        %v990 = vld [vmem:[%s732 + $0x318] sm:$0xff]
        %v991 = vld [vmem:[%s732 + $0x320] sm:$0xff]
        %v992 = vld [vmem:[%s732 + $0x328] sm:$0xff]
        %v993 = vld [vmem:[%s732 + $0x330] sm:$0xff]
        %v994 = vld [vmem:[%s732 + $0x338] sm:$0xff]
        %v995 = vld [vmem:[%s732 + $0x340] sm:$0xff]
        %v996 = vld [vmem:[%s732 + $0x348] sm:$0xff]
        %v997 = vld [vmem:[%s732 + $0x350] sm:$0xff]
        %v998 = vld [vmem:[%s732 + $0x358] sm:$0xff]
        %v999 = vld [vmem:[%s732 + $0x360] sm:$0xff]
        %v1000 = vld [vmem:[%s732 + $0x368] sm:$0xff]
        %v1001 = vld [vmem:[%s732 + $0x370] sm:$0xff]
        %v1002 = vld [vmem:[%s732 + $0x378] sm:$0xff]
        %v1003 = vld [vmem:[%s732 + $0x380] sm:$0xff]
        %v1004 = vld [vmem:[%s732 + $0x388] sm:$0xff]
        %v1005 = vld [vmem:[%s732 + $0x390] sm:$0xff]
        %v1006 = vld [vmem:[%s732 + $0x398] sm:$0xff]
        %v1007 = vld [vmem:[%s732 + $0x3a0] sm:$0xff]
        %v1008 = vld [vmem:[%s732 + $0x3a8] sm:$0xff]
        %v1009 = vld [vmem:[%s732 + $0x3b0] sm:$0xff]
        %v1010 = vld [vmem:[%s732 + $0x3b8] sm:$0xff]
        %v1011 = vld [vmem:[%s732 + $0x3c0] sm:$0xff]
        %v1012 = vld [vmem:[%s732 + $0x3c8] sm:$0xff]
        %v1013 = vld [vmem:[%s732 + $0x3d0] sm:$0xff]
        %v1014 = vld [vmem:[%s732 + $0x3d8] sm:$0xff]
        %v1015 = vld [vmem:[%s732 + $0x3e0] sm:$0xff]
        %v1016 = vld [vmem:[%s732 + $0x3e8] sm:$0xff]
        %v1017 = vld [vmem:[%s732 + $0x3f0] sm:$0xff]
        %v1018 = vld [vmem:[%s732 + $0x3f8] sm:$0xff]
        %v1019 = vld [vmem:[%s732 + $0x400] sm:$0xff]
        %v1020 = vld [vmem:[%s732 + $0x408] sm:$0xff]
        %v1021 = vld [vmem:[%s732 + $0x410] sm:$0xff]
        %v1022 = vld [vmem:[%s732 + $0x418] sm:$0xff]
        %v1023 = vld [vmem:[%s732 + $0x420] sm:$0xff]
        %v1024 = vld [vmem:[%s732 + $0x428] sm:$0xff]
        %v1025 = vld [vmem:[%s732 + $0x430] sm:$0xff]
        %v1026 = vld [vmem:[%s732 + $0x438] sm:$0xff]
        %v1027 = vld [vmem:[%s732 + $0x440] sm:$0xff]
        %v1028 = vld [vmem:[%s732 + $0x448] sm:$0xff]
        %v1029 = vld [vmem:[%s732 + $0x450] sm:$0xff]
        %v1030 = vld [vmem:[%s732 + $0x458] sm:$0xff]
        %v1031 = vld [vmem:[%s732 + $0x460] sm:$0xff]
        %v1032 = vld [vmem:[%s732 + $0x468] sm:$0xff]
        %v1033 = vld [vmem:[%s732 + $0x470] sm:$0xff]
        %v1034 = vld [vmem:[%s732 + $0x478] sm:$0xff]
        %v1035 = vld [vmem:[%s732 + $0x480] sm:$0xff]
        %v1036 = vld [vmem:[%s732 + $0x488] sm:$0xff]
        %v1037 = vld [vmem:[%s732 + $0x490] sm:$0xff]
        %v1038 = vld [vmem:[%s732 + $0x498] sm:$0xff]
        %v1039 = vld [vmem:[%s732 + $0x4a0] sm:$0xff]
        %v1040 = vld [vmem:[%s732 + $0x4a8] sm:$0xff]
        %v1041 = vld [vmem:[%s732 + $0x4b0] sm:$0xff]
        %v1042 = vld [vmem:[%s732 + $0x4b8] sm:$0xff]
        %v1043 = vld [vmem:[%s732 + $0x4c0] sm:$0xff]
        %v1044 = vld [vmem:[%s732 + $0x4c8] sm:$0xff]
        %v1045 = vld [vmem:[%s732 + $0x4d0] sm:$0xff]
        %v1046 = vld [vmem:[%s732 + $0x4d8] sm:$0xff]
        %v1047 = vld [vmem:[%s732 + $0x4e0] sm:$0xff]
        %v1048 = vld [vmem:[%s732 + $0x4e8] sm:$0xff]
        %v1049 = vld [vmem:[%s732 + $0x4f0] sm:$0xff]
        %v1050 = vld [vmem:[%s732 + $0x4f8] sm:$0xff]
        %v1051 = vld [vmem:[%s732 + $0x500] sm:$0xff]
        %v1052 = vld [vmem:[%s732 + $0x508] sm:$0xff]
        %v1053 = vld [vmem:[%s732 + $0x510] sm:$0xff]
        %v1054 = vld [vmem:[%s732 + $0x518] sm:$0xff]
        %v1055 = vld [vmem:[%s732 + $0x520] sm:$0xff]
        %v1056 = vld [vmem:[%s732 + $0x528] sm:$0xff]
        %v1057 = vld [vmem:[%s732 + $0x530] sm:$0xff]
        %v1058 = vld [vmem:[%s732 + $0x538] sm:$0xff]
        %v1059 = vld [vmem:[%s732 + $0x540] sm:$0xff]
        %v1060 = vld [vmem:[%s732 + $0x548] sm:$0xff]
        %v1061 = vld [vmem:[%s732 + $0x550] sm:$0xff]
        %v1062 = vld [vmem:[%s732 + $0x558] sm:$0xff]
        %v1063 = vld [vmem:[%s732 + $0x560] sm:$0xff]
        %v1064 = vld [vmem:[%s732 + $0x568] sm:$0xff]
        %v1065 = vld [vmem:[%s732 + $0x570] sm:$0xff]
        %v1066 = vld [vmem:[%s732 + $0x578] sm:$0xff]
        %v1067 = vld [vmem:[%s732 + $0x580] sm:$0xff]
        %v1068 = vld [vmem:[%s732 + $0x588] sm:$0xff]
        %v1069 = vld [vmem:[%s732 + $0x590] sm:$0xff]
        %v1070 = vld [vmem:[%s732 + $0x598] sm:$0xff]
        %v1071 = vld [vmem:[%s732 + $0x5a0] sm:$0xff]
        %v1072 = vld [vmem:[%s732 + $0x5a8] sm:$0xff]
        %v1073 = vld [vmem:[%s732 + $0x5b0] sm:$0xff]
        %v1074 = vld [vmem:[%s732 + $0x5b8] sm:$0xff]
        %v1075 = vld [vmem:[%s732 + $0x5c0] sm:$0xff]
        %v1076 = vld [vmem:[%s732 + $0x5c8] sm:$0xff]
        %v1077 = vld [vmem:[%s732 + $0x5d0] sm:$0xff]
        %v1078 = vld [vmem:[%s732 + $0x5d8] sm:$0xff]
        %v1079 = vld [vmem:[%s732 + $0x5e0] sm:$0xff]
        %v1080 = vld [vmem:[%s732 + $0x5e8] sm:$0xff]
        %v1081 = vld [vmem:[%s732 + $0x5f0] sm:$0xff]
        %v1082 = vld [vmem:[%s732 + $0x5f8] sm:$0xff]
        %v1083 = vld [vmem:[%s732 + $0x600] sm:$0xff]
        %v1084 = vld [vmem:[%s732 + $0x608] sm:$0xff]
        %v1085 = vld [vmem:[%s732 + $0x610] sm:$0xff]
        %v1086 = vld [vmem:[%s732 + $0x618] sm:$0xff]
        %v1087 = vld [vmem:[%s732 + $0x620] sm:$0xff]
        %v1088 = vld [vmem:[%s732 + $0x628] sm:$0xff]
        %v1089 = vld [vmem:[%s732 + $0x630] sm:$0xff]
        %v1090 = vld [vmem:[%s732 + $0x638] sm:$0xff]
        %v1091 = vld [vmem:[%s732 + $0x640] sm:$0xff]
        %v1092 = vld [vmem:[%s732 + $0x648] sm:$0xff]
        %v1093 = vld [vmem:[%s732 + $0x650] sm:$0xff]
        %v1094 = vld [vmem:[%s732 + $0x658] sm:$0xff]
        %v1095 = vld [vmem:[%s732 + $0x660] sm:$0xff]
        %v1096 = vld [vmem:[%s732 + $0x668] sm:$0xff]
        %v1097 = vld [vmem:[%s732 + $0x670] sm:$0xff]
        %v1098 = vld [vmem:[%s732 + $0x678] sm:$0xff]
        %v1099 = vld [vmem:[%s732 + $0x680] sm:$0xff]
        %v1100 = vld [vmem:[%s732 + $0x688] sm:$0xff]
        %v1101 = vld [vmem:[%s732 + $0x690] sm:$0xff]
        %v1102 = vld [vmem:[%s732 + $0x698] sm:$0xff]
        %v1103 = vld [vmem:[%s732 + $0x6a0] sm:$0xff]
        %v1104 = vld [vmem:[%s732 + $0x6a8] sm:$0xff]
        %v1105 = vld [vmem:[%s732 + $0x6b0] sm:$0xff]
        %v1106 = vld [vmem:[%s732 + $0x6b8] sm:$0xff]
        %v1107 = vld [vmem:[%s732 + $0x6c0] sm:$0xff]
        %v1108 = vld [vmem:[%s732 + $0x6c8] sm:$0xff]
        %v1109 = vld [vmem:[%s732 + $0x6d0] sm:$0xff]
        %v1110 = vld [vmem:[%s732 + $0x6d8] sm:$0xff]
        %v1111 = vld [vmem:[%s732 + $0x6e0] sm:$0xff]
        %v1112 = vld [vmem:[%s732 + $0x6e8] sm:$0xff]
        %v1113 = vld [vmem:[%s732 + $0x6f0] sm:$0xff]
        %v1114 = vld [vmem:[%s732 + $0x6f8] sm:$0xff]
        %v1115 = vld [vmem:[%s732 + $0x700] sm:$0xff]
        %v1116 = vld [vmem:[%s732 + $0x708] sm:$0xff]
        %v1117 = vld [vmem:[%s732 + $0x710] sm:$0xff]
        %v1118 = vld [vmem:[%s732 + $0x718] sm:$0xff]
        %v1119 = vld [vmem:[%s732 + $0x720] sm:$0xff]
        %v1120 = vld [vmem:[%s732 + $0x728] sm:$0xff]
        %v1121 = vld [vmem:[%s732 + $0x730] sm:$0xff]
        %v1122 = vld [vmem:[%s732 + $0x738] sm:$0xff]
        %v1123 = vld [vmem:[%s732 + $0x740] sm:$0xff]
        %v1124 = vld [vmem:[%s732 + $0x748] sm:$0xff]
        %v1125 = vld [vmem:[%s732 + $0x750] sm:$0xff]
        %v1126 = vld [vmem:[%s732 + $0x758] sm:$0xff]
        %v1127 = vld [vmem:[%s732 + $0x760] sm:$0xff]
        %v1128 = vld [vmem:[%s732 + $0x768] sm:$0xff]
        %v1129 = vld [vmem:[%s732 + $0x770] sm:$0xff]
        %v1130 = vld [vmem:[%s732 + $0x778] sm:$0xff]
        %v1131 = vld [vmem:[%s732 + $0x780] sm:$0xff]
        %v1132 = vld [vmem:[%s732 + $0x788] sm:$0xff]
        %v1133 = vld [vmem:[%s732 + $0x790] sm:$0xff]
        %v1134 = vld [vmem:[%s732 + $0x798] sm:$0xff]
        %v1135 = vld [vmem:[%s732 + $0x7a0] sm:$0xff]
        %v1136 = vld [vmem:[%s732 + $0x7a8] sm:$0xff]
        %v1137 = vld [vmem:[%s732 + $0x7b0] sm:$0xff]
        %v1138 = vld [vmem:[%s732 + $0x7b8] sm:$0xff]
        %v1139 = vld [vmem:[%s732 + $0x7c0] sm:$0xff]
        %v1140 = vld [vmem:[%s732 + $0x7c8] sm:$0xff]
        %v1141 = vld [vmem:[%s732 + $0x7d0] sm:$0xff]
        %v1142 = vld [vmem:[%s732 + $0x7d8] sm:$0xff]
        %v1143 = vld [vmem:[%s732 + $0x7e0] sm:$0xff]
        %v1144 = vld [vmem:[%s732 + $0x7e8] sm:$0xff]
        %v1145 = vld [vmem:[%s732 + $0x7f0] sm:$0xff]
        %v1146 = vld [vmem:[%s732 + $0x7f8] sm:$0xff]
        %v1151 = vunpack.c.l.b16 %v887
        %v1152 = vunpack.c.h.b16 %v887
        %v1153 = vunpack.c.l.b16 %v888
        %v1154 = vunpack.c.h.b16 %v888
        %v1155 = vunpack.c.l.b16 %v889
        %v1156 = vunpack.c.h.b16 %v889
        %v1157 = vunpack.c.l.b16 %v890
        %v1158 = vunpack.c.h.b16 %v890
        %v1159 = vpack.c.b16 %v1151, %v1151
        %v1160 = vpack.c.b16 %v1152, %v1152
        %v1161 = vpack.c.b16 %v1153, %v1153
        %v1162 = vpack.c.b16 %v1154, %v1154
        %v1163 = vpack.c.b16 %v1155, %v1155
        %v1164 = vpack.c.b16 %v1156, %v1156
        %v1165 = vpack.c.b16 %v1157, %v1157
        %v1166 = vpack.c.b16 %v1158, %v1158
        %v1431 = vunpack.c.l.b16 %v891
        %v1432 = vunpack.c.h.b16 %v891
        %v1433 = vunpack.c.l.b16 %v892
        %v1434 = vunpack.c.h.b16 %v892
        %v1435 = vunpack.c.l.b16 %v893
        %v1436 = vunpack.c.h.b16 %v893
        %v1437 = vunpack.c.l.b16 %v894
        %v1438 = vunpack.c.h.b16 %v894
        %v1439 = vunpack.c.l.b16 %v895
        %v1440 = vunpack.c.h.b16 %v895
        %v1441 = vunpack.c.l.b16 %v896
        %v1442 = vunpack.c.h.b16 %v896
        %v1443 = vunpack.c.l.b16 %v897
        %v1444 = vunpack.c.h.b16 %v897
        %v1445 = vunpack.c.l.b16 %v898
        %v1446 = vunpack.c.h.b16 %v898
        %v1447 = vunpack.c.l.b16 %v899
        %v1448 = vunpack.c.h.b16 %v899
        %v1449 = vunpack.c.l.b16 %v900
        %v1450 = vunpack.c.h.b16 %v900
        %v1451 = vunpack.c.l.b16 %v901
        %v1452 = vunpack.c.h.b16 %v901
        %v1453 = vunpack.c.l.b16 %v902
        %v1454 = vunpack.c.h.b16 %v902
        %v1455 = vunpack.c.l.b16 %v903
        %v1456 = vunpack.c.h.b16 %v903
        %v1457 = vunpack.c.l.b16 %v904
        %v1458 = vunpack.c.h.b16 %v904
        %v1459 = vunpack.c.l.b16 %v905
        %v1460 = vunpack.c.h.b16 %v905
        %v1461 = vunpack.c.l.b16 %v906
        %v1462 = vunpack.c.h.b16 %v906
        %v1463 = vunpack.c.l.b16 %v907
        %v1464 = vunpack.c.h.b16 %v907
        %v1465 = vunpack.c.l.b16 %v908
        %v1466 = vunpack.c.h.b16 %v908
        %v1467 = vunpack.c.l.b16 %v909
        %v1468 = vunpack.c.h.b16 %v909
        %v1469 = vunpack.c.l.b16 %v910
        %v1470 = vunpack.c.h.b16 %v910
        %v1471 = vunpack.c.l.b16 %v911
        %v1472 = vunpack.c.h.b16 %v911
        %v1473 = vunpack.c.l.b16 %v912
        %v1474 = vunpack.c.h.b16 %v912
        %v1475 = vunpack.c.l.b16 %v913
        %v1476 = vunpack.c.h.b16 %v913
        %v1477 = vunpack.c.l.b16 %v914
        %v1478 = vunpack.c.h.b16 %v914
        %v1479 = vunpack.c.l.b16 %v915
        %v1480 = vunpack.c.h.b16 %v915
        %v1481 = vunpack.c.l.b16 %v916
        %v1482 = vunpack.c.h.b16 %v916
        %v1483 = vunpack.c.l.b16 %v917
        %v1484 = vunpack.c.h.b16 %v917
        %v1485 = vunpack.c.l.b16 %v918
        %v1486 = vunpack.c.h.b16 %v918
        %v1487 = vunpack.c.l.b16 %v919
        %v1488 = vunpack.c.h.b16 %v919
        %v1489 = vunpack.c.l.b16 %v920
        %v1490 = vunpack.c.h.b16 %v920
        %v1491 = vunpack.c.l.b16 %v921
        %v1492 = vunpack.c.h.b16 %v921
        %v1493 = vunpack.c.l.b16 %v922
        %v1494 = vunpack.c.h.b16 %v922
        %v1495 = vunpack.c.l.b16 %v923
        %v1496 = vunpack.c.h.b16 %v923
        %v1497 = vunpack.c.l.b16 %v924
        %v1498 = vunpack.c.h.b16 %v924
        %v1499 = vunpack.c.l.b16 %v925
        %v1500 = vunpack.c.h.b16 %v925
        %v1501 = vunpack.c.l.b16 %v926
        %v1502 = vunpack.c.h.b16 %v926
        %v1503 = vunpack.c.l.b16 %v927
        %v1504 = vunpack.c.h.b16 %v927
        %v1505 = vunpack.c.l.b16 %v928
        %v1506 = vunpack.c.h.b16 %v928
        %v1507 = vunpack.c.l.b16 %v929
        %v1508 = vunpack.c.h.b16 %v929
        %v1509 = vunpack.c.l.b16 %v930
        %v1510 = vunpack.c.h.b16 %v930
        %v1511 = vunpack.c.l.b16 %v931
        %v1512 = vunpack.c.h.b16 %v931
        %v1513 = vunpack.c.l.b16 %v932
        %v1514 = vunpack.c.h.b16 %v932
        %v1515 = vunpack.c.l.b16 %v933
        %v1516 = vunpack.c.h.b16 %v933
        %v1517 = vunpack.c.l.b16 %v934
        %v1518 = vunpack.c.h.b16 %v934
        %v1519 = vunpack.c.l.b16 %v935
        %v1520 = vunpack.c.h.b16 %v935
        %v1521 = vunpack.c.l.b16 %v936
        %v1522 = vunpack.c.h.b16 %v936
        %v1523 = vunpack.c.l.b16 %v937
        %v1524 = vunpack.c.h.b16 %v937
        %v1525 = vunpack.c.l.b16 %v938
        %v1526 = vunpack.c.h.b16 %v938
        %v1527 = vunpack.c.l.b16 %v939
        %v1528 = vunpack.c.h.b16 %v939
        %v1529 = vunpack.c.l.b16 %v940
        %v1530 = vunpack.c.h.b16 %v940
        %v1531 = vunpack.c.l.b16 %v941
        %v1532 = vunpack.c.h.b16 %v941
        %v1533 = vunpack.c.l.b16 %v942
        %v1534 = vunpack.c.h.b16 %v942
        %v1535 = vunpack.c.l.b16 %v943
        %v1536 = vunpack.c.h.b16 %v943
        %v1537 = vunpack.c.l.b16 %v944
        %v1538 = vunpack.c.h.b16 %v944
        %v1539 = vunpack.c.l.b16 %v945
        %v1540 = vunpack.c.h.b16 %v945
        %v1541 = vunpack.c.l.b16 %v946
        %v1542 = vunpack.c.h.b16 %v946
        %v1543 = vunpack.c.l.b16 %v947
        %v1544 = vunpack.c.h.b16 %v947
        %v1545 = vunpack.c.l.b16 %v948
        %v1546 = vunpack.c.h.b16 %v948
        %v1547 = vunpack.c.l.b16 %v949
        %v1548 = vunpack.c.h.b16 %v949
        %v1549 = vunpack.c.l.b16 %v950
        %v1550 = vunpack.c.h.b16 %v950
        %v1551 = vunpack.c.l.b16 %v951
        %v1552 = vunpack.c.h.b16 %v951
        %v1553 = vunpack.c.l.b16 %v952
        %v1554 = vunpack.c.h.b16 %v952
        %v1555 = vunpack.c.l.b16 %v953
        %v1556 = vunpack.c.h.b16 %v953
        %v1557 = vunpack.c.l.b16 %v954
        %v1558 = vunpack.c.h.b16 %v954
        %v1559 = vunpack.c.l.b16 %v955
        %v1560 = vunpack.c.h.b16 %v955
        %v1561 = vunpack.c.l.b16 %v956
        %v1562 = vunpack.c.h.b16 %v956
        %v1563 = vunpack.c.l.b16 %v957
        %v1564 = vunpack.c.h.b16 %v957
        %v1565 = vunpack.c.l.b16 %v958
        %v1566 = vunpack.c.h.b16 %v958
        %v1567 = vunpack.c.l.b16 %v959
        %v1568 = vunpack.c.h.b16 %v959
        %v1569 = vunpack.c.l.b16 %v960
        %v1570 = vunpack.c.h.b16 %v960
        %v1571 = vunpack.c.l.b16 %v961
        %v1572 = vunpack.c.h.b16 %v961
        %v1573 = vunpack.c.l.b16 %v962
        %v1574 = vunpack.c.h.b16 %v962
        %v1575 = vunpack.c.l.b16 %v963
        %v1576 = vunpack.c.h.b16 %v963
        %v1577 = vunpack.c.l.b16 %v964
        %v1578 = vunpack.c.h.b16 %v964
        %v1579 = vunpack.c.l.b16 %v965
        %v1580 = vunpack.c.h.b16 %v965
        %v1581 = vunpack.c.l.b16 %v966
        %v1582 = vunpack.c.h.b16 %v966
        %v1583 = vunpack.c.l.b16 %v967
        %v1584 = vunpack.c.h.b16 %v967
        %v1585 = vunpack.c.l.b16 %v968
        %v1586 = vunpack.c.h.b16 %v968
        %v1587 = vunpack.c.l.b16 %v969
        %v1588 = vunpack.c.h.b16 %v969
        %v1589 = vunpack.c.l.b16 %v970
        %v1590 = vunpack.c.h.b16 %v970
        %v1591 = vunpack.c.l.b16 %v971
        %v1592 = vunpack.c.h.b16 %v971
        %v1593 = vunpack.c.l.b16 %v972
        %v1594 = vunpack.c.h.b16 %v972
        %v1595 = vunpack.c.l.b16 %v973
        %v1596 = vunpack.c.h.b16 %v973
        %v1597 = vunpack.c.l.b16 %v974
        %v1598 = vunpack.c.h.b16 %v974
        %v1599 = vunpack.c.l.b16 %v975
        %v1600 = vunpack.c.h.b16 %v975
        %v1601 = vunpack.c.l.b16 %v976
        %v1602 = vunpack.c.h.b16 %v976
        %v1603 = vunpack.c.l.b16 %v977
        %v1604 = vunpack.c.h.b16 %v977
        %v1605 = vunpack.c.l.b16 %v978
        %v1606 = vunpack.c.h.b16 %v978
        %v1607 = vunpack.c.l.b16 %v979
        %v1608 = vunpack.c.h.b16 %v979
        %v1609 = vunpack.c.l.b16 %v980
        %v1610 = vunpack.c.h.b16 %v980
        %v1611 = vunpack.c.l.b16 %v981
        %v1612 = vunpack.c.h.b16 %v981
        %v1613 = vunpack.c.l.b16 %v982
        %v1614 = vunpack.c.h.b16 %v982
        %v1615 = vunpack.c.l.b16 %v983
        %v1616 = vunpack.c.h.b16 %v983
        %v1617 = vunpack.c.l.b16 %v984
        %v1618 = vunpack.c.h.b16 %v984
        %v1619 = vunpack.c.l.b16 %v985
        %v1620 = vunpack.c.h.b16 %v985
        %v1621 = vunpack.c.l.b16 %v986
        %v1622 = vunpack.c.h.b16 %v986
        %v1623 = vunpack.c.l.b16 %v987
        %v1624 = vunpack.c.h.b16 %v987
        %v1625 = vunpack.c.l.b16 %v988
        %v1626 = vunpack.c.h.b16 %v988
        %v1627 = vunpack.c.l.b16 %v989
        %v1628 = vunpack.c.h.b16 %v989
        %v1629 = vunpack.c.l.b16 %v990
        %v1630 = vunpack.c.h.b16 %v990
        %v1631 = vunpack.c.l.b16 %v991
        %v1632 = vunpack.c.h.b16 %v991
        %v1633 = vunpack.c.l.b16 %v992
        %v1634 = vunpack.c.h.b16 %v992
        %v1635 = vunpack.c.l.b16 %v993
        %v1636 = vunpack.c.h.b16 %v993
        %v1637 = vunpack.c.l.b16 %v994
        %v1638 = vunpack.c.h.b16 %v994
        %v1639 = vunpack.c.l.b16 %v995
        %v1640 = vunpack.c.h.b16 %v995
        %v1641 = vunpack.c.l.b16 %v996
        %v1642 = vunpack.c.h.b16 %v996
        %v1643 = vunpack.c.l.b16 %v997
        %v1644 = vunpack.c.h.b16 %v997
        %v1645 = vunpack.c.l.b16 %v998
        %v1646 = vunpack.c.h.b16 %v998
        %v1647 = vunpack.c.l.b16 %v999
        %v1648 = vunpack.c.h.b16 %v999
        %v1649 = vunpack.c.l.b16 %v1000
        %v1650 = vunpack.c.h.b16 %v1000
        %v1651 = vunpack.c.l.b16 %v1001
        %v1652 = vunpack.c.h.b16 %v1001
        %v1653 = vunpack.c.l.b16 %v1002
        %v1654 = vunpack.c.h.b16 %v1002
        %v1655 = vunpack.c.l.b16 %v1003
        %v1656 = vunpack.c.h.b16 %v1003
        %v1657 = vunpack.c.l.b16 %v1004
        %v1658 = vunpack.c.h.b16 %v1004
        %v1659 = vunpack.c.l.b16 %v1005
        %v1660 = vunpack.c.h.b16 %v1005
        %v1661 = vunpack.c.l.b16 %v1006
        %v1662 = vunpack.c.h.b16 %v1006
        %v1663 = vunpack.c.l.b16 %v1007
        %v1664 = vunpack.c.h.b16 %v1007
        %v1665 = vunpack.c.l.b16 %v1008
        %v1666 = vunpack.c.h.b16 %v1008
        %v1667 = vunpack.c.l.b16 %v1009
        %v1668 = vunpack.c.h.b16 %v1009
        %v1669 = vunpack.c.l.b16 %v1010
        %v1670 = vunpack.c.h.b16 %v1010
        %v1671 = vunpack.c.l.b16 %v1011
        %v1672 = vunpack.c.h.b16 %v1011
        %v1673 = vunpack.c.l.b16 %v1012
        %v1674 = vunpack.c.h.b16 %v1012
        %v1675 = vunpack.c.l.b16 %v1013
        %v1676 = vunpack.c.h.b16 %v1013
        %v1677 = vunpack.c.l.b16 %v1014
        %v1678 = vunpack.c.h.b16 %v1014
        %v1679 = vunpack.c.l.b16 %v1015
        %v1680 = vunpack.c.h.b16 %v1015
        %v1681 = vunpack.c.l.b16 %v1016
        %v1682 = vunpack.c.h.b16 %v1016
        %v1683 = vunpack.c.l.b16 %v1017
        %v1684 = vunpack.c.h.b16 %v1017
        %v1685 = vunpack.c.l.b16 %v1018
        %v1686 = vunpack.c.h.b16 %v1018
        %v1687 = vunpack.c.l.b16 %v1019
        %v1688 = vunpack.c.h.b16 %v1019
        %v1689 = vunpack.c.l.b16 %v1020
        %v1690 = vunpack.c.h.b16 %v1020
        %v1691 = vunpack.c.l.b16 %v1021
        %v1692 = vunpack.c.h.b16 %v1021
        %v1693 = vunpack.c.l.b16 %v1022
        %v1694 = vunpack.c.h.b16 %v1022
        %v1695 = vunpack.c.l.b16 %v1023
        %v1696 = vunpack.c.h.b16 %v1023
        %v1697 = vunpack.c.l.b16 %v1024
        %v1698 = vunpack.c.h.b16 %v1024
        %v1699 = vunpack.c.l.b16 %v1025
        %v1700 = vunpack.c.h.b16 %v1025
        %v1701 = vunpack.c.l.b16 %v1026
        %v1702 = vunpack.c.h.b16 %v1026
        %v1703 = vunpack.c.l.b16 %v1027
        %v1704 = vunpack.c.h.b16 %v1027
        %v1705 = vunpack.c.l.b16 %v1028
        %v1706 = vunpack.c.h.b16 %v1028
        %v1707 = vunpack.c.l.b16 %v1029
        %v1708 = vunpack.c.h.b16 %v1029
        %v1709 = vunpack.c.l.b16 %v1030
        %v1710 = vunpack.c.h.b16 %v1030
        %v1711 = vunpack.c.l.b16 %v1031
        %v1712 = vunpack.c.h.b16 %v1031
        %v1713 = vunpack.c.l.b16 %v1032
        %v1714 = vunpack.c.h.b16 %v1032
        %v1715 = vunpack.c.l.b16 %v1033
        %v1716 = vunpack.c.h.b16 %v1033
        %v1717 = vunpack.c.l.b16 %v1034
        %v1718 = vunpack.c.h.b16 %v1034
        %v1719 = vunpack.c.l.b16 %v1035
        %v1720 = vunpack.c.h.b16 %v1035
        %v1721 = vunpack.c.l.b16 %v1036
        %v1722 = vunpack.c.h.b16 %v1036
        %v1723 = vunpack.c.l.b16 %v1037
        %v1724 = vunpack.c.h.b16 %v1037
        %v1725 = vunpack.c.l.b16 %v1038
        %v1726 = vunpack.c.h.b16 %v1038
        %v1727 = vunpack.c.l.b16 %v1039
        %v1728 = vunpack.c.h.b16 %v1039
        %v1729 = vunpack.c.l.b16 %v1040
        %v1730 = vunpack.c.h.b16 %v1040
        %v1731 = vunpack.c.l.b16 %v1041
        %v1732 = vunpack.c.h.b16 %v1041
        %v1733 = vunpack.c.l.b16 %v1042
        %v1734 = vunpack.c.h.b16 %v1042
        %v1735 = vunpack.c.l.b16 %v1043
        %v1736 = vunpack.c.h.b16 %v1043
        %v1737 = vunpack.c.l.b16 %v1044
        %v1738 = vunpack.c.h.b16 %v1044
        %v1739 = vunpack.c.l.b16 %v1045
        %v1740 = vunpack.c.h.b16 %v1045
        %v1741 = vunpack.c.l.b16 %v1046
        %v1742 = vunpack.c.h.b16 %v1046
        %v1743 = vunpack.c.l.b16 %v1047
        %v1744 = vunpack.c.h.b16 %v1047
        %v1745 = vunpack.c.l.b16 %v1048
        %v1746 = vunpack.c.h.b16 %v1048
        %v1747 = vunpack.c.l.b16 %v1049
        %v1748 = vunpack.c.h.b16 %v1049
        %v1749 = vunpack.c.l.b16 %v1050
        %v1750 = vunpack.c.h.b16 %v1050
        %v1751 = vunpack.c.l.b16 %v1051
        %v1752 = vunpack.c.h.b16 %v1051
        %v1753 = vunpack.c.l.b16 %v1052
        %v1754 = vunpack.c.h.b16 %v1052
        %v1755 = vunpack.c.l.b16 %v1053
        %v1756 = vunpack.c.h.b16 %v1053
        %v1757 = vunpack.c.l.b16 %v1054
        %v1758 = vunpack.c.h.b16 %v1054
        %v1759 = vunpack.c.l.b16 %v1055
        %v1760 = vunpack.c.h.b16 %v1055
        %v1761 = vunpack.c.l.b16 %v1056
        %v1762 = vunpack.c.h.b16 %v1056
        %v1763 = vunpack.c.l.b16 %v1057
        %v1764 = vunpack.c.h.b16 %v1057
        %v1765 = vunpack.c.l.b16 %v1058
        %v1766 = vunpack.c.h.b16 %v1058
        %v1767 = vunpack.c.l.b16 %v1059
        %v1768 = vunpack.c.h.b16 %v1059
        %v1769 = vunpack.c.l.b16 %v1060
        %v1770 = vunpack.c.h.b16 %v1060
        %v1771 = vunpack.c.l.b16 %v1061
        %v1772 = vunpack.c.h.b16 %v1061
        %v1773 = vunpack.c.l.b16 %v1062
        %v1774 = vunpack.c.h.b16 %v1062
        %v1775 = vunpack.c.l.b16 %v1063
        %v1776 = vunpack.c.h.b16 %v1063
        %v1777 = vunpack.c.l.b16 %v1064
        %v1778 = vunpack.c.h.b16 %v1064
        %v1779 = vunpack.c.l.b16 %v1065
        %v1780 = vunpack.c.h.b16 %v1065
        %v1781 = vunpack.c.l.b16 %v1066
        %v1782 = vunpack.c.h.b16 %v1066
        %v1783 = vunpack.c.l.b16 %v1067
        %v1784 = vunpack.c.h.b16 %v1067
        %v1785 = vunpack.c.l.b16 %v1068
        %v1786 = vunpack.c.h.b16 %v1068
        %v1787 = vunpack.c.l.b16 %v1069
        %v1788 = vunpack.c.h.b16 %v1069
        %v1789 = vunpack.c.l.b16 %v1070
        %v1790 = vunpack.c.h.b16 %v1070
        %v1791 = vunpack.c.l.b16 %v1071
        %v1792 = vunpack.c.h.b16 %v1071
        %v1793 = vunpack.c.l.b16 %v1072
        %v1794 = vunpack.c.h.b16 %v1072
        %v1795 = vunpack.c.l.b16 %v1073
        %v1796 = vunpack.c.h.b16 %v1073
        %v1797 = vunpack.c.l.b16 %v1074
        %v1798 = vunpack.c.h.b16 %v1074
        %v1799 = vunpack.c.l.b16 %v1075
        %v1800 = vunpack.c.h.b16 %v1075
        %v1801 = vunpack.c.l.b16 %v1076
        %v1802 = vunpack.c.h.b16 %v1076
        %v1803 = vunpack.c.l.b16 %v1077
        %v1804 = vunpack.c.h.b16 %v1077
        %v1805 = vunpack.c.l.b16 %v1078
        %v1806 = vunpack.c.h.b16 %v1078
        %v1807 = vunpack.c.l.b16 %v1079
        %v1808 = vunpack.c.h.b16 %v1079
        %v1809 = vunpack.c.l.b16 %v1080
        %v1810 = vunpack.c.h.b16 %v1080
        %v1811 = vunpack.c.l.b16 %v1081
        %v1812 = vunpack.c.h.b16 %v1081
        %v1813 = vunpack.c.l.b16 %v1082
        %v1814 = vunpack.c.h.b16 %v1082
        %v1815 = vunpack.c.l.b16 %v1083
        %v1816 = vunpack.c.h.b16 %v1083
        %v1817 = vunpack.c.l.b16 %v1084
        %v1818 = vunpack.c.h.b16 %v1084
        %v1819 = vunpack.c.l.b16 %v1085
        %v1820 = vunpack.c.h.b16 %v1085
        %v1821 = vunpack.c.l.b16 %v1086
        %v1822 = vunpack.c.h.b16 %v1086
        %v1823 = vunpack.c.l.b16 %v1087
        %v1824 = vunpack.c.h.b16 %v1087
        %v1825 = vunpack.c.l.b16 %v1088
        %v1826 = vunpack.c.h.b16 %v1088
        %v1827 = vunpack.c.l.b16 %v1089
        %v1828 = vunpack.c.h.b16 %v1089
        %v1829 = vunpack.c.l.b16 %v1090
        %v1830 = vunpack.c.h.b16 %v1090
        %v1831 = vunpack.c.l.b16 %v1091
        %v1832 = vunpack.c.h.b16 %v1091
        %v1833 = vunpack.c.l.b16 %v1092
        %v1834 = vunpack.c.h.b16 %v1092
        %v1835 = vunpack.c.l.b16 %v1093
        %v1836 = vunpack.c.h.b16 %v1093
        %v1837 = vunpack.c.l.b16 %v1094
        %v1838 = vunpack.c.h.b16 %v1094
        %v1839 = vunpack.c.l.b16 %v1095
        %v1840 = vunpack.c.h.b16 %v1095
        %v1841 = vunpack.c.l.b16 %v1096
        %v1842 = vunpack.c.h.b16 %v1096
        %v1843 = vunpack.c.l.b16 %v1097
        %v1844 = vunpack.c.h.b16 %v1097
        %v1845 = vunpack.c.l.b16 %v1098
        %v1846 = vunpack.c.h.b16 %v1098
        %v1847 = vunpack.c.l.b16 %v1099
        %v1848 = vunpack.c.h.b16 %v1099
        %v1849 = vunpack.c.l.b16 %v1100
        %v1850 = vunpack.c.h.b16 %v1100
        %v1851 = vunpack.c.l.b16 %v1101
        %v1852 = vunpack.c.h.b16 %v1101
        %v1853 = vunpack.c.l.b16 %v1102
        %v1854 = vunpack.c.h.b16 %v1102
        %v1855 = vunpack.c.l.b16 %v1103
        %v1856 = vunpack.c.h.b16 %v1103
        %v1857 = vunpack.c.l.b16 %v1104
        %v1858 = vunpack.c.h.b16 %v1104
        %v1859 = vunpack.c.l.b16 %v1105
        %v1860 = vunpack.c.h.b16 %v1105
        %v1861 = vunpack.c.l.b16 %v1106
        %v1862 = vunpack.c.h.b16 %v1106
        %v1863 = vunpack.c.l.b16 %v1107
        %v1864 = vunpack.c.h.b16 %v1107
        %v1865 = vunpack.c.l.b16 %v1108
        %v1866 = vunpack.c.h.b16 %v1108
        %v1867 = vunpack.c.l.b16 %v1109
        %v1868 = vunpack.c.h.b16 %v1109
        %v1869 = vunpack.c.l.b16 %v1110
        %v1870 = vunpack.c.h.b16 %v1110
        %v1871 = vunpack.c.l.b16 %v1111
        %v1872 = vunpack.c.h.b16 %v1111
        %v1873 = vunpack.c.l.b16 %v1112
        %v1874 = vunpack.c.h.b16 %v1112
        %v1875 = vunpack.c.l.b16 %v1113
        %v1876 = vunpack.c.h.b16 %v1113
        %v1877 = vunpack.c.l.b16 %v1114
        %v1878 = vunpack.c.h.b16 %v1114
        %v1879 = vunpack.c.l.b16 %v1115
        %v1880 = vunpack.c.h.b16 %v1115
        %v1881 = vunpack.c.l.b16 %v1116
        %v1882 = vunpack.c.h.b16 %v1116
        %v1883 = vunpack.c.l.b16 %v1117
        %v1884 = vunpack.c.h.b16 %v1117
        %v1885 = vunpack.c.l.b16 %v1118
        %v1886 = vunpack.c.h.b16 %v1118
        %v1887 = vunpack.c.l.b16 %v1119
        %v1888 = vunpack.c.h.b16 %v1119
        %v1889 = vunpack.c.l.b16 %v1120
        %v1890 = vunpack.c.h.b16 %v1120
        %v1891 = vunpack.c.l.b16 %v1121
        %v1892 = vunpack.c.h.b16 %v1121
        %v1893 = vunpack.c.l.b16 %v1122
        %v1894 = vunpack.c.h.b16 %v1122
        %v1895 = vunpack.c.l.b16 %v1123
        %v1896 = vunpack.c.h.b16 %v1123
        %v1897 = vunpack.c.l.b16 %v1124
        %v1898 = vunpack.c.h.b16 %v1124
        %v1899 = vunpack.c.l.b16 %v1125
        %v1900 = vunpack.c.h.b16 %v1125
        %v1901 = vunpack.c.l.b16 %v1126
        %v1902 = vunpack.c.h.b16 %v1126
        %v1903 = vunpack.c.l.b16 %v1127
        %v1904 = vunpack.c.h.b16 %v1127
        %v1905 = vunpack.c.l.b16 %v1128
        %v1906 = vunpack.c.h.b16 %v1128
        %v1907 = vunpack.c.l.b16 %v1129
        %v1908 = vunpack.c.h.b16 %v1129
        %v1909 = vunpack.c.l.b16 %v1130
        %v1910 = vunpack.c.h.b16 %v1130
        %v1911 = vunpack.c.l.b16 %v1131
        %v1912 = vunpack.c.h.b16 %v1131
        %v1913 = vunpack.c.l.b16 %v1132
        %v1914 = vunpack.c.h.b16 %v1132
        %v1915 = vunpack.c.l.b16 %v1133
        %v1916 = vunpack.c.h.b16 %v1133
        %v1917 = vunpack.c.l.b16 %v1134
        %v1918 = vunpack.c.h.b16 %v1134
        %v1919 = vunpack.c.l.b16 %v1135
        %v1920 = vunpack.c.h.b16 %v1135
        %v1921 = vunpack.c.l.b16 %v1136
        %v1922 = vunpack.c.h.b16 %v1136
        %v1923 = vunpack.c.l.b16 %v1137
        %v1924 = vunpack.c.h.b16 %v1137
        %v1925 = vunpack.c.l.b16 %v1138
        %v1926 = vunpack.c.h.b16 %v1138
        %v1927 = vunpack.c.l.b16 %v1139
        %v1928 = vunpack.c.h.b16 %v1139
        %v1929 = vunpack.c.l.b16 %v1140
        %v1930 = vunpack.c.h.b16 %v1140
        %v1931 = vunpack.c.l.b16 %v1141
        %v1932 = vunpack.c.h.b16 %v1141
        %v1933 = vunpack.c.l.b16 %v1142
        %v1934 = vunpack.c.h.b16 %v1142
        %v1935 = vunpack.c.l.b16 %v1143
        %v1936 = vunpack.c.h.b16 %v1143
        %v1937 = vunpack.c.l.b16 %v1144
        %v1938 = vunpack.c.h.b16 %v1144
        %v1939 = vunpack.c.l.b16 %v1145
        %v1940 = vunpack.c.h.b16 %v1145
        %v1941 = vunpack.c.l.b16 %v1146
        %v1942 = vunpack.c.h.b16 %v1146
        %v1943 = vpack.c.b16 %v1435, %v1431
        %v1944 = vpack.c.b16 %v1436, %v1432
        %v1945 = vpack.c.b16 %v1437, %v1433
        %v1946 = vpack.c.b16 %v1438, %v1434
        %v1947 = vpack.c.b16 %v1443, %v1439
        %v1948 = vpack.c.b16 %v1444, %v1440
        %v1949 = vpack.c.b16 %v1445, %v1441
        %v1950 = vpack.c.b16 %v1446, %v1442
        %v1951 = vpack.c.b16 %v1451, %v1447
        %v1952 = vpack.c.b16 %v1452, %v1448
        %v1953 = vpack.c.b16 %v1453, %v1449
        %v1954 = vpack.c.b16 %v1454, %v1450
        %v1955 = vpack.c.b16 %v1459, %v1455
        %v1956 = vpack.c.b16 %v1460, %v1456
        %v1957 = vpack.c.b16 %v1461, %v1457
        %v1958 = vpack.c.b16 %v1462, %v1458
        %v1959 = vpack.c.b16 %v1467, %v1463
        %v1960 = vpack.c.b16 %v1468, %v1464
        %v1961 = vpack.c.b16 %v1469, %v1465
        %v1962 = vpack.c.b16 %v1470, %v1466
        %v1963 = vpack.c.b16 %v1475, %v1471
        %v1964 = vpack.c.b16 %v1476, %v1472
        %v1965 = vpack.c.b16 %v1477, %v1473
        %v1966 = vpack.c.b16 %v1478, %v1474
        %v1967 = vpack.c.b16 %v1483, %v1479
        %v1968 = vpack.c.b16 %v1484, %v1480
        %v1969 = vpack.c.b16 %v1485, %v1481
        %v1970 = vpack.c.b16 %v1486, %v1482
        %v1971 = vpack.c.b16 %v1491, %v1487
        %v1972 = vpack.c.b16 %v1492, %v1488
        %v1973 = vpack.c.b16 %v1493, %v1489
        %v1974 = vpack.c.b16 %v1494, %v1490
        %v1975 = vpack.c.b16 %v1499, %v1495
        %v1976 = vpack.c.b16 %v1500, %v1496
        %v1977 = vpack.c.b16 %v1501, %v1497
        %v1978 = vpack.c.b16 %v1502, %v1498
        %v1979 = vpack.c.b16 %v1507, %v1503
        %v1980 = vpack.c.b16 %v1508, %v1504
        %v1981 = vpack.c.b16 %v1509, %v1505
        %v1982 = vpack.c.b16 %v1510, %v1506
        %v1983 = vpack.c.b16 %v1515, %v1511
        %v1984 = vpack.c.b16 %v1516, %v1512
        %v1985 = vpack.c.b16 %v1517, %v1513
        %v1986 = vpack.c.b16 %v1518, %v1514
        %v1987 = vpack.c.b16 %v1523, %v1519
        %v1988 = vpack.c.b16 %v1524, %v1520
        %v1989 = vpack.c.b16 %v1525, %v1521
        %v1990 = vpack.c.b16 %v1526, %v1522
        %v1991 = vpack.c.b16 %v1531, %v1527
        %v1992 = vpack.c.b16 %v1532, %v1528
        %v1993 = vpack.c.b16 %v1533, %v1529
        %v1994 = vpack.c.b16 %v1534, %v1530
        %v1995 = vpack.c.b16 %v1539, %v1535
        %v1996 = vpack.c.b16 %v1540, %v1536
        %v1997 = vpack.c.b16 %v1541, %v1537
        %v1998 = vpack.c.b16 %v1542, %v1538
        %v1999 = vpack.c.b16 %v1547, %v1543
        %v2000 = vpack.c.b16 %v1548, %v1544
        %v2001 = vpack.c.b16 %v1549, %v1545
        %v2002 = vpack.c.b16 %v1550, %v1546
        %v2003 = vpack.c.b16 %v1555, %v1551
        %v2004 = vpack.c.b16 %v1556, %v1552
        %v2005 = vpack.c.b16 %v1557, %v1553
        %v2006 = vpack.c.b16 %v1558, %v1554
        %v2007 = vpack.c.b16 %v1563, %v1559
        %v2008 = vpack.c.b16 %v1564, %v1560
        %v2009 = vpack.c.b16 %v1565, %v1561
        %v2010 = vpack.c.b16 %v1566, %v1562
        %v2011 = vpack.c.b16 %v1571, %v1567
        %v2012 = vpack.c.b16 %v1572, %v1568
        %v2013 = vpack.c.b16 %v1573, %v1569
        %v2014 = vpack.c.b16 %v1574, %v1570
        %v2015 = vpack.c.b16 %v1579, %v1575
        %v2016 = vpack.c.b16 %v1580, %v1576
        %v2017 = vpack.c.b16 %v1581, %v1577
        %v2018 = vpack.c.b16 %v1582, %v1578
        %v2019 = vpack.c.b16 %v1587, %v1583
        %v2020 = vpack.c.b16 %v1588, %v1584
        %v2021 = vpack.c.b16 %v1589, %v1585
        %v2022 = vpack.c.b16 %v1590, %v1586
        %v2023 = vpack.c.b16 %v1595, %v1591
        %v2024 = vpack.c.b16 %v1596, %v1592
        %v2025 = vpack.c.b16 %v1597, %v1593
        %v2026 = vpack.c.b16 %v1598, %v1594
        %v2027 = vpack.c.b16 %v1603, %v1599
        %v2028 = vpack.c.b16 %v1604, %v1600
        %v2029 = vpack.c.b16 %v1605, %v1601
        %v2030 = vpack.c.b16 %v1606, %v1602
        %v2031 = vpack.c.b16 %v1611, %v1607
        %v2032 = vpack.c.b16 %v1612, %v1608
        %v2033 = vpack.c.b16 %v1613, %v1609
        %v2034 = vpack.c.b16 %v1614, %v1610
        %v2035 = vpack.c.b16 %v1619, %v1615
        %v2036 = vpack.c.b16 %v1620, %v1616
        %v2037 = vpack.c.b16 %v1621, %v1617
        %v2038 = vpack.c.b16 %v1622, %v1618
        %v2039 = vpack.c.b16 %v1627, %v1623
        %v2040 = vpack.c.b16 %v1628, %v1624
        %v2041 = vpack.c.b16 %v1629, %v1625
        %v2042 = vpack.c.b16 %v1630, %v1626
        %v2043 = vpack.c.b16 %v1635, %v1631
        %v2044 = vpack.c.b16 %v1636, %v1632
        %v2045 = vpack.c.b16 %v1637, %v1633
        %v2046 = vpack.c.b16 %v1638, %v1634
        %v2047 = vpack.c.b16 %v1643, %v1639
        %v2048 = vpack.c.b16 %v1644, %v1640
        %v2049 = vpack.c.b16 %v1645, %v1641
        %v2050 = vpack.c.b16 %v1646, %v1642
        %v2051 = vpack.c.b16 %v1651, %v1647
        %v2052 = vpack.c.b16 %v1652, %v1648
        %v2053 = vpack.c.b16 %v1653, %v1649
        %v2054 = vpack.c.b16 %v1654, %v1650
        %v2055 = vpack.c.b16 %v1659, %v1655
        %v2056 = vpack.c.b16 %v1660, %v1656
        %v2057 = vpack.c.b16 %v1661, %v1657
        %v2058 = vpack.c.b16 %v1662, %v1658
        %v2059 = vpack.c.b16 %v1667, %v1663
        %v2060 = vpack.c.b16 %v1668, %v1664
        %v2061 = vpack.c.b16 %v1669, %v1665
        %v2062 = vpack.c.b16 %v1670, %v1666
        %v2063 = vpack.c.b16 %v1675, %v1671
        %v2064 = vpack.c.b16 %v1676, %v1672
        %v2065 = vpack.c.b16 %v1677, %v1673
        %v2066 = vpack.c.b16 %v1678, %v1674
        %v2067 = vpack.c.b16 %v1683, %v1679
        %v2068 = vpack.c.b16 %v1684, %v1680
        %v2069 = vpack.c.b16 %v1685, %v1681
        %v2070 = vpack.c.b16 %v1686, %v1682
        %v2071 = vpack.c.b16 %v1691, %v1687
        %v2072 = vpack.c.b16 %v1692, %v1688
        %v2073 = vpack.c.b16 %v1693, %v1689
        %v2074 = vpack.c.b16 %v1694, %v1690
        %v2075 = vpack.c.b16 %v1699, %v1695
        %v2076 = vpack.c.b16 %v1700, %v1696
        %v2077 = vpack.c.b16 %v1701, %v1697
        %v2078 = vpack.c.b16 %v1702, %v1698
        %v2079 = vpack.c.b16 %v1707, %v1703
        %v2080 = vpack.c.b16 %v1708, %v1704
        %v2081 = vpack.c.b16 %v1709, %v1705
        %v2082 = vpack.c.b16 %v1710, %v1706
        %v2083 = vpack.c.b16 %v1715, %v1711
        %v2084 = vpack.c.b16 %v1716, %v1712
        %v2085 = vpack.c.b16 %v1717, %v1713
        %v2086 = vpack.c.b16 %v1718, %v1714
        %v2087 = vpack.c.b16 %v1723, %v1719
        %v2088 = vpack.c.b16 %v1724, %v1720
        %v2089 = vpack.c.b16 %v1725, %v1721
        %v2090 = vpack.c.b16 %v1726, %v1722
        %v2091 = vpack.c.b16 %v1731, %v1727
        %v2092 = vpack.c.b16 %v1732, %v1728
        %v2093 = vpack.c.b16 %v1733, %v1729
        %v2094 = vpack.c.b16 %v1734, %v1730
        %v2095 = vpack.c.b16 %v1739, %v1735
        %v2096 = vpack.c.b16 %v1740, %v1736
        %v2097 = vpack.c.b16 %v1741, %v1737
        %v2098 = vpack.c.b16 %v1742, %v1738
        %v2099 = vpack.c.b16 %v1747, %v1743
        %v2100 = vpack.c.b16 %v1748, %v1744
        %v2101 = vpack.c.b16 %v1749, %v1745
        %v2102 = vpack.c.b16 %v1750, %v1746
        %v2103 = vpack.c.b16 %v1755, %v1751
        %v2104 = vpack.c.b16 %v1756, %v1752
        %v2105 = vpack.c.b16 %v1757, %v1753
        %v2106 = vpack.c.b16 %v1758, %v1754
        %v2107 = vpack.c.b16 %v1763, %v1759
        %v2108 = vpack.c.b16 %v1764, %v1760
        %v2109 = vpack.c.b16 %v1765, %v1761
        %v2110 = vpack.c.b16 %v1766, %v1762
        %v2111 = vpack.c.b16 %v1771, %v1767
        %v2112 = vpack.c.b16 %v1772, %v1768
        %v2113 = vpack.c.b16 %v1773, %v1769
        %v2114 = vpack.c.b16 %v1774, %v1770
        %v2115 = vpack.c.b16 %v1779, %v1775
        %v2116 = vpack.c.b16 %v1780, %v1776
        %v2117 = vpack.c.b16 %v1781, %v1777
        %v2118 = vpack.c.b16 %v1782, %v1778
        %v2119 = vpack.c.b16 %v1787, %v1783
        %v2120 = vpack.c.b16 %v1788, %v1784
        %v2121 = vpack.c.b16 %v1789, %v1785
        %v2122 = vpack.c.b16 %v1790, %v1786
        %v2123 = vpack.c.b16 %v1795, %v1791
        %v2124 = vpack.c.b16 %v1796, %v1792
        %v2125 = vpack.c.b16 %v1797, %v1793
        %v2126 = vpack.c.b16 %v1798, %v1794
        %v2127 = vpack.c.b16 %v1803, %v1799
        %v2128 = vpack.c.b16 %v1804, %v1800
        %v2129 = vpack.c.b16 %v1805, %v1801
        %v2130 = vpack.c.b16 %v1806, %v1802
        %v2131 = vpack.c.b16 %v1811, %v1807
        %v2132 = vpack.c.b16 %v1812, %v1808
        %v2133 = vpack.c.b16 %v1813, %v1809
        %v2134 = vpack.c.b16 %v1814, %v1810
        %v2135 = vpack.c.b16 %v1819, %v1815
        %v2136 = vpack.c.b16 %v1820, %v1816
        %v2137 = vpack.c.b16 %v1821, %v1817
        %v2138 = vpack.c.b16 %v1822, %v1818
        %v2139 = vpack.c.b16 %v1827, %v1823
        %v2140 = vpack.c.b16 %v1828, %v1824
        %v2141 = vpack.c.b16 %v1829, %v1825
        %v2142 = vpack.c.b16 %v1830, %v1826
        %v2143 = vpack.c.b16 %v1835, %v1831
        %v2144 = vpack.c.b16 %v1836, %v1832
        %v2145 = vpack.c.b16 %v1837, %v1833
        %v2146 = vpack.c.b16 %v1838, %v1834
        %v2147 = vpack.c.b16 %v1843, %v1839
        %v2148 = vpack.c.b16 %v1844, %v1840
        %v2149 = vpack.c.b16 %v1845, %v1841
        %v2150 = vpack.c.b16 %v1846, %v1842
        %v2151 = vpack.c.b16 %v1851, %v1847
        %v2152 = vpack.c.b16 %v1852, %v1848
        %v2153 = vpack.c.b16 %v1853, %v1849
        %v2154 = vpack.c.b16 %v1854, %v1850
        %v2155 = vpack.c.b16 %v1859, %v1855
        %v2156 = vpack.c.b16 %v1860, %v1856
        %v2157 = vpack.c.b16 %v1861, %v1857
        %v2158 = vpack.c.b16 %v1862, %v1858
        %v2159 = vpack.c.b16 %v1867, %v1863
        %v2160 = vpack.c.b16 %v1868, %v1864
        %v2161 = vpack.c.b16 %v1869, %v1865
        %v2162 = vpack.c.b16 %v1870, %v1866
        %v2163 = vpack.c.b16 %v1875, %v1871
        %v2164 = vpack.c.b16 %v1876, %v1872
        %v2165 = vpack.c.b16 %v1877, %v1873
        %v2166 = vpack.c.b16 %v1878, %v1874
        %v2167 = vpack.c.b16 %v1883, %v1879
        %v2168 = vpack.c.b16 %v1884, %v1880
        %v2169 = vpack.c.b16 %v1885, %v1881
        %v2170 = vpack.c.b16 %v1886, %v1882
        %v2171 = vpack.c.b16 %v1891, %v1887
        %v2172 = vpack.c.b16 %v1892, %v1888
        %v2173 = vpack.c.b16 %v1893, %v1889
        %v2174 = vpack.c.b16 %v1894, %v1890
        %v2175 = vpack.c.b16 %v1899, %v1895
        %v2176 = vpack.c.b16 %v1900, %v1896
        %v2177 = vpack.c.b16 %v1901, %v1897
        %v2178 = vpack.c.b16 %v1902, %v1898
        %v2179 = vpack.c.b16 %v1907, %v1903
        %v2180 = vpack.c.b16 %v1908, %v1904
        %v2181 = vpack.c.b16 %v1909, %v1905
        %v2182 = vpack.c.b16 %v1910, %v1906
        %v2183 = vpack.c.b16 %v1915, %v1911
        %v2184 = vpack.c.b16 %v1916, %v1912
        %v2185 = vpack.c.b16 %v1917, %v1913
        %v2186 = vpack.c.b16 %v1918, %v1914
        %v2187 = vpack.c.b16 %v1923, %v1919
        %v2188 = vpack.c.b16 %v1924, %v1920
        %v2189 = vpack.c.b16 %v1925, %v1921
        %v2190 = vpack.c.b16 %v1926, %v1922
        %v2191 = vpack.c.b16 %v1931, %v1927
        %v2192 = vpack.c.b16 %v1932, %v1928
        %v2193 = vpack.c.b16 %v1933, %v1929
        %v2194 = vpack.c.b16 %v1934, %v1930
        %v2195 = vpack.c.b16 %v1939, %v1935
        %v2196 = vpack.c.b16 %v1940, %v1936
        %v2197 = vpack.c.b16 %v1941, %v1937
        %v2198 = vpack.c.b16 %v1942, %v1938
        %2455 = vmatpush.bf16.msra.mxu0 %v1971
        %2456 = vmatpush.bf16.msra.mxu0 %v1967
        %2457 = vmatpush.bf16.msra.mxu0 %v1963
        %2458 = vmatpush.bf16.msra.mxu0 %v1959
        %2459 = vmatpush.bf16.msra.mxu0 %v1955
        %2460 = vmatpush.bf16.msra.mxu0 %v1951
        %2461 = vmatpush.bf16.msra.mxu0 %v1947
        %2462 = vmatpush.bf16.msra.mxu0 %v1943
        %2463 = vmatmul.bf16.gmra.mxu0 %v1159
        %v2464 = vpop.f32.mrf.mxu0
        %v2465 = vadd.f32 0.0, %v2464
        %v2466 = vpop.f32.mrf.mxu0
        %2467 = vdwg.mxu0
        %2468 = vmatpush.bf16.msra.mxu0 %v2003
        %2469 = vmatpush.bf16.msra.mxu0 %v1999
        %2470 = vmatpush.bf16.msra.mxu0 %v1995
        %2471 = vmatpush.bf16.msra.mxu0 %v1991
        %2472 = vmatpush.bf16.msra.mxu0 %v1987
        %2473 = vmatpush.bf16.msra.mxu0 %v1983
        %2474 = vmatpush.bf16.msra.mxu0 %v1979
        %2475 = vmatpush.bf16.msra.mxu0 %v1975
        %2476 = vmatmul.bf16.gmra.mxu0 %v1160
        %v2477 = vpop.f32.mrf.mxu0
        %v2478 = vadd.f32 %v2465, %v2477
        %v2479 = vpop.f32.mrf.mxu0
        %2480 = vdwg.mxu0
        %2481 = vmatpush.bf16.msra.mxu0 %v2035
        %2482 = vmatpush.bf16.msra.mxu0 %v2031
        %2483 = vmatpush.bf16.msra.mxu0 %v2027
        %2484 = vmatpush.bf16.msra.mxu0 %v2023
        %2485 = vmatpush.bf16.msra.mxu0 %v2019
        %2486 = vmatpush.bf16.msra.mxu0 %v2015
        %2487 = vmatpush.bf16.msra.mxu0 %v2011
        %2488 = vmatpush.bf16.msra.mxu0 %v2007
        %2489 = vmatmul.bf16.gmra.mxu0 %v1161
        %v2490 = vpop.f32.mrf.mxu0
        %v2491 = vadd.f32 %v2478, %v2490
        %v2492 = vpop.f32.mrf.mxu0
        %2493 = vdwg.mxu0
        %2494 = vmatpush.bf16.msra.mxu0 %v2067
        %2495 = vmatpush.bf16.msra.mxu0 %v2063
        %2496 = vmatpush.bf16.msra.mxu0 %v2059
        %2497 = vmatpush.bf16.msra.mxu0 %v2055
        %2498 = vmatpush.bf16.msra.mxu0 %v2051
        %2499 = vmatpush.bf16.msra.mxu0 %v2047
        %2500 = vmatpush.bf16.msra.mxu0 %v2043
        %2501 = vmatpush.bf16.msra.mxu0 %v2039
        %2502 = vmatmul.bf16.gmra.mxu0 %v1162
        %v2503 = vpop.f32.mrf.mxu0
        %v2504 = vadd.f32 %v2491, %v2503
        %v2505 = vpop.f32.mrf.mxu0
        %2506 = vdwg.mxu0
        %2507 = vmatpush.bf16.msra.mxu0 %v2099
        %2508 = vmatpush.bf16.msra.mxu0 %v2095
        %2509 = vmatpush.bf16.msra.mxu0 %v2091
        %2510 = vmatpush.bf16.msra.mxu0 %v2087
        %2511 = vmatpush.bf16.msra.mxu0 %v2083
        %2512 = vmatpush.bf16.msra.mxu0 %v2079
        %2513 = vmatpush.bf16.msra.mxu0 %v2075
        %2514 = vmatpush.bf16.msra.mxu0 %v2071
        %2515 = vmatmul.bf16.gmra.mxu0 %v1163
        %v2516 = vpop.f32.mrf.mxu0
        %v2517 = vadd.f32 %v2504, %v2516
        %v2518 = vpop.f32.mrf.mxu0
        %2519 = vdwg.mxu0
        %2520 = vmatpush.bf16.msra.mxu0 %v2131
        %2521 = vmatpush.bf16.msra.mxu0 %v2127
        %2522 = vmatpush.bf16.msra.mxu0 %v2123
        %2523 = vmatpush.bf16.msra.mxu0 %v2119
        %2524 = vmatpush.bf16.msra.mxu0 %v2115
        %2525 = vmatpush.bf16.msra.mxu0 %v2111
        %2526 = vmatpush.bf16.msra.mxu0 %v2107
        %2527 = vmatpush.bf16.msra.mxu0 %v2103
        %2528 = vmatmul.bf16.gmra.mxu0 %v1164
        %v2529 = vpop.f32.mrf.mxu0
        %v2530 = vadd.f32 %v2517, %v2529
        %v2531 = vpop.f32.mrf.mxu0
        %2532 = vdwg.mxu0
        %2533 = vmatpush.bf16.msra.mxu0 %v2163
        %2534 = vmatpush.bf16.msra.mxu0 %v2159
        %2535 = vmatpush.bf16.msra.mxu0 %v2155
        %2536 = vmatpush.bf16.msra.mxu0 %v2151
        %2537 = vmatpush.bf16.msra.mxu0 %v2147
        %2538 = vmatpush.bf16.msra.mxu0 %v2143
        %2539 = vmatpush.bf16.msra.mxu0 %v2139
        %2540 = vmatpush.bf16.msra.mxu0 %v2135
        %2541 = vmatmul.bf16.gmra.mxu0 %v1165
        %v2542 = vpop.f32.mrf.mxu0
        %v2543 = vadd.f32 %v2530, %v2542
        %v2544 = vpop.f32.mrf.mxu0
        %2545 = vdwg.mxu0
        %2546 = vmatpush.bf16.msra.mxu0 %v2195
        %2547 = vmatpush.bf16.msra.mxu0 %v2191
        %2548 = vmatpush.bf16.msra.mxu0 %v2187
        %2549 = vmatpush.bf16.msra.mxu0 %v2183
        %2550 = vmatpush.bf16.msra.mxu0 %v2179
        %2551 = vmatpush.bf16.msra.mxu0 %v2175
        %2552 = vmatpush.bf16.msra.mxu0 %v2171
        %2553 = vmatpush.bf16.msra.mxu0 %v2167
        %2554 = vmatmul.bf16.gmra.mxu0 %v1166
        %v2555 = vpop.f32.mrf.mxu0
        %v2556 = vadd.f32 %v2543, %v2555
        %v2557 = vpop.f32.mrf.mxu0
        %2558 = vdwg.mxu0
        %2559 = vmatpush.bf16.msra.mxu0 %v1972
        %2560 = vmatpush.bf16.msra.mxu0 %v1968
        %2561 = vmatpush.bf16.msra.mxu0 %v1964
        %2562 = vmatpush.bf16.msra.mxu0 %v1960
        %2563 = vmatpush.bf16.msra.mxu0 %v1956
        %2564 = vmatpush.bf16.msra.mxu0 %v1952
        %2565 = vmatpush.bf16.msra.mxu0 %v1948
        %2566 = vmatpush.bf16.msra.mxu0 %v1944
        %2567 = vmatmul.bf16.gmra.mxu0 %v1159
        %v2568 = vpop.f32.mrf.mxu0
        %v2569 = vadd.f32 0.0, %v2568
        %v2570 = vpop.f32.mrf.mxu0
        %2571 = vdwg.mxu0
        %2572 = vmatpush.bf16.msra.mxu0 %v2004
        %2573 = vmatpush.bf16.msra.mxu0 %v2000
        %2574 = vmatpush.bf16.msra.mxu0 %v1996
        %2575 = vmatpush.bf16.msra.mxu0 %v1992
        %2576 = vmatpush.bf16.msra.mxu0 %v1988
        %2577 = vmatpush.bf16.msra.mxu0 %v1984
        %2578 = vmatpush.bf16.msra.mxu0 %v1980
        %2579 = vmatpush.bf16.msra.mxu0 %v1976
        %2580 = vmatmul.bf16.gmra.mxu0 %v1160
        %v2581 = vpop.f32.mrf.mxu0
        %v2582 = vadd.f32 %v2569, %v2581
        %v2583 = vpop.f32.mrf.mxu0
        %2584 = vdwg.mxu0
        %2585 = vmatpush.bf16.msra.mxu0 %v2036
        %2586 = vmatpush.bf16.msra.mxu0 %v2032
        %2587 = vmatpush.bf16.msra.mxu0 %v2028
        %2588 = vmatpush.bf16.msra.mxu0 %v2024
        %2589 = vmatpush.bf16.msra.mxu0 %v2020
        %2590 = vmatpush.bf16.msra.mxu0 %v2016
        %2591 = vmatpush.bf16.msra.mxu0 %v2012
        %2592 = vmatpush.bf16.msra.mxu0 %v2008
        %2593 = vmatmul.bf16.gmra.mxu0 %v1161
        %v2594 = vpop.f32.mrf.mxu0
        %v2595 = vadd.f32 %v2582, %v2594
        %v2596 = vpop.f32.mrf.mxu0
        %2597 = vdwg.mxu0
        %2598 = vmatpush.bf16.msra.mxu0 %v2068
        %2599 = vmatpush.bf16.msra.mxu0 %v2064
        %2600 = vmatpush.bf16.msra.mxu0 %v2060
        %2601 = vmatpush.bf16.msra.mxu0 %v2056
        %2602 = vmatpush.bf16.msra.mxu0 %v2052
        %2603 = vmatpush.bf16.msra.mxu0 %v2048
        %2604 = vmatpush.bf16.msra.mxu0 %v2044
        %2605 = vmatpush.bf16.msra.mxu0 %v2040
        %2606 = vmatmul.bf16.gmra.mxu0 %v1162
        %v2607 = vpop.f32.mrf.mxu0
        %v2608 = vadd.f32 %v2595, %v2607
        %v2609 = vpop.f32.mrf.mxu0
        %2610 = vdwg.mxu0
        %2611 = vmatpush.bf16.msra.mxu0 %v2100
        %2612 = vmatpush.bf16.msra.mxu0 %v2096
        %2613 = vmatpush.bf16.msra.mxu0 %v2092
        %2614 = vmatpush.bf16.msra.mxu0 %v2088
        %2615 = vmatpush.bf16.msra.mxu0 %v2084
        %2616 = vmatpush.bf16.msra.mxu0 %v2080
        %2617 = vmatpush.bf16.msra.mxu0 %v2076
        %2618 = vmatpush.bf16.msra.mxu0 %v2072
        %2619 = vmatmul.bf16.gmra.mxu0 %v1163
        %v2620 = vpop.f32.mrf.mxu0
        %v2621 = vadd.f32 %v2608, %v2620
        %v2622 = vpop.f32.mrf.mxu0
        %2623 = vdwg.mxu0
        %2624 = vmatpush.bf16.msra.mxu0 %v2132
        %2625 = vmatpush.bf16.msra.mxu0 %v2128
        %2626 = vmatpush.bf16.msra.mxu0 %v2124
        %2627 = vmatpush.bf16.msra.mxu0 %v2120
        %2628 = vmatpush.bf16.msra.mxu0 %v2116
        %2629 = vmatpush.bf16.msra.mxu0 %v2112
        %2630 = vmatpush.bf16.msra.mxu0 %v2108
        %2631 = vmatpush.bf16.msra.mxu0 %v2104
        %2632 = vmatmul.bf16.gmra.mxu0 %v1164
        %v2633 = vpop.f32.mrf.mxu0
        %v2634 = vadd.f32 %v2621, %v2633
        %v2635 = vpop.f32.mrf.mxu0
        %2636 = vdwg.mxu0
        %2637 = vmatpush.bf16.msra.mxu0 %v2164
        %2638 = vmatpush.bf16.msra.mxu0 %v2160
        %2639 = vmatpush.bf16.msra.mxu0 %v2156
        %2640 = vmatpush.bf16.msra.mxu0 %v2152
        %2641 = vmatpush.bf16.msra.mxu0 %v2148
        %2642 = vmatpush.bf16.msra.mxu0 %v2144
        %2643 = vmatpush.bf16.msra.mxu0 %v2140
        %2644 = vmatpush.bf16.msra.mxu0 %v2136
        %2645 = vmatmul.bf16.gmra.mxu0 %v1165
        %v2646 = vpop.f32.mrf.mxu0
        %v2647 = vadd.f32 %v2634, %v2646
        %v2648 = vpop.f32.mrf.mxu0
        %2649 = vdwg.mxu0
        %2650 = vmatpush.bf16.msra.mxu0 %v2196
        %2651 = vmatpush.bf16.msra.mxu0 %v2192
        %2652 = vmatpush.bf16.msra.mxu0 %v2188
        %2653 = vmatpush.bf16.msra.mxu0 %v2184
        %2654 = vmatpush.bf16.msra.mxu0 %v2180
        %2655 = vmatpush.bf16.msra.mxu0 %v2176
        %2656 = vmatpush.bf16.msra.mxu0 %v2172
        %2657 = vmatpush.bf16.msra.mxu0 %v2168
        %2658 = vmatmul.bf16.gmra.mxu0 %v1166
        %v2659 = vpop.f32.mrf.mxu0
        %v2660 = vadd.f32 %v2647, %v2659
        %v2661 = vpop.f32.mrf.mxu0
        %2662 = vdwg.mxu0
        %2663 = vmatpush.bf16.msra.mxu0 %v1973
        %2664 = vmatpush.bf16.msra.mxu0 %v1969
        %2665 = vmatpush.bf16.msra.mxu0 %v1965
        %2666 = vmatpush.bf16.msra.mxu0 %v1961
        %2667 = vmatpush.bf16.msra.mxu0 %v1957
        %2668 = vmatpush.bf16.msra.mxu0 %v1953
        %2669 = vmatpush.bf16.msra.mxu0 %v1949
        %2670 = vmatpush.bf16.msra.mxu0 %v1945
        %2671 = vmatmul.bf16.gmra.mxu0 %v1159
        %v2672 = vpop.f32.mrf.mxu0
        %v2673 = vadd.f32 0.0, %v2672
        %v2674 = vpop.f32.mrf.mxu0
        %2675 = vdwg.mxu0
        %2676 = vmatpush.bf16.msra.mxu0 %v2005
        %2677 = vmatpush.bf16.msra.mxu0 %v2001
        %2678 = vmatpush.bf16.msra.mxu0 %v1997
        %2679 = vmatpush.bf16.msra.mxu0 %v1993
        %2680 = vmatpush.bf16.msra.mxu0 %v1989
        %2681 = vmatpush.bf16.msra.mxu0 %v1985
        %2682 = vmatpush.bf16.msra.mxu0 %v1981
        %2683 = vmatpush.bf16.msra.mxu0 %v1977
        %2684 = vmatmul.bf16.gmra.mxu0 %v1160
        %v2685 = vpop.f32.mrf.mxu0
        %v2686 = vadd.f32 %v2673, %v2685
        %v2687 = vpop.f32.mrf.mxu0
        %2688 = vdwg.mxu0
        %2689 = vmatpush.bf16.msra.mxu0 %v2037
        %2690 = vmatpush.bf16.msra.mxu0 %v2033
        %2691 = vmatpush.bf16.msra.mxu0 %v2029
        %2692 = vmatpush.bf16.msra.mxu0 %v2025
        %2693 = vmatpush.bf16.msra.mxu0 %v2021
        %2694 = vmatpush.bf16.msra.mxu0 %v2017
        %2695 = vmatpush.bf16.msra.mxu0 %v2013
        %2696 = vmatpush.bf16.msra.mxu0 %v2009
        %2697 = vmatmul.bf16.gmra.mxu0 %v1161
        %v2698 = vpop.f32.mrf.mxu0
        %v2699 = vadd.f32 %v2686, %v2698
        %v2700 = vpop.f32.mrf.mxu0
        %2701 = vdwg.mxu0
        %2702 = vmatpush.bf16.msra.mxu0 %v2069
        %2703 = vmatpush.bf16.msra.mxu0 %v2065
        %2704 = vmatpush.bf16.msra.mxu0 %v2061
        %2705 = vmatpush.bf16.msra.mxu0 %v2057
        %2706 = vmatpush.bf16.msra.mxu0 %v2053
        %2707 = vmatpush.bf16.msra.mxu0 %v2049
        %2708 = vmatpush.bf16.msra.mxu0 %v2045
        %2709 = vmatpush.bf16.msra.mxu0 %v2041
        %2710 = vmatmul.bf16.gmra.mxu0 %v1162
        %v2711 = vpop.f32.mrf.mxu0
        %v2712 = vadd.f32 %v2699, %v2711
        %v2713 = vpop.f32.mrf.mxu0
        %2714 = vdwg.mxu0
        %2715 = vmatpush.bf16.msra.mxu0 %v2101
        %2716 = vmatpush.bf16.msra.mxu0 %v2097
        %2717 = vmatpush.bf16.msra.mxu0 %v2093
        %2718 = vmatpush.bf16.msra.mxu0 %v2089
        %2719 = vmatpush.bf16.msra.mxu0 %v2085
        %2720 = vmatpush.bf16.msra.mxu0 %v2081
        %2721 = vmatpush.bf16.msra.mxu0 %v2077
        %2722 = vmatpush.bf16.msra.mxu0 %v2073
        %2723 = vmatmul.bf16.gmra.mxu0 %v1163
        %v2724 = vpop.f32.mrf.mxu0
        %v2725 = vadd.f32 %v2712, %v2724
        %v2726 = vpop.f32.mrf.mxu0
        %2727 = vdwg.mxu0
        %2728 = vmatpush.bf16.msra.mxu0 %v2133
        %2729 = vmatpush.bf16.msra.mxu0 %v2129
        %2730 = vmatpush.bf16.msra.mxu0 %v2125
        %2731 = vmatpush.bf16.msra.mxu0 %v2121
        %2732 = vmatpush.bf16.msra.mxu0 %v2117
        %2733 = vmatpush.bf16.msra.mxu0 %v2113
        %2734 = vmatpush.bf16.msra.mxu0 %v2109
        %2735 = vmatpush.bf16.msra.mxu0 %v2105
        %2736 = vmatmul.bf16.gmra.mxu0 %v1164
        %v2737 = vpop.f32.mrf.mxu0
        %v2738 = vadd.f32 %v2725, %v2737
        %v2739 = vpop.f32.mrf.mxu0
        %2740 = vdwg.mxu0
        %2741 = vmatpush.bf16.msra.mxu0 %v2165
        %2742 = vmatpush.bf16.msra.mxu0 %v2161
        %2743 = vmatpush.bf16.msra.mxu0 %v2157
        %2744 = vmatpush.bf16.msra.mxu0 %v2153
        %2745 = vmatpush.bf16.msra.mxu0 %v2149
        %2746 = vmatpush.bf16.msra.mxu0 %v2145
        %2747 = vmatpush.bf16.msra.mxu0 %v2141
        %2748 = vmatpush.bf16.msra.mxu0 %v2137
        %2749 = vmatmul.bf16.gmra.mxu0 %v1165
        %v2750 = vpop.f32.mrf.mxu0
        %v2751 = vadd.f32 %v2738, %v2750
        %v2752 = vpop.f32.mrf.mxu0
        %2753 = vdwg.mxu0
        %2754 = vmatpush.bf16.msra.mxu0 %v2197
        %2755 = vmatpush.bf16.msra.mxu0 %v2193
        %2756 = vmatpush.bf16.msra.mxu0 %v2189
        %2757 = vmatpush.bf16.msra.mxu0 %v2185
        %2758 = vmatpush.bf16.msra.mxu0 %v2181
        %2759 = vmatpush.bf16.msra.mxu0 %v2177
        %2760 = vmatpush.bf16.msra.mxu0 %v2173
        %2761 = vmatpush.bf16.msra.mxu0 %v2169
        %2762 = vmatmul.bf16.gmra.mxu0 %v1166
        %v2763 = vpop.f32.mrf.mxu0
        %v2764 = vadd.f32 %v2751, %v2763
        %v2765 = vpop.f32.mrf.mxu0
        %2766 = vdwg.mxu0
        %2767 = vmatpush.bf16.msra.mxu0 %v1974
        %2768 = vmatpush.bf16.msra.mxu0 %v1970
        %2769 = vmatpush.bf16.msra.mxu0 %v1966
        %2770 = vmatpush.bf16.msra.mxu0 %v1962
        %2771 = vmatpush.bf16.msra.mxu0 %v1958
        %2772 = vmatpush.bf16.msra.mxu0 %v1954
        %2773 = vmatpush.bf16.msra.mxu0 %v1950
        %2774 = vmatpush.bf16.msra.mxu0 %v1946
        %2775 = vmatmul.bf16.gmra.mxu0 %v1159
        %v2776 = vpop.f32.mrf.mxu0
        %v2777 = vadd.f32 0.0, %v2776
        %v2778 = vpop.f32.mrf.mxu0
        %2779 = vdwg.mxu0
        %2780 = vmatpush.bf16.msra.mxu0 %v2006
        %2781 = vmatpush.bf16.msra.mxu0 %v2002
        %2782 = vmatpush.bf16.msra.mxu0 %v1998
        %2783 = vmatpush.bf16.msra.mxu0 %v1994
        %2784 = vmatpush.bf16.msra.mxu0 %v1990
        %2785 = vmatpush.bf16.msra.mxu0 %v1986
        %2786 = vmatpush.bf16.msra.mxu0 %v1982
        %2787 = vmatpush.bf16.msra.mxu0 %v1978
        %2788 = vmatmul.bf16.gmra.mxu0 %v1160
        %v2789 = vpop.f32.mrf.mxu0
        %v2790 = vadd.f32 %v2777, %v2789
        %v2791 = vpop.f32.mrf.mxu0
        %2792 = vdwg.mxu0
        %2793 = vmatpush.bf16.msra.mxu0 %v2038
        %2794 = vmatpush.bf16.msra.mxu0 %v2034
        %2795 = vmatpush.bf16.msra.mxu0 %v2030
        %2796 = vmatpush.bf16.msra.mxu0 %v2026
        %2797 = vmatpush.bf16.msra.mxu0 %v2022
        %2798 = vmatpush.bf16.msra.mxu0 %v2018
        %2799 = vmatpush.bf16.msra.mxu0 %v2014
        %2800 = vmatpush.bf16.msra.mxu0 %v2010
        %2801 = vmatmul.bf16.gmra.mxu0 %v1161
        %v2802 = vpop.f32.mrf.mxu0
        %v2803 = vadd.f32 %v2790, %v2802
        %v2804 = vpop.f32.mrf.mxu0
        %2805 = vdwg.mxu0
        %2806 = vmatpush.bf16.msra.mxu0 %v2070
        %2807 = vmatpush.bf16.msra.mxu0 %v2066
        %2808 = vmatpush.bf16.msra.mxu0 %v2062
        %2809 = vmatpush.bf16.msra.mxu0 %v2058
        %2810 = vmatpush.bf16.msra.mxu0 %v2054
        %2811 = vmatpush.bf16.msra.mxu0 %v2050
        %2812 = vmatpush.bf16.msra.mxu0 %v2046
        %2813 = vmatpush.bf16.msra.mxu0 %v2042
        %2814 = vmatmul.bf16.gmra.mxu0 %v1162
        %v2815 = vpop.f32.mrf.mxu0
        %v2816 = vadd.f32 %v2803, %v2815
        %v2817 = vpop.f32.mrf.mxu0
        %2818 = vdwg.mxu0
        %2819 = vmatpush.bf16.msra.mxu0 %v2102
        %2820 = vmatpush.bf16.msra.mxu0 %v2098
        %2821 = vmatpush.bf16.msra.mxu0 %v2094
        %2822 = vmatpush.bf16.msra.mxu0 %v2090
        %2823 = vmatpush.bf16.msra.mxu0 %v2086
        %2824 = vmatpush.bf16.msra.mxu0 %v2082
        %2825 = vmatpush.bf16.msra.mxu0 %v2078
        %2826 = vmatpush.bf16.msra.mxu0 %v2074
        %2827 = vmatmul.bf16.gmra.mxu0 %v1163
        %v2828 = vpop.f32.mrf.mxu0
        %v2829 = vadd.f32 %v2816, %v2828
        %v2830 = vpop.f32.mrf.mxu0
        %2831 = vdwg.mxu0
        %2832 = vmatpush.bf16.msra.mxu0 %v2134
        %2833 = vmatpush.bf16.msra.mxu0 %v2130
        %2834 = vmatpush.bf16.msra.mxu0 %v2126
        %2835 = vmatpush.bf16.msra.mxu0 %v2122
        %2836 = vmatpush.bf16.msra.mxu0 %v2118
        %2837 = vmatpush.bf16.msra.mxu0 %v2114
        %2838 = vmatpush.bf16.msra.mxu0 %v2110
        %2839 = vmatpush.bf16.msra.mxu0 %v2106
        %2840 = vmatmul.bf16.gmra.mxu0 %v1164
        %v2841 = vpop.f32.mrf.mxu0
        %v2842 = vadd.f32 %v2829, %v2841
        %v2843 = vpop.f32.mrf.mxu0
        %2844 = vdwg.mxu0
        %2845 = vmatpush.bf16.msra.mxu0 %v2166
        %2846 = vmatpush.bf16.msra.mxu0 %v2162
        %2847 = vmatpush.bf16.msra.mxu0 %v2158
        %2848 = vmatpush.bf16.msra.mxu0 %v2154
        %2849 = vmatpush.bf16.msra.mxu0 %v2150
        %2850 = vmatpush.bf16.msra.mxu0 %v2146
        %2851 = vmatpush.bf16.msra.mxu0 %v2142
        %2852 = vmatpush.bf16.msra.mxu0 %v2138
        %2853 = vmatmul.bf16.gmra.mxu0 %v1165
        %v2854 = vpop.f32.mrf.mxu0
        %v2855 = vadd.f32 %v2842, %v2854
        %v2856 = vpop.f32.mrf.mxu0
        %2857 = vdwg.mxu0
        %2858 = vmatpush.bf16.msra.mxu0 %v2198
        %2859 = vmatpush.bf16.msra.mxu0 %v2194
        %2860 = vmatpush.bf16.msra.mxu0 %v2190
        %2861 = vmatpush.bf16.msra.mxu0 %v2186
        %2862 = vmatpush.bf16.msra.mxu0 %v2182
        %2863 = vmatpush.bf16.msra.mxu0 %v2178
        %2864 = vmatpush.bf16.msra.mxu0 %v2174
        %2865 = vmatpush.bf16.msra.mxu0 %v2170
        %2866 = vmatmul.bf16.gmra.mxu0 %v1166
        %v2867 = vpop.f32.mrf.mxu0
        %v2868 = vadd.f32 %v2855, %v2867
        %v2869 = vpop.f32.mrf.mxu0
        %2870 = vdwg.mxu0
        %v2871 = vadd.f32 %v883, %v2556
        %v2872 = vadd.f32 %v884, %v2660
        %v2873 = vadd.f32 %v885, %v2764
        %v2874 = vadd.f32 %v886, %v2868
        %2875 = vst [vmem:[#allocation2] sm:$0xff] %v2871
        %2876 = vst [vmem:[#allocation2 + $0x8] sm:$0xff] %v2872
        %2877 = vst [vmem:[#allocation2 + $0x10] sm:$0xff] %v2873
        %2878 = vst [vmem:[#allocation2 + $0x18] sm:$0xff] %v2874
        %p2879 = scmp.eq.s32.totalorder %s42, 2
        // Predicated region
        $region169: #{six_layer_mlp.1} parent=95 // pred_check
          %p2880 = pneg %p2879
        $region170: #{six_layer_mlp.1} parent=95 // pred_check_branch
          %2882 = sbr.rel (%p2880) target = $region172
        $region171: #{six_layer_mlp.1} parent=95 // pred_region
          %v2883 = vld [vmem:[#allocation2] sm:$0xff]
          %v2884 = vld [vmem:[#allocation2 + $0x8] sm:$0xff]
          %v2885 = vld [vmem:[#allocation2 + $0x10] sm:$0xff]
          %v2886 = vld [vmem:[#allocation2 + $0x18] sm:$0xff]
          %v2887 = vld [vmem:[#allocation6] sm:$0xf]
          %v2889 = vperm.slane %v2887, 0
          %v2890 = vperm.slane %v2887, 1
          %v2891 = vperm.slane %v2887, 2
          %v2892 = vperm.slane %v2887, 3
          %v2897 = vadd.f32 %v2883, %v2889
          %v2898 = vadd.f32 %v2884, %v2890
          %v2899 = vadd.f32 %v2885, %v2891
          %v2900 = vadd.f32 %v2886, %v2892
          %v2901 = vmax.f32 %v2897, 0.0
          %v2902 = vmax.f32 %v2898, 0.0
          %v2903 = vmax.f32 %v2899, 0.0
          %v2904 = vmax.f32 %v2900, 0.0
          %v2905 = vrot.slane %v2901, 4
          %v2906 = vadd.f32 %v2901, %v2905
          %v2907 = vrot.slane %v2906, 2
          %v2908 = vadd.f32 %v2906, %v2907
          %v2909 = vrot.slane %v2908, 1
          %v2910 = vadd.f32 %v2908, %v2909
          %v2911 = vrot.slane %v2902, 4
          %v2912 = vadd.f32 %v2902, %v2911
          %v2913 = vrot.slane %v2912, 2
          %v2914 = vadd.f32 %v2912, %v2913
          %v2915 = vrot.slane %v2914, 1
          %v2916 = vadd.f32 %v2914, %v2915
          %v2917 = vrot.slane %v2903, 4
          %v2918 = vadd.f32 %v2903, %v2917
          %v2919 = vrot.slane %v2918, 2
          %v2920 = vadd.f32 %v2918, %v2919
          %v2921 = vrot.slane %v2920, 1
          %v2922 = vadd.f32 %v2920, %v2921
          %v2923 = vrot.slane %v2904, 4
          %v2924 = vadd.f32 %v2904, %v2923
          %v2925 = vrot.slane %v2924, 2
          %v2926 = vadd.f32 %v2924, %v2925
          %v2927 = vrot.slane %v2926, 1
          %v2928 = vadd.f32 %v2926, %v2927
          %v2929 = vrcp.pop 8.0
          %v2930 = vmul.f32 8.0, %v2929
          %v2931 = vsub.f32 1.0, %v2930
          %v2932 = vmul.f32 %v2929, %v2931
          %v2933 = vadd.f32 %v2929, %v2932
          %vm2934 = vweird.f32 %v2929
          %v2935 = vsel %vm2934, %v2929, %v2933
          %v2936 = vmul.f32 %v2910, %v2935
          %v2937 = vmul.f32 %v2916, %v2935
          %v2938 = vmul.f32 %v2922, %v2935
          %v2939 = vmul.f32 %v2928, %v2935
          %v2940 = vsub.f32 %v2901, %v2936
          %v2941 = vsub.f32 %v2902, %v2937
          %v2942 = vsub.f32 %v2903, %v2938
          %v2943 = vsub.f32 %v2904, %v2939
          %v2944 = vmul.f32 %v2940, %v2940
          %v2945 = vmul.f32 %v2941, %v2941
          %v2946 = vmul.f32 %v2942, %v2942
          %v2947 = vmul.f32 %v2943, %v2943
          %v2948 = vrot.slane %v2944, 4
          %v2949 = vadd.f32 %v2944, %v2948
          %v2950 = vrot.slane %v2949, 2
          %v2951 = vadd.f32 %v2949, %v2950
          %v2952 = vrot.slane %v2951, 1
          %v2953 = vadd.f32 %v2951, %v2952
          %v2954 = vrot.slane %v2945, 4
          %v2955 = vadd.f32 %v2945, %v2954
          %v2956 = vrot.slane %v2955, 2
          %v2957 = vadd.f32 %v2955, %v2956
          %v2958 = vrot.slane %v2957, 1
          %v2959 = vadd.f32 %v2957, %v2958
          %v2960 = vrot.slane %v2946, 4
          %v2961 = vadd.f32 %v2946, %v2960
          %v2962 = vrot.slane %v2961, 2
          %v2963 = vadd.f32 %v2961, %v2962
          %v2964 = vrot.slane %v2963, 1
          %v2965 = vadd.f32 %v2963, %v2964
          %v2966 = vrot.slane %v2947, 4
          %v2967 = vadd.f32 %v2947, %v2966
          %v2968 = vrot.slane %v2967, 2
          %v2969 = vadd.f32 %v2967, %v2968
          %v2970 = vrot.slane %v2969, 1
          %v2971 = vadd.f32 %v2969, %v2970
          %v2972 = vmul.f32 %v2953, %v2935
          %v2973 = vmul.f32 %v2959, %v2935
          %v2974 = vmul.f32 %v2965, %v2935
          %v2975 = vmul.f32 %v2971, %v2935
          %v2976 = vadd.f32 %v2972, 1e-05
          %v2977 = vadd.f32 %v2973, 1e-05
          %v2978 = vadd.f32 %v2974, 1e-05
          %v2979 = vadd.f32 %v2975, 1e-05
          %v2980 = vrsqrt.pop %v2976
          %v2981 = vmul.f32 %v2980, %v2976
          %v2982 = vmul.f32 %v2981, %v2980
          %v2983 = vmul.f32 0.5, %v2982
          %v2984 = vsub.f32 1.5, %v2983
          %v2985 = vmul.f32 %v2980, %v2984
          %vm2986 = vweird.f32 %v2976
          %vm2987 = vweird.f32 %v2980
          %vm2988 = vmor %vm2986, %vm2987
          %v2989 = vsel %vm2988, %v2980, %v2985
          %v2990 = vrsqrt.pop %v2977
          %v2991 = vmul.f32 %v2990, %v2977
          %v2992 = vmul.f32 %v2991, %v2990
          %v2993 = vmul.f32 0.5, %v2992
          %v2994 = vsub.f32 1.5, %v2993
          %v2995 = vmul.f32 %v2990, %v2994
          %vm2996 = vweird.f32 %v2977
          %vm2997 = vweird.f32 %v2990
          %vm2998 = vmor %vm2996, %vm2997
          %v2999 = vsel %vm2998, %v2990, %v2995
          %v3000 = vrsqrt.pop %v2978
          %v3001 = vmul.f32 %v3000, %v2978
          %v3002 = vmul.f32 %v3001, %v3000
          %v3003 = vmul.f32 0.5, %v3002
          %v3004 = vsub.f32 1.5, %v3003
          %v3005 = vmul.f32 %v3000, %v3004
          %vm3006 = vweird.f32 %v2978
          %vm3007 = vweird.f32 %v3000
          %vm3008 = vmor %vm3006, %vm3007
          %v3009 = vsel %vm3008, %v3000, %v3005
          %v3010 = vrsqrt.pop %v2979
          %v3011 = vmul.f32 %v3010, %v2979
          %v3012 = vmul.f32 %v3011, %v3010
          %v3013 = vmul.f32 0.5, %v3012
          %v3014 = vsub.f32 1.5, %v3013
          %v3015 = vmul.f32 %v3010, %v3014
          %vm3016 = vweird.f32 %v2979
          %vm3017 = vweird.f32 %v3010
          %vm3018 = vmor %vm3016, %vm3017
          %v3019 = vsel %vm3018, %v3010, %v3015
          %v3020 = vld [vmem:[#allocation21] sm:$0xf]
          %v3022 = vperm.slane %v3020, 0
          %v3023 = vperm.slane %v3020, 1
          %v3024 = vperm.slane %v3020, 2
          %v3025 = vperm.slane %v3020, 3
          %v3030 = vmul.f32 %v2989, %v3022
          %v3031 = vmul.f32 %v2999, %v3023
          %v3032 = vmul.f32 %v3009, %v3024
          %v3033 = vmul.f32 %v3019, %v3025
          %v3034 = vperm.slane %v3030, 0
          %v3035 = vperm.slane %v3031, 0
          %v3036 = vperm.slane %v3032, 0
          %v3037 = vperm.slane %v3033, 0
          %v3038 = vmul.f32 %v2940, %v3034
          %v3039 = vmul.f32 %v2941, %v3035
          %v3040 = vmul.f32 %v2942, %v3036
          %v3041 = vmul.f32 %v2943, %v3037
          %v3042 = vld [vmem:[#allocation23] sm:$0xf]
          %v3044 = vperm.slane %v3042, 0
          %v3045 = vperm.slane %v3042, 1
          %v3046 = vperm.slane %v3042, 2
          %v3047 = vperm.slane %v3042, 3
          %v3052 = vadd.f32 %v3038, %v3044
          %v3053 = vadd.f32 %v3039, %v3045
          %v3054 = vadd.f32 %v3040, %v3046
          %v3055 = vadd.f32 %v3041, %v3047
          %v3056 = vpack.c.bf16 %v3052, %v3052
          %v3057 = vpack.c.bf16 %v3053, %v3053
          %v3058 = vpack.c.bf16 %v3054, %v3054
          %v3059 = vpack.c.bf16 %v3055, %v3055
          %v3060 = vld [vmem:[#allocation8] sm:$0xff]
          %v3061 = vld [vmem:[#allocation8 + $0x8] sm:$0xff]
          %v3062 = vld [vmem:[#allocation8 + $0x10] sm:$0xff]
          %v3063 = vld [vmem:[#allocation8 + $0x18] sm:$0xff]
          %v3064 = vld [vmem:[#allocation8 + $0x20] sm:$0xff]
          %v3065 = vld [vmem:[#allocation8 + $0x28] sm:$0xff]
          %v3066 = vld [vmem:[#allocation8 + $0x30] sm:$0xff]
          %v3067 = vld [vmem:[#allocation8 + $0x38] sm:$0xff]
          %v3068 = vld [vmem:[#allocation8 + $0x40] sm:$0xff]
          %v3069 = vld [vmem:[#allocation8 + $0x48] sm:$0xff]
          %v3070 = vld [vmem:[#allocation8 + $0x50] sm:$0xff]
          %v3071 = vld [vmem:[#allocation8 + $0x58] sm:$0xff]
          %v3072 = vld [vmem:[#allocation8 + $0x60] sm:$0xff]
          %v3073 = vld [vmem:[#allocation8 + $0x68] sm:$0xff]
          %v3074 = vld [vmem:[#allocation8 + $0x70] sm:$0xff]
          %v3075 = vld [vmem:[#allocation8 + $0x78] sm:$0xff]
          %v3076 = vld [vmem:[#allocation8 + $0x80] sm:$0xff]
          %v3077 = vld [vmem:[#allocation8 + $0x88] sm:$0xff]
          %v3078 = vld [vmem:[#allocation8 + $0x90] sm:$0xff]
          %v3079 = vld [vmem:[#allocation8 + $0x98] sm:$0xff]
          %v3080 = vld [vmem:[#allocation8 + $0xa0] sm:$0xff]
          %v3081 = vld [vmem:[#allocation8 + $0xa8] sm:$0xff]
          %v3082 = vld [vmem:[#allocation8 + $0xb0] sm:$0xff]
          %v3083 = vld [vmem:[#allocation8 + $0xb8] sm:$0xff]
          %v3084 = vld [vmem:[#allocation8 + $0xc0] sm:$0xff]
          %v3085 = vld [vmem:[#allocation8 + $0xc8] sm:$0xff]
          %v3086 = vld [vmem:[#allocation8 + $0xd0] sm:$0xff]
          %v3087 = vld [vmem:[#allocation8 + $0xd8] sm:$0xff]
          %v3088 = vld [vmem:[#allocation8 + $0xe0] sm:$0xff]
          %v3089 = vld [vmem:[#allocation8 + $0xe8] sm:$0xff]
          %v3090 = vld [vmem:[#allocation8 + $0xf0] sm:$0xff]
          %v3091 = vld [vmem:[#allocation8 + $0xf8] sm:$0xff]
          %v3092 = vld [vmem:[#allocation8 + $0x100] sm:$0xff]
          %v3093 = vld [vmem:[#allocation8 + $0x108] sm:$0xff]
          %v3094 = vld [vmem:[#allocation8 + $0x110] sm:$0xff]
          %v3095 = vld [vmem:[#allocation8 + $0x118] sm:$0xff]
          %v3096 = vld [vmem:[#allocation8 + $0x120] sm:$0xff]
          %v3097 = vld [vmem:[#allocation8 + $0x128] sm:$0xff]
          %v3098 = vld [vmem:[#allocation8 + $0x130] sm:$0xff]
          %v3099 = vld [vmem:[#allocation8 + $0x138] sm:$0xff]
          %v3100 = vld [vmem:[#allocation8 + $0x140] sm:$0xff]
          %v3101 = vld [vmem:[#allocation8 + $0x148] sm:$0xff]
          %v3102 = vld [vmem:[#allocation8 + $0x150] sm:$0xff]
          %v3103 = vld [vmem:[#allocation8 + $0x158] sm:$0xff]
          %v3104 = vld [vmem:[#allocation8 + $0x160] sm:$0xff]
          %v3105 = vld [vmem:[#allocation8 + $0x168] sm:$0xff]
          %v3106 = vld [vmem:[#allocation8 + $0x170] sm:$0xff]
          %v3107 = vld [vmem:[#allocation8 + $0x178] sm:$0xff]
          %v3108 = vld [vmem:[#allocation8 + $0x180] sm:$0xff]
          %v3109 = vld [vmem:[#allocation8 + $0x188] sm:$0xff]
          %v3110 = vld [vmem:[#allocation8 + $0x190] sm:$0xff]
          %v3111 = vld [vmem:[#allocation8 + $0x198] sm:$0xff]
          %v3112 = vld [vmem:[#allocation8 + $0x1a0] sm:$0xff]
          %v3113 = vld [vmem:[#allocation8 + $0x1a8] sm:$0xff]
          %v3114 = vld [vmem:[#allocation8 + $0x1b0] sm:$0xff]
          %v3115 = vld [vmem:[#allocation8 + $0x1b8] sm:$0xff]
          %v3116 = vld [vmem:[#allocation8 + $0x1c0] sm:$0xff]
          %v3117 = vld [vmem:[#allocation8 + $0x1c8] sm:$0xff]
          %v3118 = vld [vmem:[#allocation8 + $0x1d0] sm:$0xff]
          %v3119 = vld [vmem:[#allocation8 + $0x1d8] sm:$0xff]
          %v3120 = vld [vmem:[#allocation8 + $0x1e0] sm:$0xff]
          %v3121 = vld [vmem:[#allocation8 + $0x1e8] sm:$0xff]
          %v3122 = vld [vmem:[#allocation8 + $0x1f0] sm:$0xff]
          %v3123 = vld [vmem:[#allocation8 + $0x1f8] sm:$0xff]
          %v3124 = vld [vmem:[#allocation8 + $0x200] sm:$0xff]
          %v3125 = vld [vmem:[#allocation8 + $0x208] sm:$0xff]
          %v3126 = vld [vmem:[#allocation8 + $0x210] sm:$0xff]
          %v3127 = vld [vmem:[#allocation8 + $0x218] sm:$0xff]
          %v3128 = vld [vmem:[#allocation8 + $0x220] sm:$0xff]
          %v3129 = vld [vmem:[#allocation8 + $0x228] sm:$0xff]
          %v3130 = vld [vmem:[#allocation8 + $0x230] sm:$0xff]
          %v3131 = vld [vmem:[#allocation8 + $0x238] sm:$0xff]
          %v3132 = vld [vmem:[#allocation8 + $0x240] sm:$0xff]
          %v3133 = vld [vmem:[#allocation8 + $0x248] sm:$0xff]
          %v3134 = vld [vmem:[#allocation8 + $0x250] sm:$0xff]
          %v3135 = vld [vmem:[#allocation8 + $0x258] sm:$0xff]
          %v3136 = vld [vmem:[#allocation8 + $0x260] sm:$0xff]
          %v3137 = vld [vmem:[#allocation8 + $0x268] sm:$0xff]
          %v3138 = vld [vmem:[#allocation8 + $0x270] sm:$0xff]
          %v3139 = vld [vmem:[#allocation8 + $0x278] sm:$0xff]
          %v3140 = vld [vmem:[#allocation8 + $0x280] sm:$0xff]
          %v3141 = vld [vmem:[#allocation8 + $0x288] sm:$0xff]
          %v3142 = vld [vmem:[#allocation8 + $0x290] sm:$0xff]
          %v3143 = vld [vmem:[#allocation8 + $0x298] sm:$0xff]
          %v3144 = vld [vmem:[#allocation8 + $0x2a0] sm:$0xff]
          %v3145 = vld [vmem:[#allocation8 + $0x2a8] sm:$0xff]
          %v3146 = vld [vmem:[#allocation8 + $0x2b0] sm:$0xff]
          %v3147 = vld [vmem:[#allocation8 + $0x2b8] sm:$0xff]
          %v3148 = vld [vmem:[#allocation8 + $0x2c0] sm:$0xff]
          %v3149 = vld [vmem:[#allocation8 + $0x2c8] sm:$0xff]
          %v3150 = vld [vmem:[#allocation8 + $0x2d0] sm:$0xff]
          %v3151 = vld [vmem:[#allocation8 + $0x2d8] sm:$0xff]
          %v3152 = vld [vmem:[#allocation8 + $0x2e0] sm:$0xff]
          %v3153 = vld [vmem:[#allocation8 + $0x2e8] sm:$0xff]
          %v3154 = vld [vmem:[#allocation8 + $0x2f0] sm:$0xff]
          %v3155 = vld [vmem:[#allocation8 + $0x2f8] sm:$0xff]
          %v3156 = vld [vmem:[#allocation8 + $0x300] sm:$0xff]
          %v3157 = vld [vmem:[#allocation8 + $0x308] sm:$0xff]
          %v3158 = vld [vmem:[#allocation8 + $0x310] sm:$0xff]
          %v3159 = vld [vmem:[#allocation8 + $0x318] sm:$0xff]
          %v3160 = vld [vmem:[#allocation8 + $0x320] sm:$0xff]
          %v3161 = vld [vmem:[#allocation8 + $0x328] sm:$0xff]
          %v3162 = vld [vmem:[#allocation8 + $0x330] sm:$0xff]
          %v3163 = vld [vmem:[#allocation8 + $0x338] sm:$0xff]
          %v3164 = vld [vmem:[#allocation8 + $0x340] sm:$0xff]
          %v3165 = vld [vmem:[#allocation8 + $0x348] sm:$0xff]
          %v3166 = vld [vmem:[#allocation8 + $0x350] sm:$0xff]
          %v3167 = vld [vmem:[#allocation8 + $0x358] sm:$0xff]
          %v3168 = vld [vmem:[#allocation8 + $0x360] sm:$0xff]
          %v3169 = vld [vmem:[#allocation8 + $0x368] sm:$0xff]
          %v3170 = vld [vmem:[#allocation8 + $0x370] sm:$0xff]
          %v3171 = vld [vmem:[#allocation8 + $0x378] sm:$0xff]
          %v3172 = vld [vmem:[#allocation8 + $0x380] sm:$0xff]
          %v3173 = vld [vmem:[#allocation8 + $0x388] sm:$0xff]
          %v3174 = vld [vmem:[#allocation8 + $0x390] sm:$0xff]
          %v3175 = vld [vmem:[#allocation8 + $0x398] sm:$0xff]
          %v3176 = vld [vmem:[#allocation8 + $0x3a0] sm:$0xff]
          %v3177 = vld [vmem:[#allocation8 + $0x3a8] sm:$0xff]
          %v3178 = vld [vmem:[#allocation8 + $0x3b0] sm:$0xff]
          %v3179 = vld [vmem:[#allocation8 + $0x3b8] sm:$0xff]
          %v3180 = vld [vmem:[#allocation8 + $0x3c0] sm:$0xff]
          %v3181 = vld [vmem:[#allocation8 + $0x3c8] sm:$0xff]
          %v3182 = vld [vmem:[#allocation8 + $0x3d0] sm:$0xff]
          %v3183 = vld [vmem:[#allocation8 + $0x3d8] sm:$0xff]
          %v3184 = vld [vmem:[#allocation8 + $0x3e0] sm:$0xff]
          %v3185 = vld [vmem:[#allocation8 + $0x3e8] sm:$0xff]
          %v3186 = vld [vmem:[#allocation8 + $0x3f0] sm:$0xff]
          %v3187 = vld [vmem:[#allocation8 + $0x3f8] sm:$0xff]
          %v3188 = vld [vmem:[#allocation9] sm:$0xf]
          %v3190 = vperm.slane %v3188, 0
          %v3191 = vperm.slane %v3188, 1
          %v3192 = vperm.slane %v3188, 2
          %v3193 = vperm.slane %v3188, 3
          %v3326 = vunpack.c.l.b16 %v3060
          %v3327 = vunpack.c.h.b16 %v3060
          %v3328 = vunpack.c.l.b16 %v3061
          %v3329 = vunpack.c.h.b16 %v3061
          %v3330 = vunpack.c.l.b16 %v3062
          %v3331 = vunpack.c.h.b16 %v3062
          %v3332 = vunpack.c.l.b16 %v3063
          %v3333 = vunpack.c.h.b16 %v3063
          %v3334 = vunpack.c.l.b16 %v3064
          %v3335 = vunpack.c.h.b16 %v3064
          %v3336 = vunpack.c.l.b16 %v3065
          %v3337 = vunpack.c.h.b16 %v3065
          %v3338 = vunpack.c.l.b16 %v3066
          %v3339 = vunpack.c.h.b16 %v3066
          %v3340 = vunpack.c.l.b16 %v3067
          %v3341 = vunpack.c.h.b16 %v3067
          %v3342 = vunpack.c.l.b16 %v3068
          %v3343 = vunpack.c.h.b16 %v3068
          %v3344 = vunpack.c.l.b16 %v3069
          %v3345 = vunpack.c.h.b16 %v3069
          %v3346 = vunpack.c.l.b16 %v3070
          %v3347 = vunpack.c.h.b16 %v3070
          %v3348 = vunpack.c.l.b16 %v3071
          %v3349 = vunpack.c.h.b16 %v3071
          %v3350 = vunpack.c.l.b16 %v3072
          %v3351 = vunpack.c.h.b16 %v3072
          %v3352 = vunpack.c.l.b16 %v3073
          %v3353 = vunpack.c.h.b16 %v3073
          %v3354 = vunpack.c.l.b16 %v3074
          %v3355 = vunpack.c.h.b16 %v3074
          %v3356 = vunpack.c.l.b16 %v3075
          %v3357 = vunpack.c.h.b16 %v3075
          %v3358 = vunpack.c.l.b16 %v3076
          %v3359 = vunpack.c.h.b16 %v3076
          %v3360 = vunpack.c.l.b16 %v3077
          %v3361 = vunpack.c.h.b16 %v3077
          %v3362 = vunpack.c.l.b16 %v3078
          %v3363 = vunpack.c.h.b16 %v3078
          %v3364 = vunpack.c.l.b16 %v3079
          %v3365 = vunpack.c.h.b16 %v3079
          %v3366 = vunpack.c.l.b16 %v3080
          %v3367 = vunpack.c.h.b16 %v3080
          %v3368 = vunpack.c.l.b16 %v3081
          %v3369 = vunpack.c.h.b16 %v3081
          %v3370 = vunpack.c.l.b16 %v3082
          %v3371 = vunpack.c.h.b16 %v3082
          %v3372 = vunpack.c.l.b16 %v3083
          %v3373 = vunpack.c.h.b16 %v3083
          %v3374 = vunpack.c.l.b16 %v3084
          %v3375 = vunpack.c.h.b16 %v3084
          %v3376 = vunpack.c.l.b16 %v3085
          %v3377 = vunpack.c.h.b16 %v3085
          %v3378 = vunpack.c.l.b16 %v3086
          %v3379 = vunpack.c.h.b16 %v3086
          %v3380 = vunpack.c.l.b16 %v3087
          %v3381 = vunpack.c.h.b16 %v3087
          %v3382 = vunpack.c.l.b16 %v3088
          %v3383 = vunpack.c.h.b16 %v3088
          %v3384 = vunpack.c.l.b16 %v3089
          %v3385 = vunpack.c.h.b16 %v3089
          %v3386 = vunpack.c.l.b16 %v3090
          %v3387 = vunpack.c.h.b16 %v3090
          %v3388 = vunpack.c.l.b16 %v3091
          %v3389 = vunpack.c.h.b16 %v3091
          %v3390 = vunpack.c.l.b16 %v3092
          %v3391 = vunpack.c.h.b16 %v3092
          %v3392 = vunpack.c.l.b16 %v3093
          %v3393 = vunpack.c.h.b16 %v3093
          %v3394 = vunpack.c.l.b16 %v3094
          %v3395 = vunpack.c.h.b16 %v3094
          %v3396 = vunpack.c.l.b16 %v3095
          %v3397 = vunpack.c.h.b16 %v3095
          %v3398 = vunpack.c.l.b16 %v3096
          %v3399 = vunpack.c.h.b16 %v3096
          %v3400 = vunpack.c.l.b16 %v3097
          %v3401 = vunpack.c.h.b16 %v3097
          %v3402 = vunpack.c.l.b16 %v3098
          %v3403 = vunpack.c.h.b16 %v3098
          %v3404 = vunpack.c.l.b16 %v3099
          %v3405 = vunpack.c.h.b16 %v3099
          %v3406 = vunpack.c.l.b16 %v3100
          %v3407 = vunpack.c.h.b16 %v3100
          %v3408 = vunpack.c.l.b16 %v3101
          %v3409 = vunpack.c.h.b16 %v3101
          %v3410 = vunpack.c.l.b16 %v3102
          %v3411 = vunpack.c.h.b16 %v3102
          %v3412 = vunpack.c.l.b16 %v3103
          %v3413 = vunpack.c.h.b16 %v3103
          %v3414 = vunpack.c.l.b16 %v3104
          %v3415 = vunpack.c.h.b16 %v3104
          %v3416 = vunpack.c.l.b16 %v3105
          %v3417 = vunpack.c.h.b16 %v3105
          %v3418 = vunpack.c.l.b16 %v3106
          %v3419 = vunpack.c.h.b16 %v3106
          %v3420 = vunpack.c.l.b16 %v3107
          %v3421 = vunpack.c.h.b16 %v3107
          %v3422 = vunpack.c.l.b16 %v3108
          %v3423 = vunpack.c.h.b16 %v3108
          %v3424 = vunpack.c.l.b16 %v3109
          %v3425 = vunpack.c.h.b16 %v3109
          %v3426 = vunpack.c.l.b16 %v3110
          %v3427 = vunpack.c.h.b16 %v3110
          %v3428 = vunpack.c.l.b16 %v3111
          %v3429 = vunpack.c.h.b16 %v3111
          %v3430 = vunpack.c.l.b16 %v3112
          %v3431 = vunpack.c.h.b16 %v3112
          %v3432 = vunpack.c.l.b16 %v3113
          %v3433 = vunpack.c.h.b16 %v3113
          %v3434 = vunpack.c.l.b16 %v3114
          %v3435 = vunpack.c.h.b16 %v3114
          %v3436 = vunpack.c.l.b16 %v3115
          %v3437 = vunpack.c.h.b16 %v3115
          %v3438 = vunpack.c.l.b16 %v3116
          %v3439 = vunpack.c.h.b16 %v3116
          %v3440 = vunpack.c.l.b16 %v3117
          %v3441 = vunpack.c.h.b16 %v3117
          %v3442 = vunpack.c.l.b16 %v3118
          %v3443 = vunpack.c.h.b16 %v3118
          %v3444 = vunpack.c.l.b16 %v3119
          %v3445 = vunpack.c.h.b16 %v3119
          %v3446 = vunpack.c.l.b16 %v3120
          %v3447 = vunpack.c.h.b16 %v3120
          %v3448 = vunpack.c.l.b16 %v3121
          %v3449 = vunpack.c.h.b16 %v3121
          %v3450 = vunpack.c.l.b16 %v3122
          %v3451 = vunpack.c.h.b16 %v3122
          %v3452 = vunpack.c.l.b16 %v3123
          %v3453 = vunpack.c.h.b16 %v3123
          %v3454 = vunpack.c.l.b16 %v3124
          %v3455 = vunpack.c.h.b16 %v3124
          %v3456 = vunpack.c.l.b16 %v3125
          %v3457 = vunpack.c.h.b16 %v3125
          %v3458 = vunpack.c.l.b16 %v3126
          %v3459 = vunpack.c.h.b16 %v3126
          %v3460 = vunpack.c.l.b16 %v3127
          %v3461 = vunpack.c.h.b16 %v3127
          %v3462 = vunpack.c.l.b16 %v3128
          %v3463 = vunpack.c.h.b16 %v3128
          %v3464 = vunpack.c.l.b16 %v3129
          %v3465 = vunpack.c.h.b16 %v3129
          %v3466 = vunpack.c.l.b16 %v3130
          %v3467 = vunpack.c.h.b16 %v3130
          %v3468 = vunpack.c.l.b16 %v3131
          %v3469 = vunpack.c.h.b16 %v3131
          %v3470 = vunpack.c.l.b16 %v3132
          %v3471 = vunpack.c.h.b16 %v3132
          %v3472 = vunpack.c.l.b16 %v3133
          %v3473 = vunpack.c.h.b16 %v3133
          %v3474 = vunpack.c.l.b16 %v3134
          %v3475 = vunpack.c.h.b16 %v3134
          %v3476 = vunpack.c.l.b16 %v3135
          %v3477 = vunpack.c.h.b16 %v3135
          %v3478 = vunpack.c.l.b16 %v3136
          %v3479 = vunpack.c.h.b16 %v3136
          %v3480 = vunpack.c.l.b16 %v3137
          %v3481 = vunpack.c.h.b16 %v3137
          %v3482 = vunpack.c.l.b16 %v3138
          %v3483 = vunpack.c.h.b16 %v3138
          %v3484 = vunpack.c.l.b16 %v3139
          %v3485 = vunpack.c.h.b16 %v3139
          %v3486 = vunpack.c.l.b16 %v3140
          %v3487 = vunpack.c.h.b16 %v3140
          %v3488 = vunpack.c.l.b16 %v3141
          %v3489 = vunpack.c.h.b16 %v3141
          %v3490 = vunpack.c.l.b16 %v3142
          %v3491 = vunpack.c.h.b16 %v3142
          %v3492 = vunpack.c.l.b16 %v3143
          %v3493 = vunpack.c.h.b16 %v3143
          %v3494 = vunpack.c.l.b16 %v3144
          %v3495 = vunpack.c.h.b16 %v3144
          %v3496 = vunpack.c.l.b16 %v3145
          %v3497 = vunpack.c.h.b16 %v3145
          %v3498 = vunpack.c.l.b16 %v3146
          %v3499 = vunpack.c.h.b16 %v3146
          %v3500 = vunpack.c.l.b16 %v3147
          %v3501 = vunpack.c.h.b16 %v3147
          %v3502 = vunpack.c.l.b16 %v3148
          %v3503 = vunpack.c.h.b16 %v3148
          %v3504 = vunpack.c.l.b16 %v3149
          %v3505 = vunpack.c.h.b16 %v3149
          %v3506 = vunpack.c.l.b16 %v3150
          %v3507 = vunpack.c.h.b16 %v3150
          %v3508 = vunpack.c.l.b16 %v3151
          %v3509 = vunpack.c.h.b16 %v3151
          %v3510 = vunpack.c.l.b16 %v3152
          %v3511 = vunpack.c.h.b16 %v3152
          %v3512 = vunpack.c.l.b16 %v3153
          %v3513 = vunpack.c.h.b16 %v3153
          %v3514 = vunpack.c.l.b16 %v3154
          %v3515 = vunpack.c.h.b16 %v3154
          %v3516 = vunpack.c.l.b16 %v3155
          %v3517 = vunpack.c.h.b16 %v3155
          %v3518 = vunpack.c.l.b16 %v3156
          %v3519 = vunpack.c.h.b16 %v3156
          %v3520 = vunpack.c.l.b16 %v3157
          %v3521 = vunpack.c.h.b16 %v3157
          %v3522 = vunpack.c.l.b16 %v3158
          %v3523 = vunpack.c.h.b16 %v3158
          %v3524 = vunpack.c.l.b16 %v3159
          %v3525 = vunpack.c.h.b16 %v3159
          %v3526 = vunpack.c.l.b16 %v3160
          %v3527 = vunpack.c.h.b16 %v3160
          %v3528 = vunpack.c.l.b16 %v3161
          %v3529 = vunpack.c.h.b16 %v3161
          %v3530 = vunpack.c.l.b16 %v3162
          %v3531 = vunpack.c.h.b16 %v3162
          %v3532 = vunpack.c.l.b16 %v3163
          %v3533 = vunpack.c.h.b16 %v3163
          %v3534 = vunpack.c.l.b16 %v3164
          %v3535 = vunpack.c.h.b16 %v3164
          %v3536 = vunpack.c.l.b16 %v3165
          %v3537 = vunpack.c.h.b16 %v3165
          %v3538 = vunpack.c.l.b16 %v3166
          %v3539 = vunpack.c.h.b16 %v3166
          %v3540 = vunpack.c.l.b16 %v3167
          %v3541 = vunpack.c.h.b16 %v3167
          %v3542 = vunpack.c.l.b16 %v3168
          %v3543 = vunpack.c.h.b16 %v3168
          %v3544 = vunpack.c.l.b16 %v3169
          %v3545 = vunpack.c.h.b16 %v3169
          %v3546 = vunpack.c.l.b16 %v3170
          %v3547 = vunpack.c.h.b16 %v3170
          %v3548 = vunpack.c.l.b16 %v3171
          %v3549 = vunpack.c.h.b16 %v3171
          %v3550 = vunpack.c.l.b16 %v3172
          %v3551 = vunpack.c.h.b16 %v3172
          %v3552 = vunpack.c.l.b16 %v3173
          %v3553 = vunpack.c.h.b16 %v3173
          %v3554 = vunpack.c.l.b16 %v3174
          %v3555 = vunpack.c.h.b16 %v3174
          %v3556 = vunpack.c.l.b16 %v3175
          %v3557 = vunpack.c.h.b16 %v3175
          %v3558 = vunpack.c.l.b16 %v3176
          %v3559 = vunpack.c.h.b16 %v3176
          %v3560 = vunpack.c.l.b16 %v3177
          %v3561 = vunpack.c.h.b16 %v3177
          %v3562 = vunpack.c.l.b16 %v3178
          %v3563 = vunpack.c.h.b16 %v3178
          %v3564 = vunpack.c.l.b16 %v3179
          %v3565 = vunpack.c.h.b16 %v3179
          %v3566 = vunpack.c.l.b16 %v3180
          %v3567 = vunpack.c.h.b16 %v3180
          %v3568 = vunpack.c.l.b16 %v3181
          %v3569 = vunpack.c.h.b16 %v3181
          %v3570 = vunpack.c.l.b16 %v3182
          %v3571 = vunpack.c.h.b16 %v3182
          %v3572 = vunpack.c.l.b16 %v3183
          %v3573 = vunpack.c.h.b16 %v3183
          %v3574 = vunpack.c.l.b16 %v3184
          %v3575 = vunpack.c.h.b16 %v3184
          %v3576 = vunpack.c.l.b16 %v3185
          %v3577 = vunpack.c.h.b16 %v3185
          %v3578 = vunpack.c.l.b16 %v3186
          %v3579 = vunpack.c.h.b16 %v3186
          %v3580 = vunpack.c.l.b16 %v3187
          %v3581 = vunpack.c.h.b16 %v3187
          %v3582 = vpack.c.b16 %v3330, %v3326
          %v3583 = vpack.c.b16 %v3331, %v3327
          %v3584 = vpack.c.b16 %v3332, %v3328
          %v3585 = vpack.c.b16 %v3333, %v3329
          %v3586 = vpack.c.b16 %v3338, %v3334
          %v3587 = vpack.c.b16 %v3339, %v3335
          %v3588 = vpack.c.b16 %v3340, %v3336
          %v3589 = vpack.c.b16 %v3341, %v3337
          %v3590 = vpack.c.b16 %v3346, %v3342
          %v3591 = vpack.c.b16 %v3347, %v3343
          %v3592 = vpack.c.b16 %v3348, %v3344
          %v3593 = vpack.c.b16 %v3349, %v3345
          %v3594 = vpack.c.b16 %v3354, %v3350
          %v3595 = vpack.c.b16 %v3355, %v3351
          %v3596 = vpack.c.b16 %v3356, %v3352
          %v3597 = vpack.c.b16 %v3357, %v3353
          %v3598 = vpack.c.b16 %v3362, %v3358
          %v3599 = vpack.c.b16 %v3363, %v3359
          %v3600 = vpack.c.b16 %v3364, %v3360
          %v3601 = vpack.c.b16 %v3365, %v3361
          %v3602 = vpack.c.b16 %v3370, %v3366
          %v3603 = vpack.c.b16 %v3371, %v3367
          %v3604 = vpack.c.b16 %v3372, %v3368
          %v3605 = vpack.c.b16 %v3373, %v3369
          %v3606 = vpack.c.b16 %v3378, %v3374
          %v3607 = vpack.c.b16 %v3379, %v3375
          %v3608 = vpack.c.b16 %v3380, %v3376
          %v3609 = vpack.c.b16 %v3381, %v3377
          %v3610 = vpack.c.b16 %v3386, %v3382
          %v3611 = vpack.c.b16 %v3387, %v3383
          %v3612 = vpack.c.b16 %v3388, %v3384
          %v3613 = vpack.c.b16 %v3389, %v3385
          %v3614 = vpack.c.b16 %v3394, %v3390
          %v3615 = vpack.c.b16 %v3395, %v3391
          %v3616 = vpack.c.b16 %v3396, %v3392
          %v3617 = vpack.c.b16 %v3397, %v3393
          %v3618 = vpack.c.b16 %v3402, %v3398
          %v3619 = vpack.c.b16 %v3403, %v3399
          %v3620 = vpack.c.b16 %v3404, %v3400
          %v3621 = vpack.c.b16 %v3405, %v3401
          %v3622 = vpack.c.b16 %v3410, %v3406
          %v3623 = vpack.c.b16 %v3411, %v3407
          %v3624 = vpack.c.b16 %v3412, %v3408
          %v3625 = vpack.c.b16 %v3413, %v3409
          %v3626 = vpack.c.b16 %v3418, %v3414
          %v3627 = vpack.c.b16 %v3419, %v3415
          %v3628 = vpack.c.b16 %v3420, %v3416
          %v3629 = vpack.c.b16 %v3421, %v3417
          %v3630 = vpack.c.b16 %v3426, %v3422
          %v3631 = vpack.c.b16 %v3427, %v3423
          %v3632 = vpack.c.b16 %v3428, %v3424
          %v3633 = vpack.c.b16 %v3429, %v3425
          %v3634 = vpack.c.b16 %v3434, %v3430
          %v3635 = vpack.c.b16 %v3435, %v3431
          %v3636 = vpack.c.b16 %v3436, %v3432
          %v3637 = vpack.c.b16 %v3437, %v3433
          %v3638 = vpack.c.b16 %v3442, %v3438
          %v3639 = vpack.c.b16 %v3443, %v3439
          %v3640 = vpack.c.b16 %v3444, %v3440
          %v3641 = vpack.c.b16 %v3445, %v3441
          %v3642 = vpack.c.b16 %v3450, %v3446
          %v3643 = vpack.c.b16 %v3451, %v3447
          %v3644 = vpack.c.b16 %v3452, %v3448
          %v3645 = vpack.c.b16 %v3453, %v3449
          %v3646 = vpack.c.b16 %v3458, %v3454
          %v3647 = vpack.c.b16 %v3459, %v3455
          %v3648 = vpack.c.b16 %v3460, %v3456
          %v3649 = vpack.c.b16 %v3461, %v3457
          %v3650 = vpack.c.b16 %v3466, %v3462
          %v3651 = vpack.c.b16 %v3467, %v3463
          %v3652 = vpack.c.b16 %v3468, %v3464
          %v3653 = vpack.c.b16 %v3469, %v3465
          %v3654 = vpack.c.b16 %v3474, %v3470
          %v3655 = vpack.c.b16 %v3475, %v3471
          %v3656 = vpack.c.b16 %v3476, %v3472
          %v3657 = vpack.c.b16 %v3477, %v3473
          %v3658 = vpack.c.b16 %v3482, %v3478
          %v3659 = vpack.c.b16 %v3483, %v3479
          %v3660 = vpack.c.b16 %v3484, %v3480
          %v3661 = vpack.c.b16 %v3485, %v3481
          %v3662 = vpack.c.b16 %v3490, %v3486
          %v3663 = vpack.c.b16 %v3491, %v3487
          %v3664 = vpack.c.b16 %v3492, %v3488
          %v3665 = vpack.c.b16 %v3493, %v3489
          %v3666 = vpack.c.b16 %v3498, %v3494
          %v3667 = vpack.c.b16 %v3499, %v3495
          %v3668 = vpack.c.b16 %v3500, %v3496
          %v3669 = vpack.c.b16 %v3501, %v3497
          %v3670 = vpack.c.b16 %v3506, %v3502
          %v3671 = vpack.c.b16 %v3507, %v3503
          %v3672 = vpack.c.b16 %v3508, %v3504
          %v3673 = vpack.c.b16 %v3509, %v3505
          %v3674 = vpack.c.b16 %v3514, %v3510
          %v3675 = vpack.c.b16 %v3515, %v3511
          %v3676 = vpack.c.b16 %v3516, %v3512
          %v3677 = vpack.c.b16 %v3517, %v3513
          %v3678 = vpack.c.b16 %v3522, %v3518
          %v3679 = vpack.c.b16 %v3523, %v3519
          %v3680 = vpack.c.b16 %v3524, %v3520
          %v3681 = vpack.c.b16 %v3525, %v3521
          %v3682 = vpack.c.b16 %v3530, %v3526
          %v3683 = vpack.c.b16 %v3531, %v3527
          %v3684 = vpack.c.b16 %v3532, %v3528
          %v3685 = vpack.c.b16 %v3533, %v3529
          %v3686 = vpack.c.b16 %v3538, %v3534
          %v3687 = vpack.c.b16 %v3539, %v3535
          %v3688 = vpack.c.b16 %v3540, %v3536
          %v3689 = vpack.c.b16 %v3541, %v3537
          %v3690 = vpack.c.b16 %v3546, %v3542
          %v3691 = vpack.c.b16 %v3547, %v3543
          %v3692 = vpack.c.b16 %v3548, %v3544
          %v3693 = vpack.c.b16 %v3549, %v3545
          %v3694 = vpack.c.b16 %v3554, %v3550
          %v3695 = vpack.c.b16 %v3555, %v3551
          %v3696 = vpack.c.b16 %v3556, %v3552
          %v3697 = vpack.c.b16 %v3557, %v3553
          %v3698 = vpack.c.b16 %v3562, %v3558
          %v3699 = vpack.c.b16 %v3563, %v3559
          %v3700 = vpack.c.b16 %v3564, %v3560
          %v3701 = vpack.c.b16 %v3565, %v3561
          %v3702 = vpack.c.b16 %v3570, %v3566
          %v3703 = vpack.c.b16 %v3571, %v3567
          %v3704 = vpack.c.b16 %v3572, %v3568
          %v3705 = vpack.c.b16 %v3573, %v3569
          %v3706 = vpack.c.b16 %v3578, %v3574
          %v3707 = vpack.c.b16 %v3579, %v3575
          %v3708 = vpack.c.b16 %v3580, %v3576
          %v3709 = vpack.c.b16 %v3581, %v3577
          %3838 = vmatpush.bf16.msra.mxu0 %v3610
          %3839 = vmatpush.bf16.msra.mxu0 %v3606
          %3840 = vmatpush.bf16.msra.mxu0 %v3602
          %3841 = vmatpush.bf16.msra.mxu0 %v3598
          %3842 = vmatpush.bf16.msra.mxu0 %v3594
          %3843 = vmatpush.bf16.msra.mxu0 %v3590
          %3844 = vmatpush.bf16.msra.mxu0 %v3586
          %3845 = vmatpush.bf16.msra.mxu0 %v3582
          %3846 = vmatmul.bf16.gmra.mxu0 %v3056
          %v3847 = vpop.f32.mrf.mxu0
          %v3848 = vadd.f32 %v3190, %v3847
          %v3849 = vpop.f32.mrf.mxu0
          %3850 = vdwg.mxu0
          %3851 = vmatpush.bf16.msra.mxu0 %v3642
          %3852 = vmatpush.bf16.msra.mxu0 %v3638
          %3853 = vmatpush.bf16.msra.mxu0 %v3634
          %3854 = vmatpush.bf16.msra.mxu0 %v3630
          %3855 = vmatpush.bf16.msra.mxu0 %v3626
          %3856 = vmatpush.bf16.msra.mxu0 %v3622
          %3857 = vmatpush.bf16.msra.mxu0 %v3618
          %3858 = vmatpush.bf16.msra.mxu0 %v3614
          %3859 = vmatmul.bf16.gmra.mxu0 %v3057
          %v3860 = vpop.f32.mrf.mxu0
          %v3861 = vadd.f32 %v3848, %v3860
          %v3862 = vpop.f32.mrf.mxu0
          %3863 = vdwg.mxu0
          %3864 = vmatpush.bf16.msra.mxu0 %v3674
          %3865 = vmatpush.bf16.msra.mxu0 %v3670
          %3866 = vmatpush.bf16.msra.mxu0 %v3666
          %3867 = vmatpush.bf16.msra.mxu0 %v3662
          %3868 = vmatpush.bf16.msra.mxu0 %v3658
          %3869 = vmatpush.bf16.msra.mxu0 %v3654
          %3870 = vmatpush.bf16.msra.mxu0 %v3650
          %3871 = vmatpush.bf16.msra.mxu0 %v3646
          %3872 = vmatmul.bf16.gmra.mxu0 %v3058
          %v3873 = vpop.f32.mrf.mxu0
          %v3874 = vadd.f32 %v3861, %v3873
          %v3875 = vpop.f32.mrf.mxu0
          %3876 = vdwg.mxu0
          %3877 = vmatpush.bf16.msra.mxu0 %v3706
          %3878 = vmatpush.bf16.msra.mxu0 %v3702
          %3879 = vmatpush.bf16.msra.mxu0 %v3698
          %3880 = vmatpush.bf16.msra.mxu0 %v3694
          %3881 = vmatpush.bf16.msra.mxu0 %v3690
          %3882 = vmatpush.bf16.msra.mxu0 %v3686
          %3883 = vmatpush.bf16.msra.mxu0 %v3682
          %3884 = vmatpush.bf16.msra.mxu0 %v3678
          %3885 = vmatmul.bf16.gmra.mxu0 %v3059
          %v3886 = vpop.f32.mrf.mxu0
          %v3887 = vadd.f32 %v3874, %v3886
          %v3888 = vpop.f32.mrf.mxu0
          %3889 = vdwg.mxu0
          %3890 = vmatpush.bf16.msra.mxu0 %v3611
          %3891 = vmatpush.bf16.msra.mxu0 %v3607
          %3892 = vmatpush.bf16.msra.mxu0 %v3603
          %3893 = vmatpush.bf16.msra.mxu0 %v3599
          %3894 = vmatpush.bf16.msra.mxu0 %v3595
          %3895 = vmatpush.bf16.msra.mxu0 %v3591
          %3896 = vmatpush.bf16.msra.mxu0 %v3587
          %3897 = vmatpush.bf16.msra.mxu0 %v3583
          %3898 = vmatmul.bf16.gmra.mxu0 %v3056
          %v3899 = vpop.f32.mrf.mxu0
          %v3900 = vadd.f32 %v3191, %v3899
          %v3901 = vpop.f32.mrf.mxu0
          %3902 = vdwg.mxu0
          %3903 = vmatpush.bf16.msra.mxu0 %v3643
          %3904 = vmatpush.bf16.msra.mxu0 %v3639
          %3905 = vmatpush.bf16.msra.mxu0 %v3635
          %3906 = vmatpush.bf16.msra.mxu0 %v3631
          %3907 = vmatpush.bf16.msra.mxu0 %v3627
          %3908 = vmatpush.bf16.msra.mxu0 %v3623
          %3909 = vmatpush.bf16.msra.mxu0 %v3619
          %3910 = vmatpush.bf16.msra.mxu0 %v3615
          %3911 = vmatmul.bf16.gmra.mxu0 %v3057
          %v3912 = vpop.f32.mrf.mxu0
          %v3913 = vadd.f32 %v3900, %v3912
          %v3914 = vpop.f32.mrf.mxu0
          %3915 = vdwg.mxu0
          %3916 = vmatpush.bf16.msra.mxu0 %v3675
          %3917 = vmatpush.bf16.msra.mxu0 %v3671
          %3918 = vmatpush.bf16.msra.mxu0 %v3667
          %3919 = vmatpush.bf16.msra.mxu0 %v3663
          %3920 = vmatpush.bf16.msra.mxu0 %v3659
          %3921 = vmatpush.bf16.msra.mxu0 %v3655
          %3922 = vmatpush.bf16.msra.mxu0 %v3651
          %3923 = vmatpush.bf16.msra.mxu0 %v3647
          %3924 = vmatmul.bf16.gmra.mxu0 %v3058
          %v3925 = vpop.f32.mrf.mxu0
          %v3926 = vadd.f32 %v3913, %v3925
          %v3927 = vpop.f32.mrf.mxu0
          %3928 = vdwg.mxu0
          %3929 = vmatpush.bf16.msra.mxu0 %v3707
          %3930 = vmatpush.bf16.msra.mxu0 %v3703
          %3931 = vmatpush.bf16.msra.mxu0 %v3699
          %3932 = vmatpush.bf16.msra.mxu0 %v3695
          %3933 = vmatpush.bf16.msra.mxu0 %v3691
          %3934 = vmatpush.bf16.msra.mxu0 %v3687
          %3935 = vmatpush.bf16.msra.mxu0 %v3683
          %3936 = vmatpush.bf16.msra.mxu0 %v3679
          %3937 = vmatmul.bf16.gmra.mxu0 %v3059
          %v3938 = vpop.f32.mrf.mxu0
          %v3939 = vadd.f32 %v3926, %v3938
          %v3940 = vpop.f32.mrf.mxu0
          %3941 = vdwg.mxu0
          %3942 = vmatpush.bf16.msra.mxu0 %v3612
          %3943 = vmatpush.bf16.msra.mxu0 %v3608
          %3944 = vmatpush.bf16.msra.mxu0 %v3604
          %3945 = vmatpush.bf16.msra.mxu0 %v3600
          %3946 = vmatpush.bf16.msra.mxu0 %v3596
          %3947 = vmatpush.bf16.msra.mxu0 %v3592
          %3948 = vmatpush.bf16.msra.mxu0 %v3588
          %3949 = vmatpush.bf16.msra.mxu0 %v3584
          %3950 = vmatmul.bf16.gmra.mxu0 %v3056
          %v3951 = vpop.f32.mrf.mxu0
          %v3952 = vadd.f32 %v3192, %v3951
          %v3953 = vpop.f32.mrf.mxu0
          %3954 = vdwg.mxu0
          %3955 = vmatpush.bf16.msra.mxu0 %v3644
          %3956 = vmatpush.bf16.msra.mxu0 %v3640
          %3957 = vmatpush.bf16.msra.mxu0 %v3636
          %3958 = vmatpush.bf16.msra.mxu0 %v3632
          %3959 = vmatpush.bf16.msra.mxu0 %v3628
          %3960 = vmatpush.bf16.msra.mxu0 %v3624
          %3961 = vmatpush.bf16.msra.mxu0 %v3620
          %3962 = vmatpush.bf16.msra.mxu0 %v3616
          %3963 = vmatmul.bf16.gmra.mxu0 %v3057
          %v3964 = vpop.f32.mrf.mxu0
          %v3965 = vadd.f32 %v3952, %v3964
          %v3966 = vpop.f32.mrf.mxu0
          %3967 = vdwg.mxu0
          %3968 = vmatpush.bf16.msra.mxu0 %v3676
          %3969 = vmatpush.bf16.msra.mxu0 %v3672
          %3970 = vmatpush.bf16.msra.mxu0 %v3668
          %3971 = vmatpush.bf16.msra.mxu0 %v3664
          %3972 = vmatpush.bf16.msra.mxu0 %v3660
          %3973 = vmatpush.bf16.msra.mxu0 %v3656
          %3974 = vmatpush.bf16.msra.mxu0 %v3652
          %3975 = vmatpush.bf16.msra.mxu0 %v3648
          %3976 = vmatmul.bf16.gmra.mxu0 %v3058
          %v3977 = vpop.f32.mrf.mxu0
          %v3978 = vadd.f32 %v3965, %v3977
          %v3979 = vpop.f32.mrf.mxu0
          %3980 = vdwg.mxu0
          %3981 = vmatpush.bf16.msra.mxu0 %v3708
          %3982 = vmatpush.bf16.msra.mxu0 %v3704
          %3983 = vmatpush.bf16.msra.mxu0 %v3700
          %3984 = vmatpush.bf16.msra.mxu0 %v3696
          %3985 = vmatpush.bf16.msra.mxu0 %v3692
          %3986 = vmatpush.bf16.msra.mxu0 %v3688
          %3987 = vmatpush.bf16.msra.mxu0 %v3684
          %3988 = vmatpush.bf16.msra.mxu0 %v3680
          %3989 = vmatmul.bf16.gmra.mxu0 %v3059
          %v3990 = vpop.f32.mrf.mxu0
          %v3991 = vadd.f32 %v3978, %v3990
          %v3992 = vpop.f32.mrf.mxu0
          %3993 = vdwg.mxu0
          %3994 = vmatpush.bf16.msra.mxu0 %v3613
          %3995 = vmatpush.bf16.msra.mxu0 %v3609
          %3996 = vmatpush.bf16.msra.mxu0 %v3605
          %3997 = vmatpush.bf16.msra.mxu0 %v3601
          %3998 = vmatpush.bf16.msra.mxu0 %v3597
          %3999 = vmatpush.bf16.msra.mxu0 %v3593
          %4000 = vmatpush.bf16.msra.mxu0 %v3589
          %4001 = vmatpush.bf16.msra.mxu0 %v3585
          %4002 = vmatmul.bf16.gmra.mxu0 %v3056
          %v4003 = vpop.f32.mrf.mxu0
          %v4004 = vadd.f32 %v3193, %v4003
          %v4005 = vpop.f32.mrf.mxu0
          %4006 = vdwg.mxu0
          %4007 = vmatpush.bf16.msra.mxu0 %v3645
          %4008 = vmatpush.bf16.msra.mxu0 %v3641
          %4009 = vmatpush.bf16.msra.mxu0 %v3637
          %4010 = vmatpush.bf16.msra.mxu0 %v3633
          %4011 = vmatpush.bf16.msra.mxu0 %v3629
          %4012 = vmatpush.bf16.msra.mxu0 %v3625
          %4013 = vmatpush.bf16.msra.mxu0 %v3621
          %4014 = vmatpush.bf16.msra.mxu0 %v3617
          %4015 = vmatmul.bf16.gmra.mxu0 %v3057
          %v4016 = vpop.f32.mrf.mxu0
          %v4017 = vadd.f32 %v4004, %v4016
          %v4018 = vpop.f32.mrf.mxu0
          %4019 = vdwg.mxu0
          %4020 = vmatpush.bf16.msra.mxu0 %v3677
          %4021 = vmatpush.bf16.msra.mxu0 %v3673
          %4022 = vmatpush.bf16.msra.mxu0 %v3669
          %4023 = vmatpush.bf16.msra.mxu0 %v3665
          %4024 = vmatpush.bf16.msra.mxu0 %v3661
          %4025 = vmatpush.bf16.msra.mxu0 %v3657
          %4026 = vmatpush.bf16.msra.mxu0 %v3653
          %4027 = vmatpush.bf16.msra.mxu0 %v3649
          %4028 = vmatmul.bf16.gmra.mxu0 %v3058
          %v4029 = vpop.f32.mrf.mxu0
          %v4030 = vadd.f32 %v4017, %v4029
          %v4031 = vpop.f32.mrf.mxu0
          %4032 = vdwg.mxu0
          %4033 = vmatpush.bf16.msra.mxu0 %v3709
          %4034 = vmatpush.bf16.msra.mxu0 %v3705
          %4035 = vmatpush.bf16.msra.mxu0 %v3701
          %4036 = vmatpush.bf16.msra.mxu0 %v3697
          %4037 = vmatpush.bf16.msra.mxu0 %v3693
          %4038 = vmatpush.bf16.msra.mxu0 %v3689
          %4039 = vmatpush.bf16.msra.mxu0 %v3685
          %4040 = vmatpush.bf16.msra.mxu0 %v3681
          %4041 = vmatmul.bf16.gmra.mxu0 %v3059
          %v4042 = vpop.f32.mrf.mxu0
          %v4043 = vadd.f32 %v4030, %v4042
          %v4044 = vpop.f32.mrf.mxu0
          %4045 = vdwg.mxu0
          %v4046 = vmax.f32 %v3887, 0.0
          %v4047 = vmax.f32 %v3939, 0.0
          %v4048 = vmax.f32 %v3991, 0.0
          %v4049 = vmax.f32 %v4043, 0.0
          %v4050 = vrot.slane %v4046, 4
          %v4051 = vadd.f32 %v4046, %v4050
          %v4052 = vrot.slane %v4051, 2
          %v4053 = vadd.f32 %v4051, %v4052
          %v4054 = vrot.slane %v4053, 1
          %v4055 = vadd.f32 %v4053, %v4054
          %v4056 = vrot.slane %v4047, 4
          %v4057 = vadd.f32 %v4047, %v4056
          %v4058 = vrot.slane %v4057, 2
          %v4059 = vadd.f32 %v4057, %v4058
          %v4060 = vrot.slane %v4059, 1
          %v4061 = vadd.f32 %v4059, %v4060
          %v4062 = vrot.slane %v4048, 4
          %v4063 = vadd.f32 %v4048, %v4062
          %v4064 = vrot.slane %v4063, 2
          %v4065 = vadd.f32 %v4063, %v4064
          %v4066 = vrot.slane %v4065, 1
          %v4067 = vadd.f32 %v4065, %v4066
          %v4068 = vrot.slane %v4049, 4
          %v4069 = vadd.f32 %v4049, %v4068
          %v4070 = vrot.slane %v4069, 2
          %v4071 = vadd.f32 %v4069, %v4070
          %v4072 = vrot.slane %v4071, 1
          %v4073 = vadd.f32 %v4071, %v4072
          %v4074 = vmul.f32 %v4055, %v2935
          %v4075 = vmul.f32 %v4061, %v2935
          %v4076 = vmul.f32 %v4067, %v2935
          %v4077 = vmul.f32 %v4073, %v2935
          %v4078 = vsub.f32 %v4046, %v4074
          %v4079 = vsub.f32 %v4047, %v4075
          %v4080 = vsub.f32 %v4048, %v4076
          %v4081 = vsub.f32 %v4049, %v4077
          %v4082 = vmul.f32 %v4078, %v4078
          %v4083 = vmul.f32 %v4079, %v4079
          %v4084 = vmul.f32 %v4080, %v4080
          %v4085 = vmul.f32 %v4081, %v4081
          %v4086 = vrot.slane %v4082, 4
          %v4087 = vadd.f32 %v4082, %v4086
          %v4088 = vrot.slane %v4087, 2
          %v4089 = vadd.f32 %v4087, %v4088
          %v4090 = vrot.slane %v4089, 1
          %v4091 = vadd.f32 %v4089, %v4090
          %v4092 = vrot.slane %v4083, 4
          %v4093 = vadd.f32 %v4083, %v4092
          %v4094 = vrot.slane %v4093, 2
          %v4095 = vadd.f32 %v4093, %v4094
          %v4096 = vrot.slane %v4095, 1
          %v4097 = vadd.f32 %v4095, %v4096
          %v4098 = vrot.slane %v4084, 4
          %v4099 = vadd.f32 %v4084, %v4098
          %v4100 = vrot.slane %v4099, 2
          %v4101 = vadd.f32 %v4099, %v4100
          %v4102 = vrot.slane %v4101, 1
          %v4103 = vadd.f32 %v4101, %v4102
          %v4104 = vrot.slane %v4085, 4
          %v4105 = vadd.f32 %v4085, %v4104
          %v4106 = vrot.slane %v4105, 2
          %v4107 = vadd.f32 %v4105, %v4106
          %v4108 = vrot.slane %v4107, 1
          %v4109 = vadd.f32 %v4107, %v4108
          %v4110 = vmul.f32 %v4091, %v2935
          %v4111 = vmul.f32 %v4097, %v2935
          %v4112 = vmul.f32 %v4103, %v2935
          %v4113 = vmul.f32 %v4109, %v2935
          %v4114 = vadd.f32 %v4110, 1e-05
          %v4115 = vadd.f32 %v4111, 1e-05
          %v4116 = vadd.f32 %v4112, 1e-05
          %v4117 = vadd.f32 %v4113, 1e-05
          %v4118 = vrsqrt.pop %v4114
          %v4119 = vmul.f32 %v4118, %v4114
          %v4120 = vmul.f32 %v4119, %v4118
          %v4121 = vmul.f32 0.5, %v4120
          %v4122 = vsub.f32 1.5, %v4121
          %v4123 = vmul.f32 %v4118, %v4122
          %vm4124 = vweird.f32 %v4114
          %vm4125 = vweird.f32 %v4118
          %vm4126 = vmor %vm4124, %vm4125
          %v4127 = vsel %vm4126, %v4118, %v4123
          %v4128 = vrsqrt.pop %v4115
          %v4129 = vmul.f32 %v4128, %v4115
          %v4130 = vmul.f32 %v4129, %v4128
          %v4131 = vmul.f32 0.5, %v4130
          %v4132 = vsub.f32 1.5, %v4131
          %v4133 = vmul.f32 %v4128, %v4132
          %vm4134 = vweird.f32 %v4115
          %vm4135 = vweird.f32 %v4128
          %vm4136 = vmor %vm4134, %vm4135
          %v4137 = vsel %vm4136, %v4128, %v4133
          %v4138 = vrsqrt.pop %v4116
          %v4139 = vmul.f32 %v4138, %v4116
          %v4140 = vmul.f32 %v4139, %v4138
          %v4141 = vmul.f32 0.5, %v4140
          %v4142 = vsub.f32 1.5, %v4141
          %v4143 = vmul.f32 %v4138, %v4142
          %vm4144 = vweird.f32 %v4116
          %vm4145 = vweird.f32 %v4138
          %vm4146 = vmor %vm4144, %vm4145
          %v4147 = vsel %vm4146, %v4138, %v4143
          %v4148 = vrsqrt.pop %v4117
          %v4149 = vmul.f32 %v4148, %v4117
          %v4150 = vmul.f32 %v4149, %v4148
          %v4151 = vmul.f32 0.5, %v4150
          %v4152 = vsub.f32 1.5, %v4151
          %v4153 = vmul.f32 %v4148, %v4152
          %vm4154 = vweird.f32 %v4117
          %vm4155 = vweird.f32 %v4148
          %vm4156 = vmor %vm4154, %vm4155
          %v4157 = vsel %vm4156, %v4148, %v4153
          %v4158 = vmul.f32 %v4127, %v3022
          %v4159 = vmul.f32 %v4137, %v3023
          %v4160 = vmul.f32 %v4147, %v3024
          %v4161 = vmul.f32 %v4157, %v3025
          %v4162 = vperm.slane %v4158, 0
          %v4163 = vperm.slane %v4159, 0
          %v4164 = vperm.slane %v4160, 0
          %v4165 = vperm.slane %v4161, 0
          %v4166 = vmul.f32 %v4078, %v4162
          %v4167 = vmul.f32 %v4079, %v4163
          %v4168 = vmul.f32 %v4080, %v4164
          %v4169 = vmul.f32 %v4081, %v4165
          %v4170 = vadd.f32 %v4166, %v3044
          %v4171 = vadd.f32 %v4167, %v3045
          %v4172 = vadd.f32 %v4168, %v3046
          %v4173 = vadd.f32 %v4169, %v3047
          %v4174 = vadd.f32 %v4170, %v3052
          %v4175 = vadd.f32 %v4171, %v3053
          %v4176 = vadd.f32 %v4172, %v3054
          %v4177 = vadd.f32 %v4173, %v3055
          %v4178 = vpack.c.bf16 %v4174, %v4174
          %v4179 = vpack.c.bf16 %v4175, %v4175
          %v4180 = vpack.c.bf16 %v4176, %v4176
          %v4181 = vpack.c.bf16 %v4177, %v4177
          %v4182 = vld [vmem:[#allocation11] sm:$0xff]
          %v4183 = vld [vmem:[#allocation11 + $0x8] sm:$0xff]
          %v4184 = vld [vmem:[#allocation11 + $0x10] sm:$0xff]
          %v4185 = vld [vmem:[#allocation11 + $0x18] sm:$0xff]
          %v4186 = vld [vmem:[#allocation11 + $0x20] sm:$0xff]
          %v4187 = vld [vmem:[#allocation11 + $0x28] sm:$0xff]
          %v4188 = vld [vmem:[#allocation11 + $0x30] sm:$0xff]
          %v4189 = vld [vmem:[#allocation11 + $0x38] sm:$0xff]
          %v4190 = vld [vmem:[#allocation11 + $0x40] sm:$0xff]
          %v4191 = vld [vmem:[#allocation11 + $0x48] sm:$0xff]
          %v4192 = vld [vmem:[#allocation11 + $0x50] sm:$0xff]
          %v4193 = vld [vmem:[#allocation11 + $0x58] sm:$0xff]
          %v4194 = vld [vmem:[#allocation11 + $0x60] sm:$0xff]
          %v4195 = vld [vmem:[#allocation11 + $0x68] sm:$0xff]
          %v4196 = vld [vmem:[#allocation11 + $0x70] sm:$0xff]
          %v4197 = vld [vmem:[#allocation11 + $0x78] sm:$0xff]
          %v4198 = vld [vmem:[#allocation11 + $0x80] sm:$0xff]
          %v4199 = vld [vmem:[#allocation11 + $0x88] sm:$0xff]
          %v4200 = vld [vmem:[#allocation11 + $0x90] sm:$0xff]
          %v4201 = vld [vmem:[#allocation11 + $0x98] sm:$0xff]
          %v4202 = vld [vmem:[#allocation11 + $0xa0] sm:$0xff]
          %v4203 = vld [vmem:[#allocation11 + $0xa8] sm:$0xff]
          %v4204 = vld [vmem:[#allocation11 + $0xb0] sm:$0xff]
          %v4205 = vld [vmem:[#allocation11 + $0xb8] sm:$0xff]
          %v4206 = vld [vmem:[#allocation11 + $0xc0] sm:$0xff]
          %v4207 = vld [vmem:[#allocation11 + $0xc8] sm:$0xff]
          %v4208 = vld [vmem:[#allocation11 + $0xd0] sm:$0xff]
          %v4209 = vld [vmem:[#allocation11 + $0xd8] sm:$0xff]
          %v4210 = vld [vmem:[#allocation11 + $0xe0] sm:$0xff]
          %v4211 = vld [vmem:[#allocation11 + $0xe8] sm:$0xff]
          %v4212 = vld [vmem:[#allocation11 + $0xf0] sm:$0xff]
          %v4213 = vld [vmem:[#allocation11 + $0xf8] sm:$0xff]
          %v4214 = vld [vmem:[#allocation11 + $0x100] sm:$0xff]
          %v4215 = vld [vmem:[#allocation11 + $0x108] sm:$0xff]
          %v4216 = vld [vmem:[#allocation11 + $0x110] sm:$0xff]
          %v4217 = vld [vmem:[#allocation11 + $0x118] sm:$0xff]
          %v4218 = vld [vmem:[#allocation11 + $0x120] sm:$0xff]
          %v4219 = vld [vmem:[#allocation11 + $0x128] sm:$0xff]
          %v4220 = vld [vmem:[#allocation11 + $0x130] sm:$0xff]
          %v4221 = vld [vmem:[#allocation11 + $0x138] sm:$0xff]
          %v4222 = vld [vmem:[#allocation11 + $0x140] sm:$0xff]
          %v4223 = vld [vmem:[#allocation11 + $0x148] sm:$0xff]
          %v4224 = vld [vmem:[#allocation11 + $0x150] sm:$0xff]
          %v4225 = vld [vmem:[#allocation11 + $0x158] sm:$0xff]
          %v4226 = vld [vmem:[#allocation11 + $0x160] sm:$0xff]
          %v4227 = vld [vmem:[#allocation11 + $0x168] sm:$0xff]
          %v4228 = vld [vmem:[#allocation11 + $0x170] sm:$0xff]
          %v4229 = vld [vmem:[#allocation11 + $0x178] sm:$0xff]
          %v4230 = vld [vmem:[#allocation11 + $0x180] sm:$0xff]
          %v4231 = vld [vmem:[#allocation11 + $0x188] sm:$0xff]
          %v4232 = vld [vmem:[#allocation11 + $0x190] sm:$0xff]
          %v4233 = vld [vmem:[#allocation11 + $0x198] sm:$0xff]
          %v4234 = vld [vmem:[#allocation11 + $0x1a0] sm:$0xff]
          %v4235 = vld [vmem:[#allocation11 + $0x1a8] sm:$0xff]
          %v4236 = vld [vmem:[#allocation11 + $0x1b0] sm:$0xff]
          %v4237 = vld [vmem:[#allocation11 + $0x1b8] sm:$0xff]
          %v4238 = vld [vmem:[#allocation11 + $0x1c0] sm:$0xff]
          %v4239 = vld [vmem:[#allocation11 + $0x1c8] sm:$0xff]
          %v4240 = vld [vmem:[#allocation11 + $0x1d0] sm:$0xff]
          %v4241 = vld [vmem:[#allocation11 + $0x1d8] sm:$0xff]
          %v4242 = vld [vmem:[#allocation11 + $0x1e0] sm:$0xff]
          %v4243 = vld [vmem:[#allocation11 + $0x1e8] sm:$0xff]
          %v4244 = vld [vmem:[#allocation11 + $0x1f0] sm:$0xff]
          %v4245 = vld [vmem:[#allocation11 + $0x1f8] sm:$0xff]
          %v4246 = vld [vmem:[#allocation12] sm:$0x3]
          %v4248 = vperm.slane %v4246, 0
          %v4249 = vperm.slane %v4246, 1
          %v4316 = vunpack.c.l.b16 %v4182
          %v4317 = vunpack.c.h.b16 %v4182
          %v4318 = vunpack.c.l.b16 %v4183
          %v4319 = vunpack.c.h.b16 %v4183
          %v4320 = vunpack.c.l.b16 %v4184
          %v4321 = vunpack.c.h.b16 %v4184
          %v4322 = vunpack.c.l.b16 %v4185
          %v4323 = vunpack.c.h.b16 %v4185
          %v4324 = vunpack.c.l.b16 %v4186
          %v4325 = vunpack.c.h.b16 %v4186
          %v4326 = vunpack.c.l.b16 %v4187
          %v4327 = vunpack.c.h.b16 %v4187
          %v4328 = vunpack.c.l.b16 %v4188
          %v4329 = vunpack.c.h.b16 %v4188
          %v4330 = vunpack.c.l.b16 %v4189
          %v4331 = vunpack.c.h.b16 %v4189
          %v4332 = vunpack.c.l.b16 %v4190
          %v4333 = vunpack.c.h.b16 %v4190
          %v4334 = vunpack.c.l.b16 %v4191
          %v4335 = vunpack.c.h.b16 %v4191
          %v4336 = vunpack.c.l.b16 %v4192
          %v4337 = vunpack.c.h.b16 %v4192
          %v4338 = vunpack.c.l.b16 %v4193
          %v4339 = vunpack.c.h.b16 %v4193
          %v4340 = vunpack.c.l.b16 %v4194
          %v4341 = vunpack.c.h.b16 %v4194
          %v4342 = vunpack.c.l.b16 %v4195
          %v4343 = vunpack.c.h.b16 %v4195
          %v4344 = vunpack.c.l.b16 %v4196
          %v4345 = vunpack.c.h.b16 %v4196
          %v4346 = vunpack.c.l.b16 %v4197
          %v4347 = vunpack.c.h.b16 %v4197
          %v4348 = vunpack.c.l.b16 %v4198
          %v4349 = vunpack.c.h.b16 %v4198
          %v4350 = vunpack.c.l.b16 %v4199
          %v4351 = vunpack.c.h.b16 %v4199
          %v4352 = vunpack.c.l.b16 %v4200
          %v4353 = vunpack.c.h.b16 %v4200
          %v4354 = vunpack.c.l.b16 %v4201
          %v4355 = vunpack.c.h.b16 %v4201
          %v4356 = vunpack.c.l.b16 %v4202
          %v4357 = vunpack.c.h.b16 %v4202
          %v4358 = vunpack.c.l.b16 %v4203
          %v4359 = vunpack.c.h.b16 %v4203
          %v4360 = vunpack.c.l.b16 %v4204
          %v4361 = vunpack.c.h.b16 %v4204
          %v4362 = vunpack.c.l.b16 %v4205
          %v4363 = vunpack.c.h.b16 %v4205
          %v4364 = vunpack.c.l.b16 %v4206
          %v4365 = vunpack.c.h.b16 %v4206
          %v4366 = vunpack.c.l.b16 %v4207
          %v4367 = vunpack.c.h.b16 %v4207
          %v4368 = vunpack.c.l.b16 %v4208
          %v4369 = vunpack.c.h.b16 %v4208
          %v4370 = vunpack.c.l.b16 %v4209
          %v4371 = vunpack.c.h.b16 %v4209
          %v4372 = vunpack.c.l.b16 %v4210
          %v4373 = vunpack.c.h.b16 %v4210
          %v4374 = vunpack.c.l.b16 %v4211
          %v4375 = vunpack.c.h.b16 %v4211
          %v4376 = vunpack.c.l.b16 %v4212
          %v4377 = vunpack.c.h.b16 %v4212
          %v4378 = vunpack.c.l.b16 %v4213
          %v4379 = vunpack.c.h.b16 %v4213
          %v4380 = vunpack.c.l.b16 %v4214
          %v4381 = vunpack.c.h.b16 %v4214
          %v4382 = vunpack.c.l.b16 %v4215
          %v4383 = vunpack.c.h.b16 %v4215
          %v4384 = vunpack.c.l.b16 %v4216
          %v4385 = vunpack.c.h.b16 %v4216
          %v4386 = vunpack.c.l.b16 %v4217
          %v4387 = vunpack.c.h.b16 %v4217
          %v4388 = vunpack.c.l.b16 %v4218
          %v4389 = vunpack.c.h.b16 %v4218
          %v4390 = vunpack.c.l.b16 %v4219
          %v4391 = vunpack.c.h.b16 %v4219
          %v4392 = vunpack.c.l.b16 %v4220
          %v4393 = vunpack.c.h.b16 %v4220
          %v4394 = vunpack.c.l.b16 %v4221
          %v4395 = vunpack.c.h.b16 %v4221
          %v4396 = vunpack.c.l.b16 %v4222
          %v4397 = vunpack.c.h.b16 %v4222
          %v4398 = vunpack.c.l.b16 %v4223
          %v4399 = vunpack.c.h.b16 %v4223
          %v4400 = vunpack.c.l.b16 %v4224
          %v4401 = vunpack.c.h.b16 %v4224
          %v4402 = vunpack.c.l.b16 %v4225
          %v4403 = vunpack.c.h.b16 %v4225
          %v4404 = vunpack.c.l.b16 %v4226
          %v4405 = vunpack.c.h.b16 %v4226
          %v4406 = vunpack.c.l.b16 %v4227
          %v4407 = vunpack.c.h.b16 %v4227
          %v4408 = vunpack.c.l.b16 %v4228
          %v4409 = vunpack.c.h.b16 %v4228
          %v4410 = vunpack.c.l.b16 %v4229
          %v4411 = vunpack.c.h.b16 %v4229
          %v4412 = vunpack.c.l.b16 %v4230
          %v4413 = vunpack.c.h.b16 %v4230
          %v4414 = vunpack.c.l.b16 %v4231
          %v4415 = vunpack.c.h.b16 %v4231
          %v4416 = vunpack.c.l.b16 %v4232
          %v4417 = vunpack.c.h.b16 %v4232
          %v4418 = vunpack.c.l.b16 %v4233
          %v4419 = vunpack.c.h.b16 %v4233
          %v4420 = vunpack.c.l.b16 %v4234
          %v4421 = vunpack.c.h.b16 %v4234
          %v4422 = vunpack.c.l.b16 %v4235
          %v4423 = vunpack.c.h.b16 %v4235
          %v4424 = vunpack.c.l.b16 %v4236
          %v4425 = vunpack.c.h.b16 %v4236
          %v4426 = vunpack.c.l.b16 %v4237
          %v4427 = vunpack.c.h.b16 %v4237
          %v4428 = vunpack.c.l.b16 %v4238
          %v4429 = vunpack.c.h.b16 %v4238
          %v4430 = vunpack.c.l.b16 %v4239
          %v4431 = vunpack.c.h.b16 %v4239
          %v4432 = vunpack.c.l.b16 %v4240
          %v4433 = vunpack.c.h.b16 %v4240
          %v4434 = vunpack.c.l.b16 %v4241
          %v4435 = vunpack.c.h.b16 %v4241
          %v4436 = vunpack.c.l.b16 %v4242
          %v4437 = vunpack.c.h.b16 %v4242
          %v4438 = vunpack.c.l.b16 %v4243
          %v4439 = vunpack.c.h.b16 %v4243
          %v4440 = vunpack.c.l.b16 %v4244
          %v4441 = vunpack.c.h.b16 %v4244
          %v4442 = vunpack.c.l.b16 %v4245
          %v4443 = vunpack.c.h.b16 %v4245
          %v4444 = vpack.c.b16 %v4318, %v4316
          %v4445 = vpack.c.b16 %v4319, %v4317
          %v4446 = vpack.c.b16 %v4322, %v4320
          %v4447 = vpack.c.b16 %v4323, %v4321
          %v4448 = vpack.c.b16 %v4326, %v4324
          %v4449 = vpack.c.b16 %v4327, %v4325
          %v4450 = vpack.c.b16 %v4330, %v4328
          %v4451 = vpack.c.b16 %v4331, %v4329
          %v4452 = vpack.c.b16 %v4334, %v4332
          %v4453 = vpack.c.b16 %v4335, %v4333
          %v4454 = vpack.c.b16 %v4338, %v4336
          %v4455 = vpack.c.b16 %v4339, %v4337
          %v4456 = vpack.c.b16 %v4342, %v4340
          %v4457 = vpack.c.b16 %v4343, %v4341
          %v4458 = vpack.c.b16 %v4346, %v4344
          %v4459 = vpack.c.b16 %v4347, %v4345
          %v4460 = vpack.c.b16 %v4350, %v4348
          %v4461 = vpack.c.b16 %v4351, %v4349
          %v4462 = vpack.c.b16 %v4354, %v4352
          %v4463 = vpack.c.b16 %v4355, %v4353
          %v4464 = vpack.c.b16 %v4358, %v4356
          %v4465 = vpack.c.b16 %v4359, %v4357
          %v4466 = vpack.c.b16 %v4362, %v4360
          %v4467 = vpack.c.b16 %v4363, %v4361
          %v4468 = vpack.c.b16 %v4366, %v4364
          %v4469 = vpack.c.b16 %v4367, %v4365
          %v4470 = vpack.c.b16 %v4370, %v4368
          %v4471 = vpack.c.b16 %v4371, %v4369
          %v4472 = vpack.c.b16 %v4374, %v4372
          %v4473 = vpack.c.b16 %v4375, %v4373
          %v4474 = vpack.c.b16 %v4378, %v4376
          %v4475 = vpack.c.b16 %v4379, %v4377
          %v4476 = vpack.c.b16 %v4382, %v4380
          %v4477 = vpack.c.b16 %v4383, %v4381
          %v4478 = vpack.c.b16 %v4386, %v4384
          %v4479 = vpack.c.b16 %v4387, %v4385
          %v4480 = vpack.c.b16 %v4390, %v4388
          %v4481 = vpack.c.b16 %v4391, %v4389
          %v4482 = vpack.c.b16 %v4394, %v4392
          %v4483 = vpack.c.b16 %v4395, %v4393
          %v4484 = vpack.c.b16 %v4398, %v4396
          %v4485 = vpack.c.b16 %v4399, %v4397
          %v4486 = vpack.c.b16 %v4402, %v4400
          %v4487 = vpack.c.b16 %v4403, %v4401
          %v4488 = vpack.c.b16 %v4406, %v4404
          %v4489 = vpack.c.b16 %v4407, %v4405
          %v4490 = vpack.c.b16 %v4410, %v4408
          %v4491 = vpack.c.b16 %v4411, %v4409
          %v4492 = vpack.c.b16 %v4414, %v4412
          %v4493 = vpack.c.b16 %v4415, %v4413
          %v4494 = vpack.c.b16 %v4418, %v4416
          %v4495 = vpack.c.b16 %v4419, %v4417
          %v4496 = vpack.c.b16 %v4422, %v4420
          %v4497 = vpack.c.b16 %v4423, %v4421
          %v4498 = vpack.c.b16 %v4426, %v4424
          %v4499 = vpack.c.b16 %v4427, %v4425
          %v4500 = vpack.c.b16 %v4430, %v4428
          %v4501 = vpack.c.b16 %v4431, %v4429
          %v4502 = vpack.c.b16 %v4434, %v4432
          %v4503 = vpack.c.b16 %v4435, %v4433
          %v4504 = vpack.c.b16 %v4438, %v4436
          %v4505 = vpack.c.b16 %v4439, %v4437
          %v4506 = vpack.c.b16 %v4442, %v4440
          %v4507 = vpack.c.b16 %v4443, %v4441
          %4572 = vmatpush.bf16.msra.mxu0 %v4458
          %4573 = vmatpush.bf16.msra.mxu0 %v4456
          %4574 = vmatpush.bf16.msra.mxu0 %v4454
          %4575 = vmatpush.bf16.msra.mxu0 %v4452
          %4576 = vmatpush.bf16.msra.mxu0 %v4450
          %4577 = vmatpush.bf16.msra.mxu0 %v4448
          %4578 = vmatpush.bf16.msra.mxu0 %v4446
          %4579 = vmatpush.bf16.msra.mxu0 %v4444
          %4580 = vmatmul.bf16.gmra.mxu0 %v4178
          %v4581 = vpop.f32.mrf.mxu0
          %v4582 = vadd.f32 %v4248, %v4581
          %v4583 = vpop.f32.mrf.mxu0
          %4584 = vdwg.mxu0
          %4585 = vmatpush.bf16.msra.mxu0 %v4474
          %4586 = vmatpush.bf16.msra.mxu0 %v4472
          %4587 = vmatpush.bf16.msra.mxu0 %v4470
          %4588 = vmatpush.bf16.msra.mxu0 %v4468
          %4589 = vmatpush.bf16.msra.mxu0 %v4466
          %4590 = vmatpush.bf16.msra.mxu0 %v4464
          %4591 = vmatpush.bf16.msra.mxu0 %v4462
          %4592 = vmatpush.bf16.msra.mxu0 %v4460
          %4593 = vmatmul.bf16.gmra.mxu0 %v4179
          %v4594 = vpop.f32.mrf.mxu0
          %v4595 = vadd.f32 %v4582, %v4594
          %v4596 = vpop.f32.mrf.mxu0
          %4597 = vdwg.mxu0
          %4598 = vmatpush.bf16.msra.mxu0 %v4490
          %4599 = vmatpush.bf16.msra.mxu0 %v4488
          %4600 = vmatpush.bf16.msra.mxu0 %v4486
          %4601 = vmatpush.bf16.msra.mxu0 %v4484
          %4602 = vmatpush.bf16.msra.mxu0 %v4482
          %4603 = vmatpush.bf16.msra.mxu0 %v4480
          %4604 = vmatpush.bf16.msra.mxu0 %v4478
          %4605 = vmatpush.bf16.msra.mxu0 %v4476
          %4606 = vmatmul.bf16.gmra.mxu0 %v4180
          %v4607 = vpop.f32.mrf.mxu0
          %v4608 = vadd.f32 %v4595, %v4607
          %v4609 = vpop.f32.mrf.mxu0
          %4610 = vdwg.mxu0
          %4611 = vmatpush.bf16.msra.mxu0 %v4506
          %4612 = vmatpush.bf16.msra.mxu0 %v4504
          %4613 = vmatpush.bf16.msra.mxu0 %v4502
          %4614 = vmatpush.bf16.msra.mxu0 %v4500
          %4615 = vmatpush.bf16.msra.mxu0 %v4498
          %4616 = vmatpush.bf16.msra.mxu0 %v4496
          %4617 = vmatpush.bf16.msra.mxu0 %v4494
          %4618 = vmatpush.bf16.msra.mxu0 %v4492
          %4619 = vmatmul.bf16.gmra.mxu0 %v4181
          %v4620 = vpop.f32.mrf.mxu0
          %v4621 = vadd.f32 %v4608, %v4620
          %v4622 = vpop.f32.mrf.mxu0
          %4623 = vdwg.mxu0
          %4624 = vmatpush.bf16.msra.mxu0 %v4459
          %4625 = vmatpush.bf16.msra.mxu0 %v4457
          %4626 = vmatpush.bf16.msra.mxu0 %v4455
          %4627 = vmatpush.bf16.msra.mxu0 %v4453
          %4628 = vmatpush.bf16.msra.mxu0 %v4451
          %4629 = vmatpush.bf16.msra.mxu0 %v4449
          %4630 = vmatpush.bf16.msra.mxu0 %v4447
          %4631 = vmatpush.bf16.msra.mxu0 %v4445
          %4632 = vmatmul.bf16.gmra.mxu0 %v4178
          %v4633 = vpop.f32.mrf.mxu0
          %v4634 = vadd.f32 %v4249, %v4633
          %v4635 = vpop.f32.mrf.mxu0
          %4636 = vdwg.mxu0
          %4637 = vmatpush.bf16.msra.mxu0 %v4475
          %4638 = vmatpush.bf16.msra.mxu0 %v4473
          %4639 = vmatpush.bf16.msra.mxu0 %v4471
          %4640 = vmatpush.bf16.msra.mxu0 %v4469
          %4641 = vmatpush.bf16.msra.mxu0 %v4467
          %4642 = vmatpush.bf16.msra.mxu0 %v4465
          %4643 = vmatpush.bf16.msra.mxu0 %v4463
          %4644 = vmatpush.bf16.msra.mxu0 %v4461
          %4645 = vmatmul.bf16.gmra.mxu0 %v4179
          %v4646 = vpop.f32.mrf.mxu0
          %v4647 = vadd.f32 %v4634, %v4646
          %v4648 = vpop.f32.mrf.mxu0
          %4649 = vdwg.mxu0
          %4650 = vmatpush.bf16.msra.mxu0 %v4491
          %4651 = vmatpush.bf16.msra.mxu0 %v4489
          %4652 = vmatpush.bf16.msra.mxu0 %v4487
          %4653 = vmatpush.bf16.msra.mxu0 %v4485
          %4654 = vmatpush.bf16.msra.mxu0 %v4483
          %4655 = vmatpush.bf16.msra.mxu0 %v4481
          %4656 = vmatpush.bf16.msra.mxu0 %v4479
          %4657 = vmatpush.bf16.msra.mxu0 %v4477
          %4658 = vmatmul.bf16.gmra.mxu0 %v4180
          %v4659 = vpop.f32.mrf.mxu0
          %v4660 = vadd.f32 %v4647, %v4659
          %v4661 = vpop.f32.mrf.mxu0
          %4662 = vdwg.mxu0
          %4663 = vmatpush.bf16.msra.mxu0 %v4507
          %4664 = vmatpush.bf16.msra.mxu0 %v4505
          %4665 = vmatpush.bf16.msra.mxu0 %v4503
          %4666 = vmatpush.bf16.msra.mxu0 %v4501
          %4667 = vmatpush.bf16.msra.mxu0 %v4499
          %4668 = vmatpush.bf16.msra.mxu0 %v4497
          %4669 = vmatpush.bf16.msra.mxu0 %v4495
          %4670 = vmatpush.bf16.msra.mxu0 %v4493
          %4671 = vmatmul.bf16.gmra.mxu0 %v4181
          %v4672 = vpop.f32.mrf.mxu0
          %v4673 = vadd.f32 %v4660, %v4672
          %v4674 = vpop.f32.mrf.mxu0
          %4675 = vdwg.mxu0
          %v4676 = vmax.f32 %v4621, 0.0
          %v4677 = vmax.f32 %v4673, 0.0
          %v4678 = vrot.slane %v4676, 4
          %v4679 = vadd.f32 %v4676, %v4678
          %v4680 = vrot.slane %v4679, 2
          %v4681 = vadd.f32 %v4679, %v4680
          %v4682 = vrot.slane %v4681, 1
          %v4683 = vadd.f32 %v4681, %v4682
          %v4684 = vrot.slane %v4677, 4
          %v4685 = vadd.f32 %v4677, %v4684
          %v4686 = vrot.slane %v4685, 2
          %v4687 = vadd.f32 %v4685, %v4686
          %v4688 = vrot.slane %v4687, 1
          %v4689 = vadd.f32 %v4687, %v4688
          %v4690 = vmul.f32 %v4683, %v2935
          %v4691 = vmul.f32 %v4689, %v2935
          %v4692 = vsub.f32 %v4676, %v4690
          %v4693 = vsub.f32 %v4677, %v4691
          %v4694 = vmul.f32 %v4692, %v4692
          %v4695 = vmul.f32 %v4693, %v4693
          %v4696 = vrot.slane %v4694, 4
          %v4697 = vadd.f32 %v4694, %v4696
          %v4698 = vrot.slane %v4697, 2
          %v4699 = vadd.f32 %v4697, %v4698
          %v4700 = vrot.slane %v4699, 1
          %v4701 = vadd.f32 %v4699, %v4700
          %v4702 = vrot.slane %v4695, 4
          %v4703 = vadd.f32 %v4695, %v4702
          %v4704 = vrot.slane %v4703, 2
          %v4705 = vadd.f32 %v4703, %v4704
          %v4706 = vrot.slane %v4705, 1
          %v4707 = vadd.f32 %v4705, %v4706
          %v4708 = vmul.f32 %v4701, %v2935
          %v4709 = vmul.f32 %v4707, %v2935
          %v4710 = vadd.f32 %v4708, 1e-05
          %v4711 = vadd.f32 %v4709, 1e-05
          %v4712 = vrsqrt.pop %v4710
          %v4713 = vmul.f32 %v4712, %v4710
          %v4714 = vmul.f32 %v4713, %v4712
          %v4715 = vmul.f32 0.5, %v4714
          %v4716 = vsub.f32 1.5, %v4715
          %v4717 = vmul.f32 %v4712, %v4716
          %vm4718 = vweird.f32 %v4710
          %vm4719 = vweird.f32 %v4712
          %vm4720 = vmor %vm4718, %vm4719
          %v4721 = vsel %vm4720, %v4712, %v4717
          %v4722 = vrsqrt.pop %v4711
          %v4723 = vmul.f32 %v4722, %v4711
          %v4724 = vmul.f32 %v4723, %v4722
          %v4725 = vmul.f32 0.5, %v4724
          %v4726 = vsub.f32 1.5, %v4725
          %v4727 = vmul.f32 %v4722, %v4726
          %vm4728 = vweird.f32 %v4711
          %vm4729 = vweird.f32 %v4722
          %vm4730 = vmor %vm4728, %vm4729
          %v4731 = vsel %vm4730, %v4722, %v4727
          %v4732 = vld [vmem:[#allocation24] sm:$0x3]
          %v4734 = vperm.slane %v4732, 0
          %v4735 = vperm.slane %v4732, 1
          %v4738 = vmul.f32 %v4721, %v4734
          %v4739 = vmul.f32 %v4731, %v4735
          %v4740 = vperm.slane %v4738, 0
          %v4741 = vperm.slane %v4739, 0
          %v4742 = vmul.f32 %v4692, %v4740
          %v4743 = vmul.f32 %v4693, %v4741
          %v4744 = vld [vmem:[#allocation26] sm:$0x3]
          %v4746 = vperm.slane %v4744, 0
          %v4747 = vperm.slane %v4744, 1
          %v4750 = vadd.f32 %v4742, %v4746
          %v4751 = vadd.f32 %v4743, %v4747
          %v4752 = vpack.c.bf16 %v4750, %v4750
          %v4753 = vpack.c.bf16 %v4751, %v4751
          %v4754 = vld [vmem:[#allocation14] sm:$0xff]
          %v4755 = vld [vmem:[#allocation14 + $0x8] sm:$0xff]
          %v4756 = vld [vmem:[#allocation14 + $0x10] sm:$0xff]
          %v4757 = vld [vmem:[#allocation14 + $0x18] sm:$0xff]
          %v4758 = vld [vmem:[#allocation14 + $0x20] sm:$0xff]
          %v4759 = vld [vmem:[#allocation14 + $0x28] sm:$0xff]
          %v4760 = vld [vmem:[#allocation14 + $0x30] sm:$0xff]
          %v4761 = vld [vmem:[#allocation14 + $0x38] sm:$0xff]
          %v4762 = vld [vmem:[#allocation14 + $0x40] sm:$0xff]
          %v4763 = vld [vmem:[#allocation14 + $0x48] sm:$0xff]
          %v4764 = vld [vmem:[#allocation14 + $0x50] sm:$0xff]
          %v4765 = vld [vmem:[#allocation14 + $0x58] sm:$0xff]
          %v4766 = vld [vmem:[#allocation14 + $0x60] sm:$0xff]
          %v4767 = vld [vmem:[#allocation14 + $0x68] sm:$0xff]
          %v4768 = vld [vmem:[#allocation14 + $0x70] sm:$0xff]
          %v4769 = vld [vmem:[#allocation14 + $0x78] sm:$0xff]
          %v4770 = vld [vmem:[#allocation14 + $0x80] sm:$0xff]
          %v4771 = vld [vmem:[#allocation14 + $0x88] sm:$0xff]
          %v4772 = vld [vmem:[#allocation14 + $0x90] sm:$0xff]
          %v4773 = vld [vmem:[#allocation14 + $0x98] sm:$0xff]
          %v4774 = vld [vmem:[#allocation14 + $0xa0] sm:$0xff]
          %v4775 = vld [vmem:[#allocation14 + $0xa8] sm:$0xff]
          %v4776 = vld [vmem:[#allocation14 + $0xb0] sm:$0xff]
          %v4777 = vld [vmem:[#allocation14 + $0xb8] sm:$0xff]
          %v4778 = vld [vmem:[#allocation14 + $0xc0] sm:$0xff]
          %v4779 = vld [vmem:[#allocation14 + $0xc8] sm:$0xff]
          %v4780 = vld [vmem:[#allocation14 + $0xd0] sm:$0xff]
          %v4781 = vld [vmem:[#allocation14 + $0xd8] sm:$0xff]
          %v4782 = vld [vmem:[#allocation14 + $0xe0] sm:$0xff]
          %v4783 = vld [vmem:[#allocation14 + $0xe8] sm:$0xff]
          %v4784 = vld [vmem:[#allocation14 + $0xf0] sm:$0xff]
          %v4785 = vld [vmem:[#allocation14 + $0xf8] sm:$0xff]
          %v4786 = vld [vmem:[#allocation15] sm:$0x3]
          %v4788 = vperm.slane %v4786, 0
          %v4789 = vperm.slane %v4786, 1
          %v4824 = vunpack.c.l.b16 %v4754
          %v4825 = vunpack.c.h.b16 %v4754
          %v4826 = vunpack.c.l.b16 %v4755
          %v4827 = vunpack.c.h.b16 %v4755
          %v4828 = vunpack.c.l.b16 %v4756
          %v4829 = vunpack.c.h.b16 %v4756
          %v4830 = vunpack.c.l.b16 %v4757
          %v4831 = vunpack.c.h.b16 %v4757
          %v4832 = vunpack.c.l.b16 %v4758
          %v4833 = vunpack.c.h.b16 %v4758
          %v4834 = vunpack.c.l.b16 %v4759
          %v4835 = vunpack.c.h.b16 %v4759
          %v4836 = vunpack.c.l.b16 %v4760
          %v4837 = vunpack.c.h.b16 %v4760
          %v4838 = vunpack.c.l.b16 %v4761
          %v4839 = vunpack.c.h.b16 %v4761
          %v4840 = vunpack.c.l.b16 %v4762
          %v4841 = vunpack.c.h.b16 %v4762
          %v4842 = vunpack.c.l.b16 %v4763
          %v4843 = vunpack.c.h.b16 %v4763
          %v4844 = vunpack.c.l.b16 %v4764
          %v4845 = vunpack.c.h.b16 %v4764
          %v4846 = vunpack.c.l.b16 %v4765
          %v4847 = vunpack.c.h.b16 %v4765
          %v4848 = vunpack.c.l.b16 %v4766
          %v4849 = vunpack.c.h.b16 %v4766
          %v4850 = vunpack.c.l.b16 %v4767
          %v4851 = vunpack.c.h.b16 %v4767
          %v4852 = vunpack.c.l.b16 %v4768
          %v4853 = vunpack.c.h.b16 %v4768
          %v4854 = vunpack.c.l.b16 %v4769
          %v4855 = vunpack.c.h.b16 %v4769
          %v4856 = vunpack.c.l.b16 %v4770
          %v4857 = vunpack.c.h.b16 %v4770
          %v4858 = vunpack.c.l.b16 %v4771
          %v4859 = vunpack.c.h.b16 %v4771
          %v4860 = vunpack.c.l.b16 %v4772
          %v4861 = vunpack.c.h.b16 %v4772
          %v4862 = vunpack.c.l.b16 %v4773
          %v4863 = vunpack.c.h.b16 %v4773
          %v4864 = vunpack.c.l.b16 %v4774
          %v4865 = vunpack.c.h.b16 %v4774
          %v4866 = vunpack.c.l.b16 %v4775
          %v4867 = vunpack.c.h.b16 %v4775
          %v4868 = vunpack.c.l.b16 %v4776
          %v4869 = vunpack.c.h.b16 %v4776
          %v4870 = vunpack.c.l.b16 %v4777
          %v4871 = vunpack.c.h.b16 %v4777
          %v4872 = vunpack.c.l.b16 %v4778
          %v4873 = vunpack.c.h.b16 %v4778
          %v4874 = vunpack.c.l.b16 %v4779
          %v4875 = vunpack.c.h.b16 %v4779
          %v4876 = vunpack.c.l.b16 %v4780
          %v4877 = vunpack.c.h.b16 %v4780
          %v4878 = vunpack.c.l.b16 %v4781
          %v4879 = vunpack.c.h.b16 %v4781
          %v4880 = vunpack.c.l.b16 %v4782
          %v4881 = vunpack.c.h.b16 %v4782
          %v4882 = vunpack.c.l.b16 %v4783
          %v4883 = vunpack.c.h.b16 %v4783
          %v4884 = vunpack.c.l.b16 %v4784
          %v4885 = vunpack.c.h.b16 %v4784
          %v4886 = vunpack.c.l.b16 %v4785
          %v4887 = vunpack.c.h.b16 %v4785
          %v4888 = vpack.c.b16 %v4826, %v4824
          %v4889 = vpack.c.b16 %v4827, %v4825
          %v4890 = vpack.c.b16 %v4830, %v4828
          %v4891 = vpack.c.b16 %v4831, %v4829
          %v4892 = vpack.c.b16 %v4834, %v4832
          %v4893 = vpack.c.b16 %v4835, %v4833
          %v4894 = vpack.c.b16 %v4838, %v4836
          %v4895 = vpack.c.b16 %v4839, %v4837
          %v4896 = vpack.c.b16 %v4842, %v4840
          %v4897 = vpack.c.b16 %v4843, %v4841
          %v4898 = vpack.c.b16 %v4846, %v4844
          %v4899 = vpack.c.b16 %v4847, %v4845
          %v4900 = vpack.c.b16 %v4850, %v4848
          %v4901 = vpack.c.b16 %v4851, %v4849
          %v4902 = vpack.c.b16 %v4854, %v4852
          %v4903 = vpack.c.b16 %v4855, %v4853
          %v4904 = vpack.c.b16 %v4858, %v4856
          %v4905 = vpack.c.b16 %v4859, %v4857
          %v4906 = vpack.c.b16 %v4862, %v4860
          %v4907 = vpack.c.b16 %v4863, %v4861
          %v4908 = vpack.c.b16 %v4866, %v4864
          %v4909 = vpack.c.b16 %v4867, %v4865
          %v4910 = vpack.c.b16 %v4870, %v4868
          %v4911 = vpack.c.b16 %v4871, %v4869
          %v4912 = vpack.c.b16 %v4874, %v4872
          %v4913 = vpack.c.b16 %v4875, %v4873
          %v4914 = vpack.c.b16 %v4878, %v4876
          %v4915 = vpack.c.b16 %v4879, %v4877
          %v4916 = vpack.c.b16 %v4882, %v4880
          %v4917 = vpack.c.b16 %v4883, %v4881
          %v4918 = vpack.c.b16 %v4886, %v4884
          %v4919 = vpack.c.b16 %v4887, %v4885
          %4952 = vmatpush.bf16.msra.mxu0 %v4902
          %4953 = vmatpush.bf16.msra.mxu0 %v4900
          %4954 = vmatpush.bf16.msra.mxu0 %v4898
          %4955 = vmatpush.bf16.msra.mxu0 %v4896
          %4956 = vmatpush.bf16.msra.mxu0 %v4894
          %4957 = vmatpush.bf16.msra.mxu0 %v4892
          %4958 = vmatpush.bf16.msra.mxu0 %v4890
          %4959 = vmatpush.bf16.msra.mxu0 %v4888
          %4960 = vmatmul.bf16.gmra.mxu0 %v4752
          %v4961 = vpop.f32.mrf.mxu0
          %v4962 = vadd.f32 %v4788, %v4961
          %v4963 = vpop.f32.mrf.mxu0
          %4964 = vdwg.mxu0
          %4965 = vmatpush.bf16.msra.mxu0 %v4918
          %4966 = vmatpush.bf16.msra.mxu0 %v4916
          %4967 = vmatpush.bf16.msra.mxu0 %v4914
          %4968 = vmatpush.bf16.msra.mxu0 %v4912
          %4969 = vmatpush.bf16.msra.mxu0 %v4910
          %4970 = vmatpush.bf16.msra.mxu0 %v4908
          %4971 = vmatpush.bf16.msra.mxu0 %v4906
          %4972 = vmatpush.bf16.msra.mxu0 %v4904
          %4973 = vmatmul.bf16.gmra.mxu0 %v4753
          %v4974 = vpop.f32.mrf.mxu0
          %v4975 = vadd.f32 %v4962, %v4974
          %v4976 = vpop.f32.mrf.mxu0
          %4977 = vdwg.mxu0
          %4978 = vmatpush.bf16.msra.mxu0 %v4903
          %4979 = vmatpush.bf16.msra.mxu0 %v4901
          %4980 = vmatpush.bf16.msra.mxu0 %v4899
          %4981 = vmatpush.bf16.msra.mxu0 %v4897
          %4982 = vmatpush.bf16.msra.mxu0 %v4895
          %4983 = vmatpush.bf16.msra.mxu0 %v4893
          %4984 = vmatpush.bf16.msra.mxu0 %v4891
          %4985 = vmatpush.bf16.msra.mxu0 %v4889
          %4986 = vmatmul.bf16.gmra.mxu0 %v4752
          %v4987 = vpop.f32.mrf.mxu0
          %v4988 = vadd.f32 %v4789, %v4987
          %v4989 = vpop.f32.mrf.mxu0
          %4990 = vdwg.mxu0
          %4991 = vmatpush.bf16.msra.mxu0 %v4919
          %4992 = vmatpush.bf16.msra.mxu0 %v4917
          %4993 = vmatpush.bf16.msra.mxu0 %v4915
          %4994 = vmatpush.bf16.msra.mxu0 %v4913
          %4995 = vmatpush.bf16.msra.mxu0 %v4911
          %4996 = vmatpush.bf16.msra.mxu0 %v4909
          %4997 = vmatpush.bf16.msra.mxu0 %v4907
          %4998 = vmatpush.bf16.msra.mxu0 %v4905
          %4999 = vmatmul.bf16.gmra.mxu0 %v4753
          %v5000 = vpop.f32.mrf.mxu0
          %v5001 = vadd.f32 %v4988, %v5000
          %v5002 = vpop.f32.mrf.mxu0
          %5003 = vdwg.mxu0
          %v5004 = vmax.f32 %v4975, 0.0
          %v5005 = vmax.f32 %v5001, 0.0
          %v5006 = vrot.slane %v5004, 4
          %v5007 = vadd.f32 %v5004, %v5006
          %v5008 = vrot.slane %v5007, 2
          %v5009 = vadd.f32 %v5007, %v5008
          %v5010 = vrot.slane %v5009, 1
          %v5011 = vadd.f32 %v5009, %v5010
          %v5012 = vrot.slane %v5005, 4
          %v5013 = vadd.f32 %v5005, %v5012
          %v5014 = vrot.slane %v5013, 2
          %v5015 = vadd.f32 %v5013, %v5014
          %v5016 = vrot.slane %v5015, 1
          %v5017 = vadd.f32 %v5015, %v5016
          %v5018 = vmul.f32 %v5011, %v2935
          %v5019 = vmul.f32 %v5017, %v2935
          %v5020 = vsub.f32 %v5004, %v5018
          %v5021 = vsub.f32 %v5005, %v5019
          %v5022 = vmul.f32 %v5020, %v5020
          %v5023 = vmul.f32 %v5021, %v5021
          %v5024 = vrot.slane %v5022, 4
          %v5025 = vadd.f32 %v5022, %v5024
          %v5026 = vrot.slane %v5025, 2
          %v5027 = vadd.f32 %v5025, %v5026
          %v5028 = vrot.slane %v5027, 1
          %v5029 = vadd.f32 %v5027, %v5028
          %v5030 = vrot.slane %v5023, 4
          %v5031 = vadd.f32 %v5023, %v5030
          %v5032 = vrot.slane %v5031, 2
          %v5033 = vadd.f32 %v5031, %v5032
          %v5034 = vrot.slane %v5033, 1
          %v5035 = vadd.f32 %v5033, %v5034
          %v5036 = vmul.f32 %v5029, %v2935
          %v5037 = vmul.f32 %v5035, %v2935
          %v5038 = vadd.f32 %v5036, 1e-05
          %v5039 = vadd.f32 %v5037, 1e-05
          %v5040 = vrsqrt.pop %v5038
          %v5041 = vmul.f32 %v5040, %v5038
          %v5042 = vmul.f32 %v5041, %v5040
          %v5043 = vmul.f32 0.5, %v5042
          %v5044 = vsub.f32 1.5, %v5043
          %v5045 = vmul.f32 %v5040, %v5044
          %vm5046 = vweird.f32 %v5038
          %vm5047 = vweird.f32 %v5040
          %vm5048 = vmor %vm5046, %vm5047
          %v5049 = vsel %vm5048, %v5040, %v5045
          %v5050 = vrsqrt.pop %v5039
          %v5051 = vmul.f32 %v5050, %v5039
          %v5052 = vmul.f32 %v5051, %v5050
          %v5053 = vmul.f32 0.5, %v5052
          %v5054 = vsub.f32 1.5, %v5053
          %v5055 = vmul.f32 %v5050, %v5054
          %vm5056 = vweird.f32 %v5039
          %vm5057 = vweird.f32 %v5050
          %vm5058 = vmor %vm5056, %vm5057
          %v5059 = vsel %vm5058, %v5050, %v5055
          %v5060 = vmul.f32 %v5049, %v4734
          %v5061 = vmul.f32 %v5059, %v4735
          %v5062 = vperm.slane %v5060, 0
          %v5063 = vperm.slane %v5061, 0
          %v5064 = vmul.f32 %v5020, %v5062
          %v5065 = vmul.f32 %v5021, %v5063
          %v5066 = vadd.f32 %v5064, %v4746
          %v5067 = vadd.f32 %v5065, %v4747
          %v5068 = vadd.f32 %v5066, %v4750
          %v5069 = vadd.f32 %v5067, %v4751
          %v5070 = vpack.c.bf16 %v5068, %v5068
          %v5071 = vpack.c.bf16 %v5069, %v5069
          %v5072 = vld [vmem:[#allocation17] sm:$0xf]
          %v5073 = vld [vmem:[#allocation17 + $0x4] sm:$0xf]
          %v5074 = vld [vmem:[#allocation17 + $0x8] sm:$0xf]
          %v5075 = vld [vmem:[#allocation17 + $0xc] sm:$0xf]
          %v5076 = vld [vmem:[#allocation17 + $0x10] sm:$0xf]
          %v5077 = vld [vmem:[#allocation17 + $0x14] sm:$0xf]
          %v5078 = vld [vmem:[#allocation17 + $0x18] sm:$0xf]
          %v5079 = vld [vmem:[#allocation17 + $0x1c] sm:$0xf]
          %v5080 = vld [vmem:[#allocation17 + $0x20] sm:$0xf]
          %v5081 = vld [vmem:[#allocation17 + $0x24] sm:$0xf]
          %v5082 = vld [vmem:[#allocation17 + $0x28] sm:$0xf]
          %v5083 = vld [vmem:[#allocation17 + $0x2c] sm:$0xf]
          %v5084 = vld [vmem:[#allocation17 + $0x30] sm:$0xf]
          %v5085 = vld [vmem:[#allocation17 + $0x34] sm:$0xf]
          %v5086 = vld [vmem:[#allocation17 + $0x38] sm:$0xf]
          %v5087 = vld [vmem:[#allocation17 + $0x3c] sm:$0xf]
          %v5088 = vld [vmem:[#allocation17 + $0x40] sm:$0xf]
          %v5089 = vld [vmem:[#allocation17 + $0x44] sm:$0xf]
          %v5090 = vld [vmem:[#allocation17 + $0x48] sm:$0xf]
          %v5091 = vld [vmem:[#allocation17 + $0x4c] sm:$0xf]
          %v5092 = vld [vmem:[#allocation17 + $0x50] sm:$0xf]
          %v5093 = vld [vmem:[#allocation17 + $0x54] sm:$0xf]
          %v5094 = vld [vmem:[#allocation17 + $0x58] sm:$0xf]
          %v5095 = vld [vmem:[#allocation17 + $0x5c] sm:$0xf]
          %v5096 = vld [vmem:[#allocation17 + $0x60] sm:$0xf]
          %v5097 = vld [vmem:[#allocation17 + $0x64] sm:$0xf]
          %v5098 = vld [vmem:[#allocation17 + $0x68] sm:$0xf]
          %v5099 = vld [vmem:[#allocation17 + $0x6c] sm:$0xf]
          %v5100 = vld [vmem:[#allocation17 + $0x70] sm:$0xf]
          %v5101 = vld [vmem:[#allocation17 + $0x74] sm:$0xf]
          %v5102 = vld [vmem:[#allocation17 + $0x78] sm:$0xf]
          %v5103 = vld [vmem:[#allocation17 + $0x7c] sm:$0xf]
          %v5104 = vld [vmem:[#allocation18] sm:$0x1]
          %v5106 = vperm.slane %v5104, 0
          %v5140 = vunpack.c.l.b16 %v5072
          %v5141 = vunpack.c.l.b16 %v5073
          %v5142 = vunpack.c.l.b16 %v5074
          %v5143 = vunpack.c.l.b16 %v5075
          %v5144 = vunpack.c.l.b16 %v5076
          %v5145 = vunpack.c.l.b16 %v5077
          %v5146 = vunpack.c.l.b16 %v5078
          %v5147 = vunpack.c.l.b16 %v5079
          %v5148 = vunpack.c.l.b16 %v5080
          %v5149 = vunpack.c.l.b16 %v5081
          %v5150 = vunpack.c.l.b16 %v5082
          %v5151 = vunpack.c.l.b16 %v5083
          %v5152 = vunpack.c.l.b16 %v5084
          %v5153 = vunpack.c.l.b16 %v5085
          %v5154 = vunpack.c.l.b16 %v5086
          %v5155 = vunpack.c.l.b16 %v5087
          %v5156 = vunpack.c.l.b16 %v5088
          %v5157 = vunpack.c.l.b16 %v5089
          %v5158 = vunpack.c.l.b16 %v5090
          %v5159 = vunpack.c.l.b16 %v5091
          %v5160 = vunpack.c.l.b16 %v5092
          %v5161 = vunpack.c.l.b16 %v5093
          %v5162 = vunpack.c.l.b16 %v5094
          %v5163 = vunpack.c.l.b16 %v5095
          %v5164 = vunpack.c.l.b16 %v5096
          %v5165 = vunpack.c.l.b16 %v5097
          %v5166 = vunpack.c.l.b16 %v5098
          %v5167 = vunpack.c.l.b16 %v5099
          %v5168 = vunpack.c.l.b16 %v5100
          %v5169 = vunpack.c.l.b16 %v5101
          %v5170 = vunpack.c.l.b16 %v5102
          %v5171 = vunpack.c.l.b16 %v5103
          %v5172 = vpack.c.b16 %v5141, %v5140
          %v5173 = vpack.c.b16 %v5143, %v5142
          %v5174 = vpack.c.b16 %v5145, %v5144
          %v5175 = vpack.c.b16 %v5147, %v5146
          %v5176 = vpack.c.b16 %v5149, %v5148
          %v5177 = vpack.c.b16 %v5151, %v5150
          %v5178 = vpack.c.b16 %v5153, %v5152
          %v5179 = vpack.c.b16 %v5155, %v5154
          %v5180 = vpack.c.b16 %v5157, %v5156
          %v5181 = vpack.c.b16 %v5159, %v5158
          %v5182 = vpack.c.b16 %v5161, %v5160
          %v5183 = vpack.c.b16 %v5163, %v5162
          %v5184 = vpack.c.b16 %v5165, %v5164
          %v5185 = vpack.c.b16 %v5167, %v5166
          %v5186 = vpack.c.b16 %v5169, %v5168
          %v5187 = vpack.c.b16 %v5171, %v5170
          %5204 = vmatpush.bf16.msra.mxu0 %v5179
          %5205 = vmatpush.bf16.msra.mxu0 %v5178
          %5206 = vmatpush.bf16.msra.mxu0 %v5177
          %5207 = vmatpush.bf16.msra.mxu0 %v5176
          %5208 = vmatpush.bf16.msra.mxu0 %v5175
          %5209 = vmatpush.bf16.msra.mxu0 %v5174
          %5210 = vmatpush.bf16.msra.mxu0 %v5173
          %5211 = vmatpush.bf16.msra.mxu0 %v5172
          %5212 = vmatmul.bf16.gmra.mxu0 %v5070
          %v5213 = vpop.f32.mrf.mxu0
          %v5214 = vadd.f32 %v5106, %v5213
          %v5215 = vpop.f32.mrf.mxu0
          %5216 = vdwg.mxu0
          %5217 = vmatpush.bf16.msra.mxu0 %v5187
          %5218 = vmatpush.bf16.msra.mxu0 %v5186
          %5219 = vmatpush.bf16.msra.mxu0 %v5185
          %5220 = vmatpush.bf16.msra.mxu0 %v5184
          %5221 = vmatpush.bf16.msra.mxu0 %v5183
          %5222 = vmatpush.bf16.msra.mxu0 %v5182
          %5223 = vmatpush.bf16.msra.mxu0 %v5181
          %5224 = vmatpush.bf16.msra.mxu0 %v5180
          %5225 = vmatmul.bf16.gmra.mxu0 %v5071
          %v5226 = vpop.f32.mrf.mxu0
          %v5227 = vadd.f32 %v5214, %v5226
          %v5228 = vpop.f32.mrf.mxu0
          %5229 = vdwg.mxu0
          %v5230 = vmax.f32 %v5227, 0.0
          %v5231 = vrot.slane %v5230, 4
          %v5232 = vadd.f32 %v5230, %v5231
          %v5233 = vrot.slane %v5232, 2
          %v5234 = vadd.f32 %v5232, %v5233
          %v5235 = vrot.slane %v5234, 1
          %v5236 = vadd.f32 %v5234, %v5235
          %v5237 = vmul.f32 %v5236, %v2935
          %v5238 = vsub.f32 %v5230, %v5237
          %v5239 = vmul.f32 %v5238, %v5238
          %v5240 = vrot.slane %v5239, 4
          %v5241 = vadd.f32 %v5239, %v5240
          %v5242 = vrot.slane %v5241, 2
          %v5243 = vadd.f32 %v5241, %v5242
          %v5244 = vrot.slane %v5243, 1
          %v5245 = vadd.f32 %v5243, %v5244
          %v5246 = vmul.f32 %v5245, %v2935
          %v5247 = vadd.f32 %v5246, 1e-05
          %v5248 = vrsqrt.pop %v5247
          %v5249 = vmul.f32 %v5248, %v5247
          %v5250 = vmul.f32 %v5249, %v5248
          %v5251 = vmul.f32 0.5, %v5250
          %v5252 = vsub.f32 1.5, %v5251
          %v5253 = vmul.f32 %v5248, %v5252
          %vm5254 = vweird.f32 %v5247
          %vm5255 = vweird.f32 %v5248
          %vm5256 = vmor %vm5254, %vm5255
          %v5257 = vsel %vm5256, %v5248, %v5253
          %v5258 = vld [vmem:[#allocation27] sm:$0x1]
          %v5259 = vmul.f32 %v5257, %v5258
          %v5260 = vperm.slane %v5259, 0
          %v5261 = vmul.f32 %v5238, %v5260
          %v5262 = vld [vmem:[#allocation29] sm:$0x1]
          %v5264 = vperm.slane %v5262, 0
          %v5266 = vadd.f32 %v5261, %v5264
          %v5267 = vpack.c.bf16 %v5266, %v5266
          %v5268 = vld [vmem:[%s11] sm:$0xf]
          %v5269 = vld [vmem:[%s11 + $0x4] sm:$0xf]
          %v5270 = vld [vmem:[%s11 + $0x8] sm:$0xf]
          %v5271 = vld [vmem:[%s11 + $0xc] sm:$0xf]
          %v5272 = vld [vmem:[%s11 + $0x10] sm:$0xf]
          %v5273 = vld [vmem:[%s11 + $0x14] sm:$0xf]
          %v5274 = vld [vmem:[%s11 + $0x18] sm:$0xf]
          %v5275 = vld [vmem:[%s11 + $0x1c] sm:$0xf]
          %v5276 = vld [vmem:[%s11 + $0x20] sm:$0xf]
          %v5277 = vld [vmem:[%s11 + $0x24] sm:$0xf]
          %v5278 = vld [vmem:[%s11 + $0x28] sm:$0xf]
          %v5279 = vld [vmem:[%s11 + $0x2c] sm:$0xf]
          %v5280 = vld [vmem:[%s11 + $0x30] sm:$0xf]
          %v5281 = vld [vmem:[%s11 + $0x34] sm:$0xf]
          %v5282 = vld [vmem:[%s11 + $0x38] sm:$0xf]
          %v5283 = vld [vmem:[%s11 + $0x3c] sm:$0xf]
          %v5284 = vld [vmem:[#allocation20] sm:$0x1]
          %v5286 = vperm.slane %v5284, 0
          %v5304 = vunpack.c.l.b16 %v5268
          %v5305 = vunpack.c.l.b16 %v5269
          %v5306 = vunpack.c.l.b16 %v5270
          %v5307 = vunpack.c.l.b16 %v5271
          %v5308 = vunpack.c.l.b16 %v5272
          %v5309 = vunpack.c.l.b16 %v5273
          %v5310 = vunpack.c.l.b16 %v5274
          %v5311 = vunpack.c.l.b16 %v5275
          %v5312 = vunpack.c.l.b16 %v5276
          %v5313 = vunpack.c.l.b16 %v5277
          %v5314 = vunpack.c.l.b16 %v5278
          %v5315 = vunpack.c.l.b16 %v5279
          %v5316 = vunpack.c.l.b16 %v5280
          %v5317 = vunpack.c.l.b16 %v5281
          %v5318 = vunpack.c.l.b16 %v5282
          %v5319 = vunpack.c.l.b16 %v5283
          %v5320 = vpack.c.b16 %v5305, %v5304
          %v5321 = vpack.c.b16 %v5307, %v5306
          %v5322 = vpack.c.b16 %v5309, %v5308
          %v5323 = vpack.c.b16 %v5311, %v5310
          %v5324 = vpack.c.b16 %v5313, %v5312
          %v5325 = vpack.c.b16 %v5315, %v5314
          %v5326 = vpack.c.b16 %v5317, %v5316
          %v5327 = vpack.c.b16 %v5319, %v5318
          %5336 = vmatpush.bf16.msra.mxu0 %v5327
          %5337 = vmatpush.bf16.msra.mxu0 %v5326
          %5338 = vmatpush.bf16.msra.mxu0 %v5325
          %5339 = vmatpush.bf16.msra.mxu0 %v5324
          %5340 = vmatpush.bf16.msra.mxu0 %v5323
          %5341 = vmatpush.bf16.msra.mxu0 %v5322
          %5342 = vmatpush.bf16.msra.mxu0 %v5321
          %5343 = vmatpush.bf16.msra.mxu0 %v5320
          %5344 = vmatmul.bf16.gmra.mxu0 %v5267
          %v5345 = vpop.f32.mrf.mxu0
          %v5346 = vadd.f32 %v5286, %v5345
          %v5347 = vpop.f32.mrf.mxu0
          %5348 = vdwg.mxu0
          %vm5349 = vcmask 80896
          %5350 = vst.msk [vmem:[#allocation30] sm:$0xff] %vm5349, %v5346
        $region172: #{six_layer_mlp.1} parent=95 // pred_fallthru
          _
        // Predicated region
        $region173: #{six_layer_mlp.1} parent=95 // pred_check
          %p5351 = pneg %p464
        $region174: #{six_layer_mlp.1} parent=95 // pred_check_branch
          %5353 = sbr.rel (%p5351) target = $region176
        $region175: #{six_layer_mlp.1} parent=95 // pred_region
          %5355 = vsyncadd [#allocation5], 0
          %s5357 = sshll.u32 [#allocation30], 4
          %s5358 = int_to_ptr.vmem [resolvable:$true] %s5357
          %s5359 = sshll.u32 %s19, 4
          %s5360 = int_to_ptr.hbm [resolvable:$true] %s5359
          %5362 = dma.vmem_to_hbm [thread:$0]  %s5358, 128, %s5360, [#allocation5]
        $region176: #{six_layer_mlp.1} parent=95 // pred_fallthru
          _
        // Predicated region
        $region177: #{six_layer_mlp.1} parent=95 // pred_check
          %p5363 = pneg %p464
        $region178: #{six_layer_mlp.1} parent=95 // pred_check_branch
          %5365 = sbr.rel (%p5363) target = $region180
        $region179: #{six_layer_mlp.1} parent=95 // pred_region
          %5367 = dma.done [#allocation5], 128
        $region180: #{six_layer_mlp.1} parent=95 // pred_fallthru
          _
      $region96: #{six_layer_mlp.1} parent=5 // pred_fallthru
        _
      %p5368 = scmp.le.s32.totalorder 2, %s37
      // Predicated region
      $region181: #{six_layer_mlp.1} parent=5 // pred_check
        %p5369 = pneg %p5368
      $region182: #{six_layer_mlp.1} parent=5 // pred_check_branch
        %5371 = sbr.rel (%p5369) target = $region184
      $region183: #{six_layer_mlp.1} parent=5 // pred_region
        %s5372 = ssub.s32 %s37, 2
      $region184: #{six_layer_mlp.1} parent=5 // pred_fallthru
        _
    $region6: #{six_layer_mlp.1} parent=1 // loop_footer
      %s41 = sadd.s32 1, %s37
    $region7: #{six_layer_mlp.1} parent=1 // loop_footer_branch
      %36 = sbr.rel target = $region3
    $region8: #{six_layer_mlp.1} parent=1 // loop_exit
      _
    %5373 = vsyncpa [#allocation4], 1
    %s5374 = scalar_lea.sflag [#allocation4], 1
    %5375 = vsyncpa %s5374, 1
    %5376 = vsyncpa [#allocation7], 1
    %5377 = vsyncpa [#allocation10], 1
    %5378 = vsyncpa [#allocation13], 1
    %5379 = vsyncpa [#allocation16], 1
    %5380 = vsyncpa [#allocation19], 1
    %5381 = vsyncpa [#allocation22], 1
    %5382 = vsyncpa [#allocation25], 1
    %5383 = vsyncpa [#allocation28], 1
    %5384 = vsyncpa [#allocation5], 1
    %s5385 = scalar_lea.sflag [#allocation5], 1
    %5386 = vsyncpa %s5385, 1

</llo_original>
